<compile_context>
chip_gen: v7x
topology: tpu7x:2x2x1
jax: 0.10.0
libtpu: 0.0.40
codegen_flags: <defaults>
</compile_context>

<pallas_src>
import functools

import jax
import jax.numpy as jnp
from jax.experimental import pallas as pl
from jax.experimental.pallas import tpu as pltpu


def _fused_residual_kernel(x_ref, w1_ref, b1_ref, w2_ref, b2_ref, a_ref,
                           o_ref, pad_ref, cols_ref, *, H, W, C):
    """One image per grid step.

    x_ref   : (1, C, H*W)        input image, flattened spatial (lane-dense)
    w*_ref  : (C, 9*C)           conv weights as im2col matrices (Cout, 9*Cin)
    b*_ref  : (C, 1)             conv biases
    a_ref   : (1,) in SMEM       PReLU slope
    o_ref   : (1, C, H*W)        output
    pad_ref : (C, (H+2)*(W+2))   reflection-padded image, flat (VMEM scratch)
    cols_ref: (9*C, L)           im2col matrix (VMEM scratch)
    """
    Hp, Wp = H + 2, W + 2
    # "Wide" conv output: valid pixel (h, w) lives at flat position h*Wp + w;
    # positions with w >= W are row-seam garbage and are never read.
    L = (H - 1) * Wp + W
    f32 = jnp.float32

    def store_padded_row(r, row):
        # row: (C, W) -> padded row r of pad_ref, with horizontal reflection
        # (edge-exclusive, same as ReflectionPad2d / jnp.pad 'reflect').
        base = r * Wp
        pad_ref[:, base + 1:base + 1 + W] = row
        pad_ref[:, base:base + 1] = row[:, 1:2]                      # left
        pad_ref[:, base + W + 1:base + W + 2] = row[:, W - 2:W - 1]  # right

    def fill_reflection_pad(load_row):
        for h in range(H):                        # interior rows
            store_padded_row(h + 1, load_row(h))
        store_padded_row(0, load_row(1))          # top reflection
        store_padded_row(Hp - 1, load_row(H - 2))  # bottom reflection

    def conv3x3(w_ref, b_ref):
        # im2col: each of the 9 taps is a flat shifted slice of the padded image.
        t = 0
        for dy in range(3):
            for dx in range(3):
                off = dy * Wp + dx
                cols_ref[t * C:(t + 1) * C, :] = pad_ref[:, off:off + L]
                t += 1
        # Single MXU matmul per conv: K = 9*C, lane-dense N = L, f32 accumulate.
        return (jnp.dot(w_ref[...].astype(f32), cols_ref[...],
                        preferred_element_type=f32)
                + b_ref[...].astype(f32))                            # (C, L)

    # ---- conv1 + PReLU (reflection pad of x built in VMEM) -------------------
    fill_reflection_pad(lambda h: x_ref[0, :, h * W:(h + 1) * W].astype(f32))
    pre1 = conv3x3(w1_ref, b1_ref)
    alpha = a_ref[0]
    h_wide = jnp.where(pre1 > 0, pre1, alpha * pre1)                 # PReLU

    # ---- conv2 (intermediate never leaves VMEM; re-pad in place) -------------
    fill_reflection_pad(lambda h: h_wide[:, h * Wp:h * Wp + W])
    pre2 = conv3x3(w2_ref, b2_ref)

    # ---- out = conv2 * 0.1 + residual (residual from the resident x tile) ----
    for h in range(H):
        y = (pre2[:, h * Wp:h * Wp + W] * f32(0.1)
             + x_ref[0, :, h * W:(h + 1) * W].astype(f32))
        o_ref[0, :, h * W:(h + 1) * W] = y.astype(o_ref.dtype)


def residual_block(x, w1, b1, w2, b2, prelu_a):
    """x: (N, C, H, W); w1/w2: (3,3,Cin,Cout) HWIO; b1/b2: (C,); prelu_a: scalar."""
    N, C, H, W = x.shape
    HW = H * W
    L = (H - 1) * (W + 2) + W

    x_flat = x.reshape(N, C, HW)                  # lane-dense minor dim (H*W)
    # (Cout, 9*Cin) im2col weight matrices; k-index = (dy*3+dx)*Cin + ci.
    w1m = jnp.transpose(w1.reshape(9 * C, C))
    w2m = jnp.transpose(w2.reshape(9 * C, C))
    b1c = b1.reshape(C, 1)
    b2c = b2.reshape(C, 1)
    alpha = jnp.reshape(jnp.asarray(prelu_a, jnp.float32), (1,))

    kernel = functools.partial(_fused_residual_kernel, H=H, W=W, C=C)

    out_flat = pl.pallas_call(
        kernel,
        out_shape=jax.ShapeDtypeStruct((N, C, HW), x.dtype),
        grid=(N,),
        in_specs=[
            pl.BlockSpec((1, C, HW), lambda n: (n, 0, 0)),   # image n
            pl.BlockSpec((C, 9 * C), lambda n: (0, 0)),      # w1 (resident)
            pl.BlockSpec((C, 1), lambda n: (0, 0)),          # b1
            pl.BlockSpec((C, 9 * C), lambda n: (0, 0)),      # w2
            pl.BlockSpec((C, 1), lambda n: (0, 0)),          # b2
            pl.BlockSpec(memory_space=pltpu.MemorySpace.SMEM),  # prelu slope
        ],
        out_specs=pl.BlockSpec((1, C, HW), lambda n: (n, 0, 0)),
        scratch_shapes=[
            pltpu.VMEM((C, (H + 2) * (W + 2)), jnp.float32),  # padded image
            pltpu.VMEM((9 * C, L), jnp.float32),              # im2col columns
        ],
        compiler_params=pltpu.CompilerParams(
            dimension_semantics=("parallel",)),
    )(x_flat, w1m, b1c, w2m, b2c, alpha)

    return out_flat.reshape(N, C, H, W)


def _reference(x, w1, b1, w2, b2, prelu_a):
    """Pure-JAX reference (NCHW activations / HWIO weights)."""
    def conv(z, w, b):
        zp = jnp.pad(z, ((0, 0), (0, 0), (1, 1), (1, 1)), mode="reflect")
        y = jax.lax.conv_general_dilated(
            zp, w, window_strides=(1, 1), padding="VALID",
            dimension_numbers=("NCHW", "HWIO", "NCHW"))
        return y + b[None, :, None, None]

    h = conv(x, w1, b1)
    h = jnp.where(h > 0, h, prelu_a * h)
    return conv(h, w2, b2) * 0.1 + x


if __name__ == "__main__":
    N, C, H, W = 2, 4, 16, 16  # PyTorch-style NCHW input

    key = jax.random.PRNGKey(0)
    kx, kw1, kb1, kw2, kb2 = jax.random.split(key, 5)

    x = jax.random.normal(kx, (N, C, H, W), dtype=jnp.float32)
    # Synthetic parameters with Conv2d(C, C, 3, 1) shapes (stored HWIO here).
    w1 = jax.random.normal(kw1, (3, 3, C, C), dtype=jnp.float32) * 0.1
    b1 = jax.random.normal(kb1, (C,), dtype=jnp.float32) * 0.1
    w2 = jax.random.normal(kw2, (3, 3, C, C), dtype=jnp.float32) * 0.1
    b2 = jax.random.normal(kb2, (C,), dtype=jnp.float32) * 0.1
    prelu_a = jnp.float32(0.25)  # nn.PReLU() default init

    out = residual_block(x, w1, b1, w2, b2, prelu_a)
    out = jax.block_until_ready(out)

    ref = _reference(x, w1, b1, w2, b2, prelu_a)
    assert out.shape == (N, C, H, W)
    assert jnp.allclose(out, ref, rtol=1e-2, atol=1e-2), "mismatch vs reference"

    print("KERNEL_OK")
</pallas_src>

<mosaic_0001>
module attributes {stable_mosaic.version = 11 : i64} {
  func.func @_fused_residual_kernel(%arg0: i32, %arg1: memref<1x4x256xf32, #tpu.memory_space<vmem>>, %arg2: memref<4x36xf32, #tpu.memory_space<vmem>>, %arg3: memref<4x1xf32, #tpu.memory_space<vmem>>, %arg4: memref<4x36xf32, #tpu.memory_space<vmem>>, %arg5: memref<4x1xf32, #tpu.memory_space<vmem>>, %arg6: memref<1xf32, #tpu.memory_space<smem>>, %arg7: memref<1x4x256xf32, #tpu.memory_space<vmem>>, %arg8: memref<4x324xf32, #tpu.memory_space<vmem>>, %arg9: memref<36x286xf32, #tpu.memory_space<vmem>>) attributes {dimension_semantics = [#tpu.dimension_semantics<parallel>], iteration_bounds = array<i64: 2>, scalar_prefetch = 0 : i64, scratch_operands = 2 : i64, tpu.core_type = #tpu.core_type<tc>, window_params = [{transform_indices = @transform_0, window_bounds = array<i64: 1, 4, 256>}, {pipeline_mode = #tpu.pipeline_mode<synchronous>, transform_indices = @transform_1, window_bounds = array<i64: 4, 36>}, {pipeline_mode = #tpu.pipeline_mode<synchronous>, transform_indices = @transform_2, window_bounds = array<i64: 4, 1>}, {pipeline_mode = #tpu.pipeline_mode<synchronous>, transform_indices = @transform_3, window_bounds = array<i64: 4, 36>}, {pipeline_mode = #tpu.pipeline_mode<synchronous>, transform_indices = @transform_4, window_bounds = array<i64: 4, 1>}, {transform_indices = @transform_5, window_bounds = array<i64: 1>}, {transform_indices = @transform_6, window_bounds = array<i64: 1, 4, 256>}]} {
    %c0 = arith.constant 0 : index
    %c0_0 = arith.constant 0 : index
    %c0_1 = arith.constant 0 : index
    %0 = vector.load %arg1[%c0, %c0_0, %c0_1] : memref<1x4x256xf32, #tpu.memory_space<vmem>>, vector<1x4x16xf32>
    %1 = vector.shape_cast %0 : vector<1x4x16xf32> to vector<4x16xf32>
    %c0_2 = arith.constant 0 : index
    %c19 = arith.constant 19 : index
    %2 = vector.load %arg8[%c0_2, %c19] : memref<4x324xf32, #tpu.memory_space<vmem>>, vector<4x16xf32>
    tpu.vector_store %arg8[%c0_2, %c19], %1 {strides = array<i32>} : memref<4x324xf32, #tpu.memory_space<vmem>>, vector<4x16xf32>,
    %3 = vector.extract_strided_slice %1 {offsets = [0, 1], sizes = [4, 1], strides = [1, 1]} : vector<4x16xf32> to vector<4x1xf32>
    %c0_3 = arith.constant 0 : index
    %c18 = arith.constant 18 : index
    %4 = vector.load %arg8[%c0_3, %c18] : memref<4x324xf32, #tpu.memory_space<vmem>>, vector<4x1xf32>
    tpu.vector_store %arg8[%c0_3, %c18], %3 {strides = array<i32>} : memref<4x324xf32, #tpu.memory_space<vmem>>, vector<4x1xf32>,
    %5 = vector.extract_strided_slice %1 {offsets = [0, 14], sizes = [4, 1], strides = [1, 1]} : vector<4x16xf32> to vector<4x1xf32>
    %c0_4 = arith.constant 0 : index
    %c35 = arith.constant 35 : index
    %6 = vector.load %arg8[%c0_4, %c35] : memref<4x324xf32, #tpu.memory_space<vmem>>, vector<4x1xf32>
    tpu.vector_store %arg8[%c0_4, %c35], %5 {strides = array<i32>} : memref<4x324xf32, #tpu.memory_space<vmem>>, vector<4x1xf32>,
    %c0_5 = arith.constant 0 : index
    %c0_6 = arith.constant 0 : index
    %c16 = arith.constant 16 : index
    %7 = vector.load %arg1[%c0_5, %c0_6, %c16] : memref<1x4x256xf32, #tpu.memory_space<vmem>>, vector<1x4x16xf32>
    %8 = vector.shape_cast %7 : vector<1x4x16xf32> to vector<4x16xf32>
    %c0_7 = arith.constant 0 : index
    %c37 = arith.constant 37 : index
    %9 = vector.load %arg8[%c0_7, %c37] : memref<4x324xf32, #tpu.memory_space<vmem>>, vector<4x16xf32>
    tpu.vector_store %arg8[%c0_7, %c37], %8 {strides = array<i32>} : memref<4x324xf32, #tpu.memory_space<vmem>>, vector<4x16xf32>,
    %10 = vector.extract_strided_slice %8 {offsets = [0, 1], sizes = [4, 1], strides = [1, 1]} : vector<4x16xf32> to vector<4x1xf32>
    %c0_8 = arith.constant 0 : index
    %c36 = arith.constant 36 : index
    %11 = vector.load %arg8[%c0_8, %c36] : memref<4x324xf32, #tpu.memory_space<vmem>>, vector<4x1xf32>
    tpu.vector_store %arg8[%c0_8, %c36], %10 {strides = array<i32>} : memref<4x324xf32, #tpu.memory_space<vmem>>, vector<4x1xf32>,
    %12 = vector.extract_strided_slice %8 {offsets = [0, 14], sizes = [4, 1], strides = [1, 1]} : vector<4x16xf32> to vector<4x1xf32>
    %c0_9 = arith.constant 0 : index
    %c53 = arith.constant 53 : index
    %13 = vector.load %arg8[%c0_9, %c53] : memref<4x324xf32, #tpu.memory_space<vmem>>, vector<4x1xf32>
    tpu.vector_store %arg8[%c0_9, %c53], %12 {strides = array<i32>} : memref<4x324xf32, #tpu.memory_space<vmem>>, vector<4x1xf32>,
    %c0_10 = arith.constant 0 : index
    %c0_11 = arith.constant 0 : index
    %c32 = arith.constant 32 : index
    %14 = vector.load %arg1[%c0_10, %c0_11, %c32] : memref<1x4x256xf32, #tpu.memory_space<vmem>>, vector<1x4x16xf32>
    %15 = vector.shape_cast %14 : vector<1x4x16xf32> to vector<4x16xf32>
    %c0_12 = arith.constant 0 : index
    %c55 = arith.constant 55 : index
    %16 = vector.load %arg8[%c0_12, %c55] : memref<4x324xf32, #tpu.memory_space<vmem>>, vector<4x16xf32>
    tpu.vector_store %arg8[%c0_12, %c55], %15 {strides = array<i32>} : memref<4x324xf32, #tpu.memory_space<vmem>>, vector<4x16xf32>,
    %17 = vector.extract_strided_slice %15 {offsets = [0, 1], sizes = [4, 1], strides = [1, 1]} : vector<4x16xf32> to vector<4x1xf32>
    %c0_13 = arith.constant 0 : index
    %c54 = arith.constant 54 : index
    %18 = vector.load %arg8[%c0_13, %c54] : memref<4x324xf32, #tpu.memory_space<vmem>>, vector<4x1xf32>
    tpu.vector_store %arg8[%c0_13, %c54], %17 {strides = array<i32>} : memref<4x324xf32, #tpu.memory_space<vmem>>, vector<4x1xf32>,
    %19 = vector.extract_strided_slice %15 {offsets = [0, 14], sizes = [4, 1], strides = [1, 1]} : vector<4x16xf32> to vector<4x1xf32>
    %c0_14 = arith.constant 0 : index
    %c71 = arith.constant 71 : index
    %20 = vector.load %arg8[%c0_14, %c71] : memref<4x324xf32, #tpu.memory_space<vmem>>, vector<4x1xf32>
    tpu.vector_store %arg8[%c0_14, %c71], %19 {strides = array<i32>} : memref<4x324xf32, #tpu.memory_space<vmem>>, vector<4x1xf32>,
    %c0_15 = arith.constant 0 : index
    %c0_16 = arith.constant 0 : index
    %c48 = arith.constant 48 : index
    %21 = vector.load %arg1[%c0_15, %c0_16, %c48] : memref<1x4x256xf32, #tpu.memory_space<vmem>>, vector<1x4x16xf32>
    %22 = vector.shape_cast %21 : vector<1x4x16xf32> to vector<4x16xf32>
    %c0_17 = arith.constant 0 : index
    %c73 = arith.constant 73 : index
    %23 = vector.load %arg8[%c0_17, %c73] : memref<4x324xf32, #tpu.memory_space<vmem>>, vector<4x16xf32>
    tpu.vector_store %arg8[%c0_17, %c73], %22 {strides = array<i32>} : memref<4x324xf32, #tpu.memory_space<vmem>>, vector<4x16xf32>,
    %24 = vector.extract_strided_slice %22 {offsets = [0, 1], sizes = [4, 1], strides = [1, 1]} : vector<4x16xf32> to vector<4x1xf32>
    %c0_18 = arith.constant 0 : index
    %c72 = arith.constant 72 : index
    %25 = vector.load %arg8[%c0_18, %c72] : memref<4x324xf32, #tpu.memory_space<vmem>>, vector<4x1xf32>
    tpu.vector_store %arg8[%c0_18, %c72], %24 {strides = array<i32>} : memref<4x324xf32, #tpu.memory_space<vmem>>, vector<4x1xf32>,
    %26 = vector.extract_strided_slice %22 {offsets = [0, 14], sizes = [4, 1], strides = [1, 1]} : vector<4x16xf32> to vector<4x1xf32>
    %c0_19 = arith.constant 0 : index
    %c89 = arith.constant 89 : index
    %27 = vector.load %arg8[%c0_19, %c89] : memref<4x324xf32, #tpu.memory_space<vmem>>, vector<4x1xf32>
    tpu.vector_store %arg8[%c0_19, %c89], %26 {strides = array<i32>} : memref<4x324xf32, #tpu.memory_space<vmem>>, vector<4x1xf32>,
    %c0_20 = arith.constant 0 : index
    %c0_21 = arith.constant 0 : index
    %c64 = arith.constant 64 : index
    %28 = vector.load %arg1[%c0_20, %c0_21, %c64] : memref<1x4x256xf32, #tpu.memory_space<vmem>>, vector<1x4x16xf32>
    %29 = vector.shape_cast %28 : vector<1x4x16xf32> to vector<4x16xf32>
    %c0_22 = arith.constant 0 : index
    %c91 = arith.constant 91 : index
    %30 = vector.load %arg8[%c0_22, %c91] : memref<4x324xf32, #tpu.memory_space<vmem>>, vector<4x16xf32>
    tpu.vector_store %arg8[%c0_22, %c91], %29 {strides = array<i32>} : memref<4x324xf32, #tpu.memory_space<vmem>>, vector<4x16xf32>,
    %31 = vector.extract_strided_slice %29 {offsets = [0, 1], sizes = [4, 1], strides = [1, 1]} : vector<4x16xf32> to vector<4x1xf32>
    %c0_23 = arith.constant 0 : index
    %c90 = arith.constant 90 : index
    %32 = vector.load %arg8[%c0_23, %c90] : memref<4x324xf32, #tpu.memory_space<vmem>>, vector<4x1xf32>
    tpu.vector_store %arg8[%c0_23, %c90], %31 {strides = array<i32>} : memref<4x324xf32, #tpu.memory_space<vmem>>, vector<4x1xf32>,
    %33 = vector.extract_strided_slice %29 {offsets = [0, 14], sizes = [4, 1], strides = [1, 1]} : vector<4x16xf32> to vector<4x1xf32>
    %c0_24 = arith.constant 0 : index
    %c107 = arith.constant 107 : index
    %34 = vector.load %arg8[%c0_24, %c107] : memref<4x324xf32, #tpu.memory_space<vmem>>, vector<4x1xf32>
    tpu.vector_store %arg8[%c0_24, %c107], %33 {strides = array<i32>} : memref<4x324xf32, #tpu.memory_space<vmem>>, vector<4x1xf32>,
    %c0_25 = arith.constant 0 : index
    %c0_26 = arith.constant 0 : index
    %c80 = arith.constant 80 : index
    %35 = vector.load %arg1[%c0_25, %c0_26, %c80] : memref<1x4x256xf32, #tpu.memory_space<vmem>>, vector<1x4x16xf32>
    %36 = vector.shape_cast %35 : vector<1x4x16xf32> to vector<4x16xf32>
    %c0_27 = arith.constant 0 : index
    %c109 = arith.constant 109 : index
    %37 = vector.load %arg8[%c0_27, %c109] : memref<4x324xf32, #tpu.memory_space<vmem>>, vector<4x16xf32>
    tpu.vector_store %arg8[%c0_27, %c109], %36 {strides = array<i32>} : memref<4x324xf32, #tpu.memory_space<vmem>>, vector<4x16xf32>,
    %38 = vector.extract_strided_slice %36 {offsets = [0, 1], sizes = [4, 1], strides = [1, 1]} : vector<4x16xf32> to vector<4x1xf32>
    %c0_28 = arith.constant 0 : index
    %c108 = arith.constant 108 : index
    %39 = vector.load %arg8[%c0_28, %c108] : memref<4x324xf32, #tpu.memory_space<vmem>>, vector<4x1xf32>
    tpu.vector_store %arg8[%c0_28, %c108], %38 {strides = array<i32>} : memref<4x324xf32, #tpu.memory_space<vmem>>, vector<4x1xf32>,
    %40 = vector.extract_strided_slice %36 {offsets = [0, 14], sizes = [4, 1], strides = [1, 1]} : vector<4x16xf32> to vector<4x1xf32>
    %c0_29 = arith.constant 0 : index
    %c125 = arith.constant 125 : index
    %41 = vector.load %arg8[%c0_29, %c125] : memref<4x324xf32, #tpu.memory_space<vmem>>, vector<4x1xf32>
    tpu.vector_store %arg8[%c0_29, %c125], %40 {strides = array<i32>} : memref<4x324xf32, #tpu.memory_space<vmem>>, vector<4x1xf32>,
    %c0_30 = arith.constant 0 : index
    %c0_31 = arith.constant 0 : index
    %c96 = arith.constant 96 : index
    %42 = vector.load %arg1[%c0_30, %c0_31, %c96] : memref<1x4x256xf32, #tpu.memory_space<vmem>>, vector<1x4x16xf32>
    %43 = vector.shape_cast %42 : vector<1x4x16xf32> to vector<4x16xf32>
    %c0_32 = arith.constant 0 : index
    %c127 = arith.constant 127 : index
    %44 = vector.load %arg8[%c0_32, %c127] : memref<4x324xf32, #tpu.memory_space<vmem>>, vector<4x16xf32>
    tpu.vector_store %arg8[%c0_32, %c127], %43 {strides = array<i32>} : memref<4x324xf32, #tpu.memory_space<vmem>>, vector<4x16xf32>,
    %45 = vector.extract_strided_slice %43 {offsets = [0, 1], sizes = [4, 1], strides = [1, 1]} : vector<4x16xf32> to vector<4x1xf32>
    %c0_33 = arith.constant 0 : index
    %c126 = arith.constant 126 : index
    %46 = vector.load %arg8[%c0_33, %c126] : memref<4x324xf32, #tpu.memory_space<vmem>>, vector<4x1xf32>
    tpu.vector_store %arg8[%c0_33, %c126], %45 {strides = array<i32>} : memref<4x324xf32, #tpu.memory_space<vmem>>, vector<4x1xf32>,
    %47 = vector.extract_strided_slice %43 {offsets = [0, 14], sizes = [4, 1], strides = [1, 1]} : vector<4x16xf32> to vector<4x1xf32>
    %c0_34 = arith.constant 0 : index
    %c143 = arith.constant 143 : index
    %48 = vector.load %arg8[%c0_34, %c143] : memref<4x324xf32, #tpu.memory_space<vmem>>, vector<4x1xf32>
    tpu.vector_store %arg8[%c0_34, %c143], %47 {strides = array<i32>} : memref<4x324xf32, #tpu.memory_space<vmem>>, vector<4x1xf32>,
    %c0_35 = arith.constant 0 : index
    %c0_36 = arith.constant 0 : index
    %c112 = arith.constant 112 : index
    %49 = vector.load %arg1[%c0_35, %c0_36, %c112] : memref<1x4x256xf32, #tpu.memory_space<vmem>>, vector<1x4x16xf32>
    %50 = vector.shape_cast %49 : vector<1x4x16xf32> to vector<4x16xf32>
    %c0_37 = arith.constant 0 : index
    %c145 = arith.constant 145 : index
    %51 = vector.load %arg8[%c0_37, %c145] : memref<4x324xf32, #tpu.memory_space<vmem>>, vector<4x16xf32>
    tpu.vector_store %arg8[%c0_37, %c145], %50 {strides = array<i32>} : memref<4x324xf32, #tpu.memory_space<vmem>>, vector<4x16xf32>,
    %52 = vector.extract_strided_slice %50 {offsets = [0, 1], sizes = [4, 1], strides = [1, 1]} : vector<4x16xf32> to vector<4x1xf32>
    %c0_38 = arith.constant 0 : index
    %c144 = arith.constant 144 : index
    %53 = vector.load %arg8[%c0_38, %c144] : memref<4x324xf32, #tpu.memory_space<vmem>>, vector<4x1xf32>
    tpu.vector_store %arg8[%c0_38, %c144], %52 {strides = array<i32>} : memref<4x324xf32, #tpu.memory_space<vmem>>, vector<4x1xf32>,
    %54 = vector.extract_strided_slice %50 {offsets = [0, 14], sizes = [4, 1], strides = [1, 1]} : vector<4x16xf32> to vector<4x1xf32>
    %c0_39 = arith.constant 0 : index
    %c161 = arith.constant 161 : index
    %55 = vector.load %arg8[%c0_39, %c161] : memref<4x324xf32, #tpu.memory_space<vmem>>, vector<4x1xf32>
    tpu.vector_store %arg8[%c0_39, %c161], %54 {strides = array<i32>} : memref<4x324xf32, #tpu.memory_space<vmem>>, vector<4x1xf32>,
    %c0_40 = arith.constant 0 : index
    %c0_41 = arith.constant 0 : index
    %c128 = arith.constant 128 : index
    %56 = vector.load %arg1[%c0_40, %c0_41, %c128] : memref<1x4x256xf32, #tpu.memory_space<vmem>>, vector<1x4x16xf32>
    %57 = vector.shape_cast %56 : vector<1x4x16xf32> to vector<4x16xf32>
    %c0_42 = arith.constant 0 : index
    %c163 = arith.constant 163 : index
    %58 = vector.load %arg8[%c0_42, %c163] : memref<4x324xf32, #tpu.memory_space<vmem>>, vector<4x16xf32>
    tpu.vector_store %arg8[%c0_42, %c163], %57 {strides = array<i32>} : memref<4x324xf32, #tpu.memory_space<vmem>>, vector<4x16xf32>,
    %59 = vector.extract_strided_slice %57 {offsets = [0, 1], sizes = [4, 1], strides = [1, 1]} : vector<4x16xf32> to vector<4x1xf32>
    %c0_43 = arith.constant 0 : index
    %c162 = arith.constant 162 : index
    %60 = vector.load %arg8[%c0_43, %c162] : memref<4x324xf32, #tpu.memory_space<vmem>>, vector<4x1xf32>
    tpu.vector_store %arg8[%c0_43, %c162], %59 {strides = array<i32>} : memref<4x324xf32, #tpu.memory_space<vmem>>, vector<4x1xf32>,
    %61 = vector.extract_strided_slice %57 {offsets = [0, 14], sizes = [4, 1], strides = [1, 1]} : vector<4x16xf32> to vector<4x1xf32>
    %c0_44 = arith.constant 0 : index
    %c179 = arith.constant 179 : index
    %62 = vector.load %arg8[%c0_44, %c179] : memref<4x324xf32, #tpu.memory_space<vmem>>, vector<4x1xf32>
    tpu.vector_store %arg8[%c0_44, %c179], %61 {strides = array<i32>} : memref<4x324xf32, #tpu.memory_space<vmem>>, vector<4x1xf32>,
    %c0_45 = arith.constant 0 : index
    %c0_46 = arith.constant 0 : index
    %c144_47 = arith.constant 144 : index
    %63 = vector.load %arg1[%c0_45, %c0_46, %c144_47] : memref<1x4x256xf32, #tpu.memory_space<vmem>>, vector<1x4x16xf32>
    %64 = vector.shape_cast %63 : vector<1x4x16xf32> to vector<4x16xf32>
    %c0_48 = arith.constant 0 : index
    %c181 = arith.constant 181 : index
    %65 = vector.load %arg8[%c0_48, %c181] : memref<4x324xf32, #tpu.memory_space<vmem>>, vector<4x16xf32>
    tpu.vector_store %arg8[%c0_48, %c181], %64 {strides = array<i32>} : memref<4x324xf32, #tpu.memory_space<vmem>>, vector<4x16xf32>,
    %66 = vector.extract_strided_slice %64 {offsets = [0, 1], sizes = [4, 1], strides = [1, 1]} : vector<4x16xf32> to vector<4x1xf32>
    %c0_49 = arith.constant 0 : index
    %c180 = arith.constant 180 : index
    %67 = vector.load %arg8[%c0_49, %c180] : memref<4x324xf32, #tpu.memory_space<vmem>>, vector<4x1xf32>
    tpu.vector_store %arg8[%c0_49, %c180], %66 {strides = array<i32>} : memref<4x324xf32, #tpu.memory_space<vmem>>, vector<4x1xf32>,
    %68 = vector.extract_strided_slice %64 {offsets = [0, 14], sizes = [4, 1], strides = [1, 1]} : vector<4x16xf32> to vector<4x1xf32>
    %c0_50 = arith.constant 0 : index
    %c197 = arith.constant 197 : index
    %69 = vector.load %arg8[%c0_50, %c197] : memref<4x324xf32, #tpu.memory_space<vmem>>, vector<4x1xf32>
    tpu.vector_store %arg8[%c0_50, %c197], %68 {strides = array<i32>} : memref<4x324xf32, #tpu.memory_space<vmem>>, vector<4x1xf32>,
    %c0_51 = arith.constant 0 : index
    %c0_52 = arith.constant 0 : index
    %c160 = arith.constant 160 : index
    %70 = vector.load %arg1[%c0_51, %c0_52, %c160] : memref<1x4x256xf32, #tpu.memory_space<vmem>>, vector<1x4x16xf32>
    %71 = vector.shape_cast %70 : vector<1x4x16xf32> to vector<4x16xf32>
    %c0_53 = arith.constant 0 : index
    %c199 = arith.constant 199 : index
    %72 = vector.load %arg8[%c0_53, %c199] : memref<4x324xf32, #tpu.memory_space<vmem>>, vector<4x16xf32>
    tpu.vector_store %arg8[%c0_53, %c199], %71 {strides = array<i32>} : memref<4x324xf32, #tpu.memory_space<vmem>>, vector<4x16xf32>,
    %73 = vector.extract_strided_slice %71 {offsets = [0, 1], sizes = [4, 1], strides = [1, 1]} : vector<4x16xf32> to vector<4x1xf32>
    %c0_54 = arith.constant 0 : index
    %c198 = arith.constant 198 : index
    %74 = vector.load %arg8[%c0_54, %c198] : memref<4x324xf32, #tpu.memory_space<vmem>>, vector<4x1xf32>
    tpu.vector_store %arg8[%c0_54, %c198], %73 {strides = array<i32>} : memref<4x324xf32, #tpu.memory_space<vmem>>, vector<4x1xf32>,
    %75 = vector.extract_strided_slice %71 {offsets = [0, 14], sizes = [4, 1], strides = [1, 1]} : vector<4x16xf32> to vector<4x1xf32>
    %c0_55 = arith.constant 0 : index
    %c215 = arith.constant 215 : index
    %76 = vector.load %arg8[%c0_55, %c215] : memref<4x324xf32, #tpu.memory_space<vmem>>, vector<4x1xf32>
    tpu.vector_store %arg8[%c0_55, %c215], %75 {strides = array<i32>} : memref<4x324xf32, #tpu.memory_space<vmem>>, vector<4x1xf32>,
    %c0_56 = arith.constant 0 : index
    %c0_57 = arith.constant 0 : index
    %c176 = arith.constant 176 : index
    %77 = vector.load %arg1[%c0_56, %c0_57, %c176] : memref<1x4x256xf32, #tpu.memory_space<vmem>>, vector<1x4x16xf32>
    %78 = vector.shape_cast %77 : vector<1x4x16xf32> to vector<4x16xf32>
    %c0_58 = arith.constant 0 : index
    %c217 = arith.constant 217 : index
    %79 = vector.load %arg8[%c0_58, %c217] : memref<4x324xf32, #tpu.memory_space<vmem>>, vector<4x16xf32>
    tpu.vector_store %arg8[%c0_58, %c217], %78 {strides = array<i32>} : memref<4x324xf32, #tpu.memory_space<vmem>>, vector<4x16xf32>,
    %80 = vector.extract_strided_slice %78 {offsets = [0, 1], sizes = [4, 1], strides = [1, 1]} : vector<4x16xf32> to vector<4x1xf32>
    %c0_59 = arith.constant 0 : index
    %c216 = arith.constant 216 : index
    %81 = vector.load %arg8[%c0_59, %c216] : memref<4x324xf32, #tpu.memory_space<vmem>>, vector<4x1xf32>
    tpu.vector_store %arg8[%c0_59, %c216], %80 {strides = array<i32>} : memref<4x324xf32, #tpu.memory_space<vmem>>, vector<4x1xf32>,
    %82 = vector.extract_strided_slice %78 {offsets = [0, 14], sizes = [4, 1], strides = [1, 1]} : vector<4x16xf32> to vector<4x1xf32>
    %c0_60 = arith.constant 0 : index
    %c233 = arith.constant 233 : index
    %83 = vector.load %arg8[%c0_60, %c233] : memref<4x324xf32, #tpu.memory_space<vmem>>, vector<4x1xf32>
    tpu.vector_store %arg8[%c0_60, %c233], %82 {strides = array<i32>} : memref<4x324xf32, #tpu.memory_space<vmem>>, vector<4x1xf32>,
    %c0_61 = arith.constant 0 : index
    %c0_62 = arith.constant 0 : index
    %c192 = arith.constant 192 : index
    %84 = vector.load %arg1[%c0_61, %c0_62, %c192] : memref<1x4x256xf32, #tpu.memory_space<vmem>>, vector<1x4x16xf32>
    %85 = vector.shape_cast %84 : vector<1x4x16xf32> to vector<4x16xf32>
    %c0_63 = arith.constant 0 : index
    %c235 = arith.constant 235 : index
    %86 = vector.load %arg8[%c0_63, %c235] : memref<4x324xf32, #tpu.memory_space<vmem>>, vector<4x16xf32>
    tpu.vector_store %arg8[%c0_63, %c235], %85 {strides = array<i32>} : memref<4x324xf32, #tpu.memory_space<vmem>>, vector<4x16xf32>,
    %87 = vector.extract_strided_slice %85 {offsets = [0, 1], sizes = [4, 1], strides = [1, 1]} : vector<4x16xf32> to vector<4x1xf32>
    %c0_64 = arith.constant 0 : index
    %c234 = arith.constant 234 : index
    %88 = vector.load %arg8[%c0_64, %c234] : memref<4x324xf32, #tpu.memory_space<vmem>>, vector<4x1xf32>
    tpu.vector_store %arg8[%c0_64, %c234], %87 {strides = array<i32>} : memref<4x324xf32, #tpu.memory_space<vmem>>, vector<4x1xf32>,
    %89 = vector.extract_strided_slice %85 {offsets = [0, 14], sizes = [4, 1], strides = [1, 1]} : vector<4x16xf32> to vector<4x1xf32>
    %c0_65 = arith.constant 0 : index
    %c251 = arith.constant 251 : index
    %90 = vector.load %arg8[%c0_65, %c251] : memref<4x324xf32, #tpu.memory_space<vmem>>, vector<4x1xf32>
    tpu.vector_store %arg8[%c0_65, %c251], %89 {strides = array<i32>} : memref<4x324xf32, #tpu.memory_space<vmem>>, vector<4x1xf32>,
    %c0_66 = arith.constant 0 : index
    %c0_67 = arith.constant 0 : index
    %c208 = arith.constant 208 : index
    %91 = vector.load %arg1[%c0_66, %c0_67, %c208] : memref<1x4x256xf32, #tpu.memory_space<vmem>>, vector<1x4x16xf32>
    %92 = vector.shape_cast %91 : vector<1x4x16xf32> to vector<4x16xf32>
    %c0_68 = arith.constant 0 : index
    %c253 = arith.constant 253 : index
    %93 = vector.load %arg8[%c0_68, %c253] : memref<4x324xf32, #tpu.memory_space<vmem>>, vector<4x16xf32>
    tpu.vector_store %arg8[%c0_68, %c253], %92 {strides = array<i32>} : memref<4x324xf32, #tpu.memory_space<vmem>>, vector<4x16xf32>,
    %94 = vector.extract_strided_slice %92 {offsets = [0, 1], sizes = [4, 1], strides = [1, 1]} : vector<4x16xf32> to vector<4x1xf32>
    %c0_69 = arith.constant 0 : index
    %c252 = arith.constant 252 : index
    %95 = vector.load %arg8[%c0_69, %c252] : memref<4x324xf32, #tpu.memory_space<vmem>>, vector<4x1xf32>
    tpu.vector_store %arg8[%c0_69, %c252], %94 {strides = array<i32>} : memref<4x324xf32, #tpu.memory_space<vmem>>, vector<4x1xf32>,
    %96 = vector.extract_strided_slice %92 {offsets = [0, 14], sizes = [4, 1], strides = [1, 1]} : vector<4x16xf32> to vector<4x1xf32>
    %c0_70 = arith.constant 0 : index
    %c269 = arith.constant 269 : index
    %97 = vector.load %arg8[%c0_70, %c269] : memref<4x324xf32, #tpu.memory_space<vmem>>, vector<4x1xf32>
    tpu.vector_store %arg8[%c0_70, %c269], %96 {strides = array<i32>} : memref<4x324xf32, #tpu.memory_space<vmem>>, vector<4x1xf32>,
    %c0_71 = arith.constant 0 : index
    %c0_72 = arith.constant 0 : index
    %c224 = arith.constant 224 : index
    %98 = vector.load %arg1[%c0_71, %c0_72, %c224] : memref<1x4x256xf32, #tpu.memory_space<vmem>>, vector<1x4x16xf32>
    %99 = vector.shape_cast %98 : vector<1x4x16xf32> to vector<4x16xf32>
    %c0_73 = arith.constant 0 : index
    %c271 = arith.constant 271 : index
    %100 = vector.load %arg8[%c0_73, %c271] : memref<4x324xf32, #tpu.memory_space<vmem>>, vector<4x16xf32>
    tpu.vector_store %arg8[%c0_73, %c271], %99 {strides = array<i32>} : memref<4x324xf32, #tpu.memory_space<vmem>>, vector<4x16xf32>,
    %101 = vector.extract_strided_slice %99 {offsets = [0, 1], sizes = [4, 1], strides = [1, 1]} : vector<4x16xf32> to vector<4x1xf32>
    %c0_74 = arith.constant 0 : index
    %c270 = arith.constant 270 : index
    %102 = vector.load %arg8[%c0_74, %c270] : memref<4x324xf32, #tpu.memory_space<vmem>>, vector<4x1xf32>
    tpu.vector_store %arg8[%c0_74, %c270], %101 {strides = array<i32>} : memref<4x324xf32, #tpu.memory_space<vmem>>, vector<4x1xf32>,
    %103 = vector.extract_strided_slice %99 {offsets = [0, 14], sizes = [4, 1], strides = [1, 1]} : vector<4x16xf32> to vector<4x1xf32>
    %c0_75 = arith.constant 0 : index
    %c287 = arith.constant 287 : index
    %104 = vector.load %arg8[%c0_75, %c287] : memref<4x324xf32, #tpu.memory_space<vmem>>, vector<4x1xf32>
    tpu.vector_store %arg8[%c0_75, %c287], %103 {strides = array<i32>} : memref<4x324xf32, #tpu.memory_space<vmem>>, vector<4x1xf32>,
    %c0_76 = arith.constant 0 : index
    %c0_77 = arith.constant 0 : index
    %c240 = arith.constant 240 : index
    %105 = vector.load %arg1[%c0_76, %c0_77, %c240] : memref<1x4x256xf32, #tpu.memory_space<vmem>>, vector<1x4x16xf32>
    %106 = vector.shape_cast %105 : vector<1x4x16xf32> to vector<4x16xf32>
    %c0_78 = arith.constant 0 : index
    %c289 = arith.constant 289 : index
    %107 = vector.load %arg8[%c0_78, %c289] : memref<4x324xf32, #tpu.memory_space<vmem>>, vector<4x16xf32>
    tpu.vector_store %arg8[%c0_78, %c289], %106 {strides = array<i32>} : memref<4x324xf32, #tpu.memory_space<vmem>>, vector<4x16xf32>,
    %108 = vector.extract_strided_slice %106 {offsets = [0, 1], sizes = [4, 1], strides = [1, 1]} : vector<4x16xf32> to vector<4x1xf32>
    %c0_79 = arith.constant 0 : index
    %c288 = arith.constant 288 : index
    %109 = vector.load %arg8[%c0_79, %c288] : memref<4x324xf32, #tpu.memory_space<vmem>>, vector<4x1xf32>
    tpu.vector_store %arg8[%c0_79, %c288], %108 {strides = array<i32>} : memref<4x324xf32, #tpu.memory_space<vmem>>, vector<4x1xf32>,
    %110 = vector.extract_strided_slice %106 {offsets = [0, 14], sizes = [4, 1], strides = [1, 1]} : vector<4x16xf32> to vector<4x1xf32>
    %c0_80 = arith.constant 0 : index
    %c305 = arith.constant 305 : index
    %111 = vector.load %arg8[%c0_80, %c305] : memref<4x324xf32, #tpu.memory_space<vmem>>, vector<4x1xf32>
    tpu.vector_store %arg8[%c0_80, %c305], %110 {strides = array<i32>} : memref<4x324xf32, #tpu.memory_space<vmem>>, vector<4x1xf32>,
    %c0_81 = arith.constant 0 : index
    %c0_82 = arith.constant 0 : index
    %c16_83 = arith.constant 16 : index
    %112 = vector.load %arg1[%c0_81, %c0_82, %c16_83] : memref<1x4x256xf32, #tpu.memory_space<vmem>>, vector<1x4x16xf32>
    %113 = vector.shape_cast %112 : vector<1x4x16xf32> to vector<4x16xf32>
    %c0_84 = arith.constant 0 : index
    %c1 = arith.constant 1 : index
    %114 = vector.load %arg8[%c0_84, %c1] : memref<4x324xf32, #tpu.memory_space<vmem>>, vector<4x16xf32>
    tpu.vector_store %arg8[%c0_84, %c1], %113 {strides = array<i32>} : memref<4x324xf32, #tpu.memory_space<vmem>>, vector<4x16xf32>,
    %115 = vector.extract_strided_slice %113 {offsets = [0, 1], sizes = [4, 1], strides = [1, 1]} : vector<4x16xf32> to vector<4x1xf32>
    %c0_85 = arith.constant 0 : index
    %c0_86 = arith.constant 0 : index
    %116 = vector.load %arg8[%c0_85, %c0_86] : memref<4x324xf32, #tpu.memory_space<vmem>>, vector<4x1xf32>
    tpu.vector_store %arg8[%c0_85, %c0_86], %115 {strides = array<i32>} : memref<4x324xf32, #tpu.memory_space<vmem>>, vector<4x1xf32>,
    %117 = vector.extract_strided_slice %113 {offsets = [0, 14], sizes = [4, 1], strides = [1, 1]} : vector<4x16xf32> to vector<4x1xf32>
    %c0_87 = arith.constant 0 : index
    %c17 = arith.constant 17 : index
    %118 = vector.load %arg8[%c0_87, %c17] : memref<4x324xf32, #tpu.memory_space<vmem>>, vector<4x1xf32>
    tpu.vector_store %arg8[%c0_87, %c17], %117 {strides = array<i32>} : memref<4x324xf32, #tpu.memory_space<vmem>>, vector<4x1xf32>,
    %c0_88 = arith.constant 0 : index
    %c0_89 = arith.constant 0 : index
    %c224_90 = arith.constant 224 : index
    %119 = vector.load %arg1[%c0_88, %c0_89, %c224_90] : memref<1x4x256xf32, #tpu.memory_space<vmem>>, vector<1x4x16xf32>
    %120 = vector.shape_cast %119 : vector<1x4x16xf32> to vector<4x16xf32>
    %c0_91 = arith.constant 0 : index
    %c307 = arith.constant 307 : index
    %121 = vector.load %arg8[%c0_91, %c307] : memref<4x324xf32, #tpu.memory_space<vmem>>, vector<4x16xf32>
    tpu.vector_store %arg8[%c0_91, %c307], %120 {strides = array<i32>} : memref<4x324xf32, #tpu.memory_space<vmem>>, vector<4x16xf32>,
    %122 = vector.extract_strided_slice %120 {offsets = [0, 1], sizes = [4, 1], strides = [1, 1]} : vector<4x16xf32> to vector<4x1xf32>
    %c0_92 = arith.constant 0 : index
    %c306 = arith.constant 306 : index
    %123 = vector.load %arg8[%c0_92, %c306] : memref<4x324xf32, #tpu.memory_space<vmem>>, vector<4x1xf32>
    tpu.vector_store %arg8[%c0_92, %c306], %122 {strides = array<i32>} : memref<4x324xf32, #tpu.memory_space<vmem>>, vector<4x1xf32>,
    %124 = vector.extract_strided_slice %120 {offsets = [0, 14], sizes = [4, 1], strides = [1, 1]} : vector<4x16xf32> to vector<4x1xf32>
    %c0_93 = arith.constant 0 : index
    %c323 = arith.constant 323 : index
    %125 = vector.load %arg8[%c0_93, %c323] : memref<4x324xf32, #tpu.memory_space<vmem>>, vector<4x1xf32>
    tpu.vector_store %arg8[%c0_93, %c323], %124 {strides = array<i32>} : memref<4x324xf32, #tpu.memory_space<vmem>>, vector<4x1xf32>,
    %c0_94 = arith.constant 0 : index
    %c0_95 = arith.constant 0 : index
    %126 = vector.load %arg8[%c0_94, %c0_95] : memref<4x324xf32, #tpu.memory_space<vmem>>, vector<4x286xf32>
    %c0_96 = arith.constant 0 : index
    %c0_97 = arith.constant 0 : index
    %127 = vector.load %arg9[%c0_96, %c0_97] : memref<36x286xf32, #tpu.memory_space<vmem>>, vector<4x286xf32>
    tpu.vector_store %arg9[%c0_96, %c0_97], %126 {strides = array<i32>} : memref<36x286xf32, #tpu.memory_space<vmem>>, vector<4x286xf32>,
    %c0_98 = arith.constant 0 : index
    %c1_99 = arith.constant 1 : index
    %128 = vector.load %arg8[%c0_98, %c1_99] : memref<4x324xf32, #tpu.memory_space<vmem>>, vector<4x286xf32>
    %c4 = arith.constant 4 : index
    %c0_100 = arith.constant 0 : index
    %129 = vector.load %arg9[%c4, %c0_100] : memref<36x286xf32, #tpu.memory_space<vmem>>, vector<4x286xf32>
    tpu.vector_store %arg9[%c4, %c0_100], %128 {strides = array<i32>} : memref<36x286xf32, #tpu.memory_space<vmem>>, vector<4x286xf32>,
    %c0_101 = arith.constant 0 : index
    %c2 = arith.constant 2 : index
    %130 = vector.load %arg8[%c0_101, %c2] : memref<4x324xf32, #tpu.memory_space<vmem>>, vector<4x286xf32>
    %c8 = arith.constant 8 : index
    %c0_102 = arith.constant 0 : index
    %131 = vector.load %arg9[%c8, %c0_102] : memref<36x286xf32, #tpu.memory_space<vmem>>, vector<4x286xf32>
    tpu.vector_store %arg9[%c8, %c0_102], %130 {strides = array<i32>} : memref<36x286xf32, #tpu.memory_space<vmem>>, vector<4x286xf32>,
    %c0_103 = arith.constant 0 : index
    %c18_104 = arith.constant 18 : index
    %132 = vector.load %arg8[%c0_103, %c18_104] : memref<4x324xf32, #tpu.memory_space<vmem>>, vector<4x286xf32>
    %c12 = arith.constant 12 : index
    %c0_105 = arith.constant 0 : index
    %133 = vector.load %arg9[%c12, %c0_105] : memref<36x286xf32, #tpu.memory_space<vmem>>, vector<4x286xf32>
    tpu.vector_store %arg9[%c12, %c0_105], %132 {strides = array<i32>} : memref<36x286xf32, #tpu.memory_space<vmem>>, vector<4x286xf32>,
    %c0_106 = arith.constant 0 : index
    %c19_107 = arith.constant 19 : index
    %134 = vector.load %arg8[%c0_106, %c19_107] : memref<4x324xf32, #tpu.memory_space<vmem>>, vector<4x286xf32>
    %c16_108 = arith.constant 16 : index
    %c0_109 = arith.constant 0 : index
    %135 = vector.load %arg9[%c16_108, %c0_109] : memref<36x286xf32, #tpu.memory_space<vmem>>, vector<4x286xf32>
    tpu.vector_store %arg9[%c16_108, %c0_109], %134 {strides = array<i32>} : memref<36x286xf32, #tpu.memory_space<vmem>>, vector<4x286xf32>,
    %c0_110 = arith.constant 0 : index
    %c20 = arith.constant 20 : index
    %136 = vector.load %arg8[%c0_110, %c20] : memref<4x324xf32, #tpu.memory_space<vmem>>, vector<4x286xf32>
    %c20_111 = arith.constant 20 : index
    %c0_112 = arith.constant 0 : index
    %137 = vector.load %arg9[%c20_111, %c0_112] : memref<36x286xf32, #tpu.memory_space<vmem>>, vector<4x286xf32>
    tpu.vector_store %arg9[%c20_111, %c0_112], %136 {strides = array<i32>} : memref<36x286xf32, #tpu.memory_space<vmem>>, vector<4x286xf32>,
    %c0_113 = arith.constant 0 : index
    %c36_114 = arith.constant 36 : index
    %138 = vector.load %arg8[%c0_113, %c36_114] : memref<4x324xf32, #tpu.memory_space<vmem>>, vector<4x286xf32>
    %c24 = arith.constant 24 : index
    %c0_115 = arith.constant 0 : index
    %139 = vector.load %arg9[%c24, %c0_115] : memref<36x286xf32, #tpu.memory_space<vmem>>, vector<4x286xf32>
    tpu.vector_store %arg9[%c24, %c0_115], %138 {strides = array<i32>} : memref<36x286xf32, #tpu.memory_space<vmem>>, vector<4x286xf32>,
    %c0_116 = arith.constant 0 : index
    %c37_117 = arith.constant 37 : index
    %140 = vector.load %arg8[%c0_116, %c37_117] : memref<4x324xf32, #tpu.memory_space<vmem>>, vector<4x286xf32>
    %c28 = arith.constant 28 : index
    %c0_118 = arith.constant 0 : index
    %141 = vector.load %arg9[%c28, %c0_118] : memref<36x286xf32, #tpu.memory_space<vmem>>, vector<4x286xf32>
    tpu.vector_store %arg9[%c28, %c0_118], %140 {strides = array<i32>} : memref<36x286xf32, #tpu.memory_space<vmem>>, vector<4x286xf32>,
    %c0_119 = arith.constant 0 : index
    %c38 = arith.constant 38 : index
    %142 = vector.load %arg8[%c0_119, %c38] : memref<4x324xf32, #tpu.memory_space<vmem>>, vector<4x286xf32>
    %c32_120 = arith.constant 32 : index
    %c0_121 = arith.constant 0 : index
    %143 = vector.load %arg9[%c32_120, %c0_121] : memref<36x286xf32, #tpu.memory_space<vmem>>, vector<4x286xf32>
    tpu.vector_store %arg9[%c32_120, %c0_121], %142 {strides = array<i32>} : memref<36x286xf32, #tpu.memory_space<vmem>>, vector<4x286xf32>,
    %c0_122 = arith.constant 0 : index
    %c0_123 = arith.constant 0 : index
    %144 = vector.load %arg2[%c0_122, %c0_123] : memref<4x36xf32, #tpu.memory_space<vmem>>, vector<4x36xf32>
    %c0_124 = arith.constant 0 : index
    %c0_125 = arith.constant 0 : index
    %145 = vector.load %arg9[%c0_124, %c0_125] : memref<36x286xf32, #tpu.memory_space<vmem>>, vector<36x286xf32>
    %cst = arith.constant dense<0.000000e+00> : vector<4x286xf32>
    %146 = tpu.matmul %144, %145, %cst {dimension_numbers = #tpu.dot_dimension_numbers<[1], [0], [0], [1], [0, 0, 1, 1], [], []>} : vector<4x36xf32>, vector<36x286xf32>, vector<4x286xf32> -> vector<4x286xf32>
    %c0_126 = arith.constant 0 : index
    %c0_127 = arith.constant 0 : index
    %147 = vector.load %arg3[%c0_126, %c0_127] : memref<4x1xf32, #tpu.memory_space<vmem>>, vector<4x1xf32>
    %148 = vector.broadcast %147 : vector<4x1xf32> to vector<4x286xf32>
    %149 = arith.addf %146, %148 : vector<4x286xf32>
    %c0_128 = arith.constant 0 : index
    %150 = memref.load %arg6[%c0_128] : memref<1xf32, #tpu.memory_space<smem>>
    %cst_129 = arith.constant 0.000000e+00 : f32
    %151 = vector.broadcast %cst_129 : f32 to vector<4x286xf32>
    %152 = arith.cmpf ogt, %149, %151 : vector<4x286xf32>
    %153 = vector.broadcast %150 : f32 to vector<4x286xf32>
    %154 = arith.mulf %153, %149 : vector<4x286xf32>
    %155 = arith.select %152, %149, %154 : vector<4x286xi1>, vector<4x286xf32>
    %156 = vector.extract_strided_slice %155 {offsets = [0, 0], sizes = [4, 16], strides = [1, 1]} : vector<4x286xf32> to vector<4x16xf32>
    %c0_130 = arith.constant 0 : index
    %c19_131 = arith.constant 19 : index
    %157 = vector.load %arg8[%c0_130, %c19_131] : memref<4x324xf32, #tpu.memory_space<vmem>>, vector<4x16xf32>
    tpu.vector_store %arg8[%c0_130, %c19_131], %156 {strides = array<i32>} : memref<4x324xf32, #tpu.memory_space<vmem>>, vector<4x16xf32>,
    %158 = vector.extract_strided_slice %156 {offsets = [0, 1], sizes = [4, 1], strides = [1, 1]} : vector<4x16xf32> to vector<4x1xf32>
    %c0_132 = arith.constant 0 : index
    %c18_133 = arith.constant 18 : index
    %159 = vector.load %arg8[%c0_132, %c18_133] : memref<4x324xf32, #tpu.memory_space<vmem>>, vector<4x1xf32>
    tpu.vector_store %arg8[%c0_132, %c18_133], %158 {strides = array<i32>} : memref<4x324xf32, #tpu.memory_space<vmem>>, vector<4x1xf32>,
    %160 = vector.extract_strided_slice %156 {offsets = [0, 14], sizes = [4, 1], strides = [1, 1]} : vector<4x16xf32> to vector<4x1xf32>
    %c0_134 = arith.constant 0 : index
    %c35_135 = arith.constant 35 : index
    %161 = vector.load %arg8[%c0_134, %c35_135] : memref<4x324xf32, #tpu.memory_space<vmem>>, vector<4x1xf32>
    tpu.vector_store %arg8[%c0_134, %c35_135], %160 {strides = array<i32>} : memref<4x324xf32, #tpu.memory_space<vmem>>, vector<4x1xf32>,
    %162 = vector.extract_strided_slice %155 {offsets = [0, 18], sizes = [4, 16], strides = [1, 1]} : vector<4x286xf32> to vector<4x16xf32>
    %c0_136 = arith.constant 0 : index
    %c37_137 = arith.constant 37 : index
    %163 = vector.load %arg8[%c0_136, %c37_137] : memref<4x324xf32, #tpu.memory_space<vmem>>, vector<4x16xf32>
    tpu.vector_store %arg8[%c0_136, %c37_137], %162 {strides = array<i32>} : memref<4x324xf32, #tpu.memory_space<vmem>>, vector<4x16xf32>,
    %164 = vector.extract_strided_slice %162 {offsets = [0, 1], sizes = [4, 1], strides = [1, 1]} : vector<4x16xf32> to vector<4x1xf32>
    %c0_138 = arith.constant 0 : index
    %c36_139 = arith.constant 36 : index
    %165 = vector.load %arg8[%c0_138, %c36_139] : memref<4x324xf32, #tpu.memory_space<vmem>>, vector<4x1xf32>
    tpu.vector_store %arg8[%c0_138, %c36_139], %164 {strides = array<i32>} : memref<4x324xf32, #tpu.memory_space<vmem>>, vector<4x1xf32>,
    %166 = vector.extract_strided_slice %162 {offsets = [0, 14], sizes = [4, 1], strides = [1, 1]} : vector<4x16xf32> to vector<4x1xf32>
    %c0_140 = arith.constant 0 : index
    %c53_141 = arith.constant 53 : index
    %167 = vector.load %arg8[%c0_140, %c53_141] : memref<4x324xf32, #tpu.memory_space<vmem>>, vector<4x1xf32>
    tpu.vector_store %arg8[%c0_140, %c53_141], %166 {strides = array<i32>} : memref<4x324xf32, #tpu.memory_space<vmem>>, vector<4x1xf32>,
    %168 = vector.extract_strided_slice %155 {offsets = [0, 36], sizes = [4, 16], strides = [1, 1]} : vector<4x286xf32> to vector<4x16xf32>
    %c0_142 = arith.constant 0 : index
    %c55_143 = arith.constant 55 : index
    %169 = vector.load %arg8[%c0_142, %c55_143] : memref<4x324xf32, #tpu.memory_space<vmem>>, vector<4x16xf32>
    tpu.vector_store %arg8[%c0_142, %c55_143], %168 {strides = array<i32>} : memref<4x324xf32, #tpu.memory_space<vmem>>, vector<4x16xf32>,
    %170 = vector.extract_strided_slice %168 {offsets = [0, 1], sizes = [4, 1], strides = [1, 1]} : vector<4x16xf32> to vector<4x1xf32>
    %c0_144 = arith.constant 0 : index
    %c54_145 = arith.constant 54 : index
    %171 = vector.load %arg8[%c0_144, %c54_145] : memref<4x324xf32, #tpu.memory_space<vmem>>, vector<4x1xf32>
    tpu.vector_store %arg8[%c0_144, %c54_145], %170 {strides = array<i32>} : memref<4x324xf32, #tpu.memory_space<vmem>>, vector<4x1xf32>,
    %172 = vector.extract_strided_slice %168 {offsets = [0, 14], sizes = [4, 1], strides = [1, 1]} : vector<4x16xf32> to vector<4x1xf32>
    %c0_146 = arith.constant 0 : index
    %c71_147 = arith.constant 71 : index
    %173 = vector.load %arg8[%c0_146, %c71_147] : memref<4x324xf32, #tpu.memory_space<vmem>>, vector<4x1xf32>
    tpu.vector_store %arg8[%c0_146, %c71_147], %172 {strides = array<i32>} : memref<4x324xf32, #tpu.memory_space<vmem>>, vector<4x1xf32>,
    %174 = vector.extract_strided_slice %155 {offsets = [0, 54], sizes = [4, 16], strides = [1, 1]} : vector<4x286xf32> to vector<4x16xf32>
    %c0_148 = arith.constant 0 : index
    %c73_149 = arith.constant 73 : index
    %175 = vector.load %arg8[%c0_148, %c73_149] : memref<4x324xf32, #tpu.memory_space<vmem>>, vector<4x16xf32>
    tpu.vector_store %arg8[%c0_148, %c73_149], %174 {strides = array<i32>} : memref<4x324xf32, #tpu.memory_space<vmem>>, vector<4x16xf32>,
    %176 = vector.extract_strided_slice %174 {offsets = [0, 1], sizes = [4, 1], strides = [1, 1]} : vector<4x16xf32> to vector<4x1xf32>
    %c0_150 = arith.constant 0 : index
    %c72_151 = arith.constant 72 : index
    %177 = vector.load %arg8[%c0_150, %c72_151] : memref<4x324xf32, #tpu.memory_space<vmem>>, vector<4x1xf32>
    tpu.vector_store %arg8[%c0_150, %c72_151], %176 {strides = array<i32>} : memref<4x324xf32, #tpu.memory_space<vmem>>, vector<4x1xf32>,
    %178 = vector.extract_strided_slice %174 {offsets = [0, 14], sizes = [4, 1], strides = [1, 1]} : vector<4x16xf32> to vector<4x1xf32>
    %c0_152 = arith.constant 0 : index
    %c89_153 = arith.constant 89 : index
    %179 = vector.load %arg8[%c0_152, %c89_153] : memref<4x324xf32, #tpu.memory_space<vmem>>, vector<4x1xf32>
    tpu.vector_store %arg8[%c0_152, %c89_153], %178 {strides = array<i32>} : memref<4x324xf32, #tpu.memory_space<vmem>>, vector<4x1xf32>,
    %180 = vector.extract_strided_slice %155 {offsets = [0, 72], sizes = [4, 16], strides = [1, 1]} : vector<4x286xf32> to vector<4x16xf32>
    %c0_154 = arith.constant 0 : index
    %c91_155 = arith.constant 91 : index
    %181 = vector.load %arg8[%c0_154, %c91_155] : memref<4x324xf32, #tpu.memory_space<vmem>>, vector<4x16xf32>
    tpu.vector_store %arg8[%c0_154, %c91_155], %180 {strides = array<i32>} : memref<4x324xf32, #tpu.memory_space<vmem>>, vector<4x16xf32>,
    %182 = vector.extract_strided_slice %180 {offsets = [0, 1], sizes = [4, 1], strides = [1, 1]} : vector<4x16xf32> to vector<4x1xf32>
    %c0_156 = arith.constant 0 : index
    %c90_157 = arith.constant 90 : index
    %183 = vector.load %arg8[%c0_156, %c90_157] : memref<4x324xf32, #tpu.memory_space<vmem>>, vector<4x1xf32>
    tpu.vector_store %arg8[%c0_156, %c90_157], %182 {strides = array<i32>} : memref<4x324xf32, #tpu.memory_space<vmem>>, vector<4x1xf32>,
    %184 = vector.extract_strided_slice %180 {offsets = [0, 14], sizes = [4, 1], strides = [1, 1]} : vector<4x16xf32> to vector<4x1xf32>
    %c0_158 = arith.constant 0 : index
    %c107_159 = arith.constant 107 : index
    %185 = vector.load %arg8[%c0_158, %c107_159] : memref<4x324xf32, #tpu.memory_space<vmem>>, vector<4x1xf32>
    tpu.vector_store %arg8[%c0_158, %c107_159], %184 {strides = array<i32>} : memref<4x324xf32, #tpu.memory_space<vmem>>, vector<4x1xf32>,
    %186 = vector.extract_strided_slice %155 {offsets = [0, 90], sizes = [4, 16], strides = [1, 1]} : vector<4x286xf32> to vector<4x16xf32>
    %c0_160 = arith.constant 0 : index
    %c109_161 = arith.constant 109 : index
    %187 = vector.load %arg8[%c0_160, %c109_161] : memref<4x324xf32, #tpu.memory_space<vmem>>, vector<4x16xf32>
    tpu.vector_store %arg8[%c0_160, %c109_161], %186 {strides = array<i32>} : memref<4x324xf32, #tpu.memory_space<vmem>>, vector<4x16xf32>,
    %188 = vector.extract_strided_slice %186 {offsets = [0, 1], sizes = [4, 1], strides = [1, 1]} : vector<4x16xf32> to vector<4x1xf32>
    %c0_162 = arith.constant 0 : index
    %c108_163 = arith.constant 108 : index
    %189 = vector.load %arg8[%c0_162, %c108_163] : memref<4x324xf32, #tpu.memory_space<vmem>>, vector<4x1xf32>
    tpu.vector_store %arg8[%c0_162, %c108_163], %188 {strides = array<i32>} : memref<4x324xf32, #tpu.memory_space<vmem>>, vector<4x1xf32>,
    %190 = vector.extract_strided_slice %186 {offsets = [0, 14], sizes = [4, 1], strides = [1, 1]} : vector<4x16xf32> to vector<4x1xf32>
    %c0_164 = arith.constant 0 : index
    %c125_165 = arith.constant 125 : index
    %191 = vector.load %arg8[%c0_164, %c125_165] : memref<4x324xf32, #tpu.memory_space<vmem>>, vector<4x1xf32>
    tpu.vector_store %arg8[%c0_164, %c125_165], %190 {strides = array<i32>} : memref<4x324xf32, #tpu.memory_space<vmem>>, vector<4x1xf32>,
    %192 = vector.extract_strided_slice %155 {offsets = [0, 108], sizes = [4, 16], strides = [1, 1]} : vector<4x286xf32> to vector<4x16xf32>
    %c0_166 = arith.constant 0 : index
    %c127_167 = arith.constant 127 : index
    %193 = vector.load %arg8[%c0_166, %c127_167] : memref<4x324xf32, #tpu.memory_space<vmem>>, vector<4x16xf32>
    tpu.vector_store %arg8[%c0_166, %c127_167], %192 {strides = array<i32>} : memref<4x324xf32, #tpu.memory_space<vmem>>, vector<4x16xf32>,
    %194 = vector.extract_strided_slice %192 {offsets = [0, 1], sizes = [4, 1], strides = [1, 1]} : vector<4x16xf32> to vector<4x1xf32>
    %c0_168 = arith.constant 0 : index
    %c126_169 = arith.constant 126 : index
    %195 = vector.load %arg8[%c0_168, %c126_169] : memref<4x324xf32, #tpu.memory_space<vmem>>, vector<4x1xf32>
    tpu.vector_store %arg8[%c0_168, %c126_169], %194 {strides = array<i32>} : memref<4x324xf32, #tpu.memory_space<vmem>>, vector<4x1xf32>,
    %196 = vector.extract_strided_slice %192 {offsets = [0, 14], sizes = [4, 1], strides = [1, 1]} : vector<4x16xf32> to vector<4x1xf32>
    %c0_170 = arith.constant 0 : index
    %c143_171 = arith.constant 143 : index
    %197 = vector.load %arg8[%c0_170, %c143_171] : memref<4x324xf32, #tpu.memory_space<vmem>>, vector<4x1xf32>
    tpu.vector_store %arg8[%c0_170, %c143_171], %196 {strides = array<i32>} : memref<4x324xf32, #tpu.memory_space<vmem>>, vector<4x1xf32>,
    %198 = vector.extract_strided_slice %155 {offsets = [0, 126], sizes = [4, 16], strides = [1, 1]} : vector<4x286xf32> to vector<4x16xf32>
    %c0_172 = arith.constant 0 : index
    %c145_173 = arith.constant 145 : index
    %199 = vector.load %arg8[%c0_172, %c145_173] : memref<4x324xf32, #tpu.memory_space<vmem>>, vector<4x16xf32>
    tpu.vector_store %arg8[%c0_172, %c145_173], %198 {strides = array<i32>} : memref<4x324xf32, #tpu.memory_space<vmem>>, vector<4x16xf32>,
    %200 = vector.extract_strided_slice %198 {offsets = [0, 1], sizes = [4, 1], strides = [1, 1]} : vector<4x16xf32> to vector<4x1xf32>
    %c0_174 = arith.constant 0 : index
    %c144_175 = arith.constant 144 : index
    %201 = vector.load %arg8[%c0_174, %c144_175] : memref<4x324xf32, #tpu.memory_space<vmem>>, vector<4x1xf32>
    tpu.vector_store %arg8[%c0_174, %c144_175], %200 {strides = array<i32>} : memref<4x324xf32, #tpu.memory_space<vmem>>, vector<4x1xf32>,
    %202 = vector.extract_strided_slice %198 {offsets = [0, 14], sizes = [4, 1], strides = [1, 1]} : vector<4x16xf32> to vector<4x1xf32>
    %c0_176 = arith.constant 0 : index
    %c161_177 = arith.constant 161 : index
    %203 = vector.load %arg8[%c0_176, %c161_177] : memref<4x324xf32, #tpu.memory_space<vmem>>, vector<4x1xf32>
    tpu.vector_store %arg8[%c0_176, %c161_177], %202 {strides = array<i32>} : memref<4x324xf32, #tpu.memory_space<vmem>>, vector<4x1xf32>,
    %204 = vector.extract_strided_slice %155 {offsets = [0, 144], sizes = [4, 16], strides = [1, 1]} : vector<4x286xf32> to vector<4x16xf32>
    %c0_178 = arith.constant 0 : index
    %c163_179 = arith.constant 163 : index
    %205 = vector.load %arg8[%c0_178, %c163_179] : memref<4x324xf32, #tpu.memory_space<vmem>>, vector<4x16xf32>
    tpu.vector_store %arg8[%c0_178, %c163_179], %204 {strides = array<i32>} : memref<4x324xf32, #tpu.memory_space<vmem>>, vector<4x16xf32>,
    %206 = vector.extract_strided_slice %204 {offsets = [0, 1], sizes = [4, 1], strides = [1, 1]} : vector<4x16xf32> to vector<4x1xf32>
    %c0_180 = arith.constant 0 : index
    %c162_181 = arith.constant 162 : index
    %207 = vector.load %arg8[%c0_180, %c162_181] : memref<4x324xf32, #tpu.memory_space<vmem>>, vector<4x1xf32>
    tpu.vector_store %arg8[%c0_180, %c162_181], %206 {strides = array<i32>} : memref<4x324xf32, #tpu.memory_space<vmem>>, vector<4x1xf32>,
    %208 = vector.extract_strided_slice %204 {offsets = [0, 14], sizes = [4, 1], strides = [1, 1]} : vector<4x16xf32> to vector<4x1xf32>
    %c0_182 = arith.constant 0 : index
    %c179_183 = arith.constant 179 : index
    %209 = vector.load %arg8[%c0_182, %c179_183] : memref<4x324xf32, #tpu.memory_space<vmem>>, vector<4x1xf32>
    tpu.vector_store %arg8[%c0_182, %c179_183], %208 {strides = array<i32>} : memref<4x324xf32, #tpu.memory_space<vmem>>, vector<4x1xf32>,
    %210 = vector.extract_strided_slice %155 {offsets = [0, 162], sizes = [4, 16], strides = [1, 1]} : vector<4x286xf32> to vector<4x16xf32>
    %c0_184 = arith.constant 0 : index
    %c181_185 = arith.constant 181 : index
    %211 = vector.load %arg8[%c0_184, %c181_185] : memref<4x324xf32, #tpu.memory_space<vmem>>, vector<4x16xf32>
    tpu.vector_store %arg8[%c0_184, %c181_185], %210 {strides = array<i32>} : memref<4x324xf32, #tpu.memory_space<vmem>>, vector<4x16xf32>,
    %212 = vector.extract_strided_slice %210 {offsets = [0, 1], sizes = [4, 1], strides = [1, 1]} : vector<4x16xf32> to vector<4x1xf32>
    %c0_186 = arith.constant 0 : index
    %c180_187 = arith.constant 180 : index
    %213 = vector.load %arg8[%c0_186, %c180_187] : memref<4x324xf32, #tpu.memory_space<vmem>>, vector<4x1xf32>
    tpu.vector_store %arg8[%c0_186, %c180_187], %212 {strides = array<i32>} : memref<4x324xf32, #tpu.memory_space<vmem>>, vector<4x1xf32>,
    %214 = vector.extract_strided_slice %210 {offsets = [0, 14], sizes = [4, 1], strides = [1, 1]} : vector<4x16xf32> to vector<4x1xf32>
    %c0_188 = arith.constant 0 : index
    %c197_189 = arith.constant 197 : index
    %215 = vector.load %arg8[%c0_188, %c197_189] : memref<4x324xf32, #tpu.memory_space<vmem>>, vector<4x1xf32>
    tpu.vector_store %arg8[%c0_188, %c197_189], %214 {strides = array<i32>} : memref<4x324xf32, #tpu.memory_space<vmem>>, vector<4x1xf32>,
    %216 = vector.extract_strided_slice %155 {offsets = [0, 180], sizes = [4, 16], strides = [1, 1]} : vector<4x286xf32> to vector<4x16xf32>
    %c0_190 = arith.constant 0 : index
    %c199_191 = arith.constant 199 : index
    %217 = vector.load %arg8[%c0_190, %c199_191] : memref<4x324xf32, #tpu.memory_space<vmem>>, vector<4x16xf32>
    tpu.vector_store %arg8[%c0_190, %c199_191], %216 {strides = array<i32>} : memref<4x324xf32, #tpu.memory_space<vmem>>, vector<4x16xf32>,
    %218 = vector.extract_strided_slice %216 {offsets = [0, 1], sizes = [4, 1], strides = [1, 1]} : vector<4x16xf32> to vector<4x1xf32>
    %c0_192 = arith.constant 0 : index
    %c198_193 = arith.constant 198 : index
    %219 = vector.load %arg8[%c0_192, %c198_193] : memref<4x324xf32, #tpu.memory_space<vmem>>, vector<4x1xf32>
    tpu.vector_store %arg8[%c0_192, %c198_193], %218 {strides = array<i32>} : memref<4x324xf32, #tpu.memory_space<vmem>>, vector<4x1xf32>,
    %220 = vector.extract_strided_slice %216 {offsets = [0, 14], sizes = [4, 1], strides = [1, 1]} : vector<4x16xf32> to vector<4x1xf32>
    %c0_194 = arith.constant 0 : index
    %c215_195 = arith.constant 215 : index
    %221 = vector.load %arg8[%c0_194, %c215_195] : memref<4x324xf32, #tpu.memory_space<vmem>>, vector<4x1xf32>
    tpu.vector_store %arg8[%c0_194, %c215_195], %220 {strides = array<i32>} : memref<4x324xf32, #tpu.memory_space<vmem>>, vector<4x1xf32>,
    %222 = vector.extract_strided_slice %155 {offsets = [0, 198], sizes = [4, 16], strides = [1, 1]} : vector<4x286xf32> to vector<4x16xf32>
    %c0_196 = arith.constant 0 : index
    %c217_197 = arith.constant 217 : index
    %223 = vector.load %arg8[%c0_196, %c217_197] : memref<4x324xf32, #tpu.memory_space<vmem>>, vector<4x16xf32>
    tpu.vector_store %arg8[%c0_196, %c217_197], %222 {strides = array<i32>} : memref<4x324xf32, #tpu.memory_space<vmem>>, vector<4x16xf32>,
    %224 = vector.extract_strided_slice %222 {offsets = [0, 1], sizes = [4, 1], strides = [1, 1]} : vector<4x16xf32> to vector<4x1xf32>
    %c0_198 = arith.constant 0 : index
    %c216_199 = arith.constant 216 : index
    %225 = vector.load %arg8[%c0_198, %c216_199] : memref<4x324xf32, #tpu.memory_space<vmem>>, vector<4x1xf32>
    tpu.vector_store %arg8[%c0_198, %c216_199], %224 {strides = array<i32>} : memref<4x324xf32, #tpu.memory_space<vmem>>, vector<4x1xf32>,
    %226 = vector.extract_strided_slice %222 {offsets = [0, 14], sizes = [4, 1], strides = [1, 1]} : vector<4x16xf32> to vector<4x1xf32>
    %c0_200 = arith.constant 0 : index
    %c233_201 = arith.constant 233 : index
    %227 = vector.load %arg8[%c0_200, %c233_201] : memref<4x324xf32, #tpu.memory_space<vmem>>, vector<4x1xf32>
    tpu.vector_store %arg8[%c0_200, %c233_201], %226 {strides = array<i32>} : memref<4x324xf32, #tpu.memory_space<vmem>>, vector<4x1xf32>,
    %228 = vector.extract_strided_slice %155 {offsets = [0, 216], sizes = [4, 16], strides = [1, 1]} : vector<4x286xf32> to vector<4x16xf32>
    %c0_202 = arith.constant 0 : index
    %c235_203 = arith.constant 235 : index
    %229 = vector.load %arg8[%c0_202, %c235_203] : memref<4x324xf32, #tpu.memory_space<vmem>>, vector<4x16xf32>
    tpu.vector_store %arg8[%c0_202, %c235_203], %228 {strides = array<i32>} : memref<4x324xf32, #tpu.memory_space<vmem>>, vector<4x16xf32>,
    %230 = vector.extract_strided_slice %228 {offsets = [0, 1], sizes = [4, 1], strides = [1, 1]} : vector<4x16xf32> to vector<4x1xf32>
    %c0_204 = arith.constant 0 : index
    %c234_205 = arith.constant 234 : index
    %231 = vector.load %arg8[%c0_204, %c234_205] : memref<4x324xf32, #tpu.memory_space<vmem>>, vector<4x1xf32>
    tpu.vector_store %arg8[%c0_204, %c234_205], %230 {strides = array<i32>} : memref<4x324xf32, #tpu.memory_space<vmem>>, vector<4x1xf32>,
    %232 = vector.extract_strided_slice %228 {offsets = [0, 14], sizes = [4, 1], strides = [1, 1]} : vector<4x16xf32> to vector<4x1xf32>
    %c0_206 = arith.constant 0 : index
    %c251_207 = arith.constant 251 : index
    %233 = vector.load %arg8[%c0_206, %c251_207] : memref<4x324xf32, #tpu.memory_space<vmem>>, vector<4x1xf32>
    tpu.vector_store %arg8[%c0_206, %c251_207], %232 {strides = array<i32>} : memref<4x324xf32, #tpu.memory_space<vmem>>, vector<4x1xf32>,
    %234 = vector.extract_strided_slice %155 {offsets = [0, 234], sizes = [4, 16], strides = [1, 1]} : vector<4x286xf32> to vector<4x16xf32>
    %c0_208 = arith.constant 0 : index
    %c253_209 = arith.constant 253 : index
    %235 = vector.load %arg8[%c0_208, %c253_209] : memref<4x324xf32, #tpu.memory_space<vmem>>, vector<4x16xf32>
    tpu.vector_store %arg8[%c0_208, %c253_209], %234 {strides = array<i32>} : memref<4x324xf32, #tpu.memory_space<vmem>>, vector<4x16xf32>,
    %236 = vector.extract_strided_slice %234 {offsets = [0, 1], sizes = [4, 1], strides = [1, 1]} : vector<4x16xf32> to vector<4x1xf32>
    %c0_210 = arith.constant 0 : index
    %c252_211 = arith.constant 252 : index
    %237 = vector.load %arg8[%c0_210, %c252_211] : memref<4x324xf32, #tpu.memory_space<vmem>>, vector<4x1xf32>
    tpu.vector_store %arg8[%c0_210, %c252_211], %236 {strides = array<i32>} : memref<4x324xf32, #tpu.memory_space<vmem>>, vector<4x1xf32>,
    %238 = vector.extract_strided_slice %234 {offsets = [0, 14], sizes = [4, 1], strides = [1, 1]} : vector<4x16xf32> to vector<4x1xf32>
    %c0_212 = arith.constant 0 : index
    %c269_213 = arith.constant 269 : index
    %239 = vector.load %arg8[%c0_212, %c269_213] : memref<4x324xf32, #tpu.memory_space<vmem>>, vector<4x1xf32>
    tpu.vector_store %arg8[%c0_212, %c269_213], %238 {strides = array<i32>} : memref<4x324xf32, #tpu.memory_space<vmem>>, vector<4x1xf32>,
    %240 = vector.extract_strided_slice %155 {offsets = [0, 252], sizes = [4, 16], strides = [1, 1]} : vector<4x286xf32> to vector<4x16xf32>
    %c0_214 = arith.constant 0 : index
    %c271_215 = arith.constant 271 : index
    %241 = vector.load %arg8[%c0_214, %c271_215] : memref<4x324xf32, #tpu.memory_space<vmem>>, vector<4x16xf32>
    tpu.vector_store %arg8[%c0_214, %c271_215], %240 {strides = array<i32>} : memref<4x324xf32, #tpu.memory_space<vmem>>, vector<4x16xf32>,
    %242 = vector.extract_strided_slice %240 {offsets = [0, 1], sizes = [4, 1], strides = [1, 1]} : vector<4x16xf32> to vector<4x1xf32>
    %c0_216 = arith.constant 0 : index
    %c270_217 = arith.constant 270 : index
    %243 = vector.load %arg8[%c0_216, %c270_217] : memref<4x324xf32, #tpu.memory_space<vmem>>, vector<4x1xf32>
    tpu.vector_store %arg8[%c0_216, %c270_217], %242 {strides = array<i32>} : memref<4x324xf32, #tpu.memory_space<vmem>>, vector<4x1xf32>,
    %244 = vector.extract_strided_slice %240 {offsets = [0, 14], sizes = [4, 1], strides = [1, 1]} : vector<4x16xf32> to vector<4x1xf32>
    %c0_218 = arith.constant 0 : index
    %c287_219 = arith.constant 287 : index
    %245 = vector.load %arg8[%c0_218, %c287_219] : memref<4x324xf32, #tpu.memory_space<vmem>>, vector<4x1xf32>
    tpu.vector_store %arg8[%c0_218, %c287_219], %244 {strides = array<i32>} : memref<4x324xf32, #tpu.memory_space<vmem>>, vector<4x1xf32>,
    %246 = vector.extract_strided_slice %155 {offsets = [0, 270], sizes = [4, 16], strides = [1, 1]} : vector<4x286xf32> to vector<4x16xf32>
    %c0_220 = arith.constant 0 : index
    %c289_221 = arith.constant 289 : index
    %247 = vector.load %arg8[%c0_220, %c289_221] : memref<4x324xf32, #tpu.memory_space<vmem>>, vector<4x16xf32>
    tpu.vector_store %arg8[%c0_220, %c289_221], %246 {strides = array<i32>} : memref<4x324xf32, #tpu.memory_space<vmem>>, vector<4x16xf32>,
    %248 = vector.extract_strided_slice %246 {offsets = [0, 1], sizes = [4, 1], strides = [1, 1]} : vector<4x16xf32> to vector<4x1xf32>
    %c0_222 = arith.constant 0 : index
    %c288_223 = arith.constant 288 : index
    %249 = vector.load %arg8[%c0_222, %c288_223] : memref<4x324xf32, #tpu.memory_space<vmem>>, vector<4x1xf32>
    tpu.vector_store %arg8[%c0_222, %c288_223], %248 {strides = array<i32>} : memref<4x324xf32, #tpu.memory_space<vmem>>, vector<4x1xf32>,
    %250 = vector.extract_strided_slice %246 {offsets = [0, 14], sizes = [4, 1], strides = [1, 1]} : vector<4x16xf32> to vector<4x1xf32>
    %c0_224 = arith.constant 0 : index
    %c305_225 = arith.constant 305 : index
    %251 = vector.load %arg8[%c0_224, %c305_225] : memref<4x324xf32, #tpu.memory_space<vmem>>, vector<4x1xf32>
    tpu.vector_store %arg8[%c0_224, %c305_225], %250 {strides = array<i32>} : memref<4x324xf32, #tpu.memory_space<vmem>>, vector<4x1xf32>,
    %252 = vector.extract_strided_slice %155 {offsets = [0, 18], sizes = [4, 16], strides = [1, 1]} : vector<4x286xf32> to vector<4x16xf32>
    %c0_226 = arith.constant 0 : index
    %c1_227 = arith.constant 1 : index
    %253 = vector.load %arg8[%c0_226, %c1_227] : memref<4x324xf32, #tpu.memory_space<vmem>>, vector<4x16xf32>
    tpu.vector_store %arg8[%c0_226, %c1_227], %252 {strides = array<i32>} : memref<4x324xf32, #tpu.memory_space<vmem>>, vector<4x16xf32>,
    %254 = vector.extract_strided_slice %252 {offsets = [0, 1], sizes = [4, 1], strides = [1, 1]} : vector<4x16xf32> to vector<4x1xf32>
    %c0_228 = arith.constant 0 : index
    %c0_229 = arith.constant 0 : index
    %255 = vector.load %arg8[%c0_228, %c0_229] : memref<4x324xf32, #tpu.memory_space<vmem>>, vector<4x1xf32>
    tpu.vector_store %arg8[%c0_228, %c0_229], %254 {strides = array<i32>} : memref<4x324xf32, #tpu.memory_space<vmem>>, vector<4x1xf32>,
    %256 = vector.extract_strided_slice %252 {offsets = [0, 14], sizes = [4, 1], strides = [1, 1]} : vector<4x16xf32> to vector<4x1xf32>
    %c0_230 = arith.constant 0 : index
    %c17_231 = arith.constant 17 : index
    %257 = vector.load %arg8[%c0_230, %c17_231] : memref<4x324xf32, #tpu.memory_space<vmem>>, vector<4x1xf32>
    tpu.vector_store %arg8[%c0_230, %c17_231], %256 {strides = array<i32>} : memref<4x324xf32, #tpu.memory_space<vmem>>, vector<4x1xf32>,
    %258 = vector.extract_strided_slice %155 {offsets = [0, 252], sizes = [4, 16], strides = [1, 1]} : vector<4x286xf32> to vector<4x16xf32>
    %c0_232 = arith.constant 0 : index
    %c307_233 = arith.constant 307 : index
    %259 = vector.load %arg8[%c0_232, %c307_233] : memref<4x324xf32, #tpu.memory_space<vmem>>, vector<4x16xf32>
    tpu.vector_store %arg8[%c0_232, %c307_233], %258 {strides = array<i32>} : memref<4x324xf32, #tpu.memory_space<vmem>>, vector<4x16xf32>,
    %260 = vector.extract_strided_slice %258 {offsets = [0, 1], sizes = [4, 1], strides = [1, 1]} : vector<4x16xf32> to vector<4x1xf32>
    %c0_234 = arith.constant 0 : index
    %c306_235 = arith.constant 306 : index
    %261 = vector.load %arg8[%c0_234, %c306_235] : memref<4x324xf32, #tpu.memory_space<vmem>>, vector<4x1xf32>
    tpu.vector_store %arg8[%c0_234, %c306_235], %260 {strides = array<i32>} : memref<4x324xf32, #tpu.memory_space<vmem>>, vector<4x1xf32>,
    %262 = vector.extract_strided_slice %258 {offsets = [0, 14], sizes = [4, 1], strides = [1, 1]} : vector<4x16xf32> to vector<4x1xf32>
    %c0_236 = arith.constant 0 : index
    %c323_237 = arith.constant 323 : index
    %263 = vector.load %arg8[%c0_236, %c323_237] : memref<4x324xf32, #tpu.memory_space<vmem>>, vector<4x1xf32>
    tpu.vector_store %arg8[%c0_236, %c323_237], %262 {strides = array<i32>} : memref<4x324xf32, #tpu.memory_space<vmem>>, vector<4x1xf32>,
    %c0_238 = arith.constant 0 : index
    %c0_239 = arith.constant 0 : index
    %264 = vector.load %arg8[%c0_238, %c0_239] : memref<4x324xf32, #tpu.memory_space<vmem>>, vector<4x286xf32>
    %c0_240 = arith.constant 0 : index
    %c0_241 = arith.constant 0 : index
    %265 = vector.load %arg9[%c0_240, %c0_241] : memref<36x286xf32, #tpu.memory_space<vmem>>, vector<4x286xf32>
    tpu.vector_store %arg9[%c0_240, %c0_241], %264 {strides = array<i32>} : memref<36x286xf32, #tpu.memory_space<vmem>>, vector<4x286xf32>,
    %c0_242 = arith.constant 0 : index
    %c1_243 = arith.constant 1 : index
    %266 = vector.load %arg8[%c0_242, %c1_243] : memref<4x324xf32, #tpu.memory_space<vmem>>, vector<4x286xf32>
    %c4_244 = arith.constant 4 : index
    %c0_245 = arith.constant 0 : index
    %267 = vector.load %arg9[%c4_244, %c0_245] : memref<36x286xf32, #tpu.memory_space<vmem>>, vector<4x286xf32>
    tpu.vector_store %arg9[%c4_244, %c0_245], %266 {strides = array<i32>} : memref<36x286xf32, #tpu.memory_space<vmem>>, vector<4x286xf32>,
    %c0_246 = arith.constant 0 : index
    %c2_247 = arith.constant 2 : index
    %268 = vector.load %arg8[%c0_246, %c2_247] : memref<4x324xf32, #tpu.memory_space<vmem>>, vector<4x286xf32>
    %c8_248 = arith.constant 8 : index
    %c0_249 = arith.constant 0 : index
    %269 = vector.load %arg9[%c8_248, %c0_249] : memref<36x286xf32, #tpu.memory_space<vmem>>, vector<4x286xf32>
    tpu.vector_store %arg9[%c8_248, %c0_249], %268 {strides = array<i32>} : memref<36x286xf32, #tpu.memory_space<vmem>>, vector<4x286xf32>,
    %c0_250 = arith.constant 0 : index
    %c18_251 = arith.constant 18 : index
    %270 = vector.load %arg8[%c0_250, %c18_251] : memref<4x324xf32, #tpu.memory_space<vmem>>, vector<4x286xf32>
    %c12_252 = arith.constant 12 : index
    %c0_253 = arith.constant 0 : index
    %271 = vector.load %arg9[%c12_252, %c0_253] : memref<36x286xf32, #tpu.memory_space<vmem>>, vector<4x286xf32>
    tpu.vector_store %arg9[%c12_252, %c0_253], %270 {strides = array<i32>} : memref<36x286xf32, #tpu.memory_space<vmem>>, vector<4x286xf32>,
    %c0_254 = arith.constant 0 : index
    %c19_255 = arith.constant 19 : index
    %272 = vector.load %arg8[%c0_254, %c19_255] : memref<4x324xf32, #tpu.memory_space<vmem>>, vector<4x286xf32>
    %c16_256 = arith.constant 16 : index
    %c0_257 = arith.constant 0 : index
    %273 = vector.load %arg9[%c16_256, %c0_257] : memref<36x286xf32, #tpu.memory_space<vmem>>, vector<4x286xf32>
    tpu.vector_store %arg9[%c16_256, %c0_257], %272 {strides = array<i32>} : memref<36x286xf32, #tpu.memory_space<vmem>>, vector<4x286xf32>,
    %c0_258 = arith.constant 0 : index
    %c20_259 = arith.constant 20 : index
    %274 = vector.load %arg8[%c0_258, %c20_259] : memref<4x324xf32, #tpu.memory_space<vmem>>, vector<4x286xf32>
    %c20_260 = arith.constant 20 : index
    %c0_261 = arith.constant 0 : index
    %275 = vector.load %arg9[%c20_260, %c0_261] : memref<36x286xf32, #tpu.memory_space<vmem>>, vector<4x286xf32>
    tpu.vector_store %arg9[%c20_260, %c0_261], %274 {strides = array<i32>} : memref<36x286xf32, #tpu.memory_space<vmem>>, vector<4x286xf32>,
    %c0_262 = arith.constant 0 : index
    %c36_263 = arith.constant 36 : index
    %276 = vector.load %arg8[%c0_262, %c36_263] : memref<4x324xf32, #tpu.memory_space<vmem>>, vector<4x286xf32>
    %c24_264 = arith.constant 24 : index
    %c0_265 = arith.constant 0 : index
    %277 = vector.load %arg9[%c24_264, %c0_265] : memref<36x286xf32, #tpu.memory_space<vmem>>, vector<4x286xf32>
    tpu.vector_store %arg9[%c24_264, %c0_265], %276 {strides = array<i32>} : memref<36x286xf32, #tpu.memory_space<vmem>>, vector<4x286xf32>,
    %c0_266 = arith.constant 0 : index
    %c37_267 = arith.constant 37 : index
    %278 = vector.load %arg8[%c0_266, %c37_267] : memref<4x324xf32, #tpu.memory_space<vmem>>, vector<4x286xf32>
    %c28_268 = arith.constant 28 : index
    %c0_269 = arith.constant 0 : index
    %279 = vector.load %arg9[%c28_268, %c0_269] : memref<36x286xf32, #tpu.memory_space<vmem>>, vector<4x286xf32>
    tpu.vector_store %arg9[%c28_268, %c0_269], %278 {strides = array<i32>} : memref<36x286xf32, #tpu.memory_space<vmem>>, vector<4x286xf32>,
    %c0_270 = arith.constant 0 : index
    %c38_271 = arith.constant 38 : index
    %280 = vector.load %arg8[%c0_270, %c38_271] : memref<4x324xf32, #tpu.memory_space<vmem>>, vector<4x286xf32>
    %c32_272 = arith.constant 32 : index
    %c0_273 = arith.constant 0 : index
    %281 = vector.load %arg9[%c32_272, %c0_273] : memref<36x286xf32, #tpu.memory_space<vmem>>, vector<4x286xf32>
    tpu.vector_store %arg9[%c32_272, %c0_273], %280 {strides = array<i32>} : memref<36x286xf32, #tpu.memory_space<vmem>>, vector<4x286xf32>,
    %c0_274 = arith.constant 0 : index
    %c0_275 = arith.constant 0 : index
    %282 = vector.load %arg4[%c0_274, %c0_275] : memref<4x36xf32, #tpu.memory_space<vmem>>, vector<4x36xf32>
    %c0_276 = arith.constant 0 : index
    %c0_277 = arith.constant 0 : index
    %283 = vector.load %arg9[%c0_276, %c0_277] : memref<36x286xf32, #tpu.memory_space<vmem>>, vector<36x286xf32>
    %cst_278 = arith.constant dense<0.000000e+00> : vector<4x286xf32>
    %284 = tpu.matmul %282, %283, %cst_278 {dimension_numbers = #tpu.dot_dimension_numbers<[1], [0], [0], [1], [0, 0, 1, 1], [], []>} : vector<4x36xf32>, vector<36x286xf32>, vector<4x286xf32> -> vector<4x286xf32>
    %c0_279 = arith.constant 0 : index
    %c0_280 = arith.constant 0 : index
    %285 = vector.load %arg5[%c0_279, %c0_280] : memref<4x1xf32, #tpu.memory_space<vmem>>, vector<4x1xf32>
    %286 = vector.broadcast %285 : vector<4x1xf32> to vector<4x286xf32>
    %287 = arith.addf %284, %286 : vector<4x286xf32>
    %288 = vector.extract_strided_slice %287 {offsets = [0, 0], sizes = [4, 16], strides = [1, 1]} : vector<4x286xf32> to vector<4x16xf32>
    %cst_281 = arith.constant 1.000000e-01 : f32
    %289 = vector.broadcast %cst_281 : f32 to vector<4x16xf32>
    %290 = arith.mulf %288, %289 : vector<4x16xf32>
    %c0_282 = arith.constant 0 : index
    %c0_283 = arith.constant 0 : index
    %c0_284 = arith.constant 0 : index
    %291 = vector.load %arg1[%c0_282, %c0_283, %c0_284] : memref<1x4x256xf32, #tpu.memory_space<vmem>>, vector<1x4x16xf32>
    %292 = vector.shape_cast %291 : vector<1x4x16xf32> to vector<4x16xf32>
    %293 = arith.addf %290, %292 : vector<4x16xf32>
    %c0_285 = arith.constant 0 : index
    %c0_286 = arith.constant 0 : index
    %c0_287 = arith.constant 0 : index
    %294 = vector.load %arg7[%c0_285, %c0_286, %c0_287] : memref<1x4x256xf32, #tpu.memory_space<vmem>>, vector<1x4x16xf32>
    %295 = vector.shape_cast %294 : vector<1x4x16xf32> to vector<4x16xf32>
    %296 = vector.shape_cast %293 : vector<4x16xf32> to vector<1x4x16xf32>
    tpu.vector_store %arg7[%c0_285, %c0_286, %c0_287], %296 {strides = array<i32>} : memref<1x4x256xf32, #tpu.memory_space<vmem>>, vector<1x4x16xf32>,
    %297 = vector.extract_strided_slice %287 {offsets = [0, 18], sizes = [4, 16], strides = [1, 1]} : vector<4x286xf32> to vector<4x16xf32>
    %cst_288 = arith.constant 1.000000e-01 : f32
    %298 = vector.broadcast %cst_288 : f32 to vector<4x16xf32>
    %299 = arith.mulf %297, %298 : vector<4x16xf32>
    %c0_289 = arith.constant 0 : index
    %c0_290 = arith.constant 0 : index
    %c16_291 = arith.constant 16 : index
    %300 = vector.load %arg1[%c0_289, %c0_290, %c16_291] : memref<1x4x256xf32, #tpu.memory_space<vmem>>, vector<1x4x16xf32>
    %301 = vector.shape_cast %300 : vector<1x4x16xf32> to vector<4x16xf32>
    %302 = arith.addf %299, %301 : vector<4x16xf32>
    %c0_292 = arith.constant 0 : index
    %c0_293 = arith.constant 0 : index
    %c16_294 = arith.constant 16 : index
    %303 = vector.load %arg7[%c0_292, %c0_293, %c16_294] : memref<1x4x256xf32, #tpu.memory_space<vmem>>, vector<1x4x16xf32>
    %304 = vector.shape_cast %303 : vector<1x4x16xf32> to vector<4x16xf32>
    %305 = vector.shape_cast %302 : vector<4x16xf32> to vector<1x4x16xf32>
    tpu.vector_store %arg7[%c0_292, %c0_293, %c16_294], %305 {strides = array<i32>} : memref<1x4x256xf32, #tpu.memory_space<vmem>>, vector<1x4x16xf32>,
    %306 = vector.extract_strided_slice %287 {offsets = [0, 36], sizes = [4, 16], strides = [1, 1]} : vector<4x286xf32> to vector<4x16xf32>
    %cst_295 = arith.constant 1.000000e-01 : f32
    %307 = vector.broadcast %cst_295 : f32 to vector<4x16xf32>
    %308 = arith.mulf %306, %307 : vector<4x16xf32>
    %c0_296 = arith.constant 0 : index
    %c0_297 = arith.constant 0 : index
    %c32_298 = arith.constant 32 : index
    %309 = vector.load %arg1[%c0_296, %c0_297, %c32_298] : memref<1x4x256xf32, #tpu.memory_space<vmem>>, vector<1x4x16xf32>
    %310 = vector.shape_cast %309 : vector<1x4x16xf32> to vector<4x16xf32>
    %311 = arith.addf %308, %310 : vector<4x16xf32>
    %c0_299 = arith.constant 0 : index
    %c0_300 = arith.constant 0 : index
    %c32_301 = arith.constant 32 : index
    %312 = vector.load %arg7[%c0_299, %c0_300, %c32_301] : memref<1x4x256xf32, #tpu.memory_space<vmem>>, vector<1x4x16xf32>
    %313 = vector.shape_cast %312 : vector<1x4x16xf32> to vector<4x16xf32>
    %314 = vector.shape_cast %311 : vector<4x16xf32> to vector<1x4x16xf32>
    tpu.vector_store %arg7[%c0_299, %c0_300, %c32_301], %314 {strides = array<i32>} : memref<1x4x256xf32, #tpu.memory_space<vmem>>, vector<1x4x16xf32>,
    %315 = vector.extract_strided_slice %287 {offsets = [0, 54], sizes = [4, 16], strides = [1, 1]} : vector<4x286xf32> to vector<4x16xf32>
    %cst_302 = arith.constant 1.000000e-01 : f32
    %316 = vector.broadcast %cst_302 : f32 to vector<4x16xf32>
    %317 = arith.mulf %315, %316 : vector<4x16xf32>
    %c0_303 = arith.constant 0 : index
    %c0_304 = arith.constant 0 : index
    %c48_305 = arith.constant 48 : index
    %318 = vector.load %arg1[%c0_303, %c0_304, %c48_305] : memref<1x4x256xf32, #tpu.memory_space<vmem>>, vector<1x4x16xf32>
    %319 = vector.shape_cast %318 : vector<1x4x16xf32> to vector<4x16xf32>
    %320 = arith.addf %317, %319 : vector<4x16xf32>
    %c0_306 = arith.constant 0 : index
    %c0_307 = arith.constant 0 : index
    %c48_308 = arith.constant 48 : index
    %321 = vector.load %arg7[%c0_306, %c0_307, %c48_308] : memref<1x4x256xf32, #tpu.memory_space<vmem>>, vector<1x4x16xf32>
    %322 = vector.shape_cast %321 : vector<1x4x16xf32> to vector<4x16xf32>
    %323 = vector.shape_cast %320 : vector<4x16xf32> to vector<1x4x16xf32>
    tpu.vector_store %arg7[%c0_306, %c0_307, %c48_308], %323 {strides = array<i32>} : memref<1x4x256xf32, #tpu.memory_space<vmem>>, vector<1x4x16xf32>,
    %324 = vector.extract_strided_slice %287 {offsets = [0, 72], sizes = [4, 16], strides = [1, 1]} : vector<4x286xf32> to vector<4x16xf32>
    %cst_309 = arith.constant 1.000000e-01 : f32
    %325 = vector.broadcast %cst_309 : f32 to vector<4x16xf32>
    %326 = arith.mulf %324, %325 : vector<4x16xf32>
    %c0_310 = arith.constant 0 : index
    %c0_311 = arith.constant 0 : index
    %c64_312 = arith.constant 64 : index
    %327 = vector.load %arg1[%c0_310, %c0_311, %c64_312] : memref<1x4x256xf32, #tpu.memory_space<vmem>>, vector<1x4x16xf32>
    %328 = vector.shape_cast %327 : vector<1x4x16xf32> to vector<4x16xf32>
    %329 = arith.addf %326, %328 : vector<4x16xf32>
    %c0_313 = arith.constant 0 : index
    %c0_314 = arith.constant 0 : index
    %c64_315 = arith.constant 64 : index
    %330 = vector.load %arg7[%c0_313, %c0_314, %c64_315] : memref<1x4x256xf32, #tpu.memory_space<vmem>>, vector<1x4x16xf32>
    %331 = vector.shape_cast %330 : vector<1x4x16xf32> to vector<4x16xf32>
    %332 = vector.shape_cast %329 : vector<4x16xf32> to vector<1x4x16xf32>
    tpu.vector_store %arg7[%c0_313, %c0_314, %c64_315], %332 {strides = array<i32>} : memref<1x4x256xf32, #tpu.memory_space<vmem>>, vector<1x4x16xf32>,
    %333 = vector.extract_strided_slice %287 {offsets = [0, 90], sizes = [4, 16], strides = [1, 1]} : vector<4x286xf32> to vector<4x16xf32>
    %cst_316 = arith.constant 1.000000e-01 : f32
    %334 = vector.broadcast %cst_316 : f32 to vector<4x16xf32>
    %335 = arith.mulf %333, %334 : vector<4x16xf32>
    %c0_317 = arith.constant 0 : index
    %c0_318 = arith.constant 0 : index
    %c80_319 = arith.constant 80 : index
    %336 = vector.load %arg1[%c0_317, %c0_318, %c80_319] : memref<1x4x256xf32, #tpu.memory_space<vmem>>, vector<1x4x16xf32>
    %337 = vector.shape_cast %336 : vector<1x4x16xf32> to vector<4x16xf32>
    %338 = arith.addf %335, %337 : vector<4x16xf32>
    %c0_320 = arith.constant 0 : index
    %c0_321 = arith.constant 0 : index
    %c80_322 = arith.constant 80 : index
    %339 = vector.load %arg7[%c0_320, %c0_321, %c80_322] : memref<1x4x256xf32, #tpu.memory_space<vmem>>, vector<1x4x16xf32>
    %340 = vector.shape_cast %339 : vector<1x4x16xf32> to vector<4x16xf32>
    %341 = vector.shape_cast %338 : vector<4x16xf32> to vector<1x4x16xf32>
    tpu.vector_store %arg7[%c0_320, %c0_321, %c80_322], %341 {strides = array<i32>} : memref<1x4x256xf32, #tpu.memory_space<vmem>>, vector<1x4x16xf32>,
    %342 = vector.extract_strided_slice %287 {offsets = [0, 108], sizes = [4, 16], strides = [1, 1]} : vector<4x286xf32> to vector<4x16xf32>
    %cst_323 = arith.constant 1.000000e-01 : f32
    %343 = vector.broadcast %cst_323 : f32 to vector<4x16xf32>
    %344 = arith.mulf %342, %343 : vector<4x16xf32>
    %c0_324 = arith.constant 0 : index
    %c0_325 = arith.constant 0 : index
    %c96_326 = arith.constant 96 : index
    %345 = vector.load %arg1[%c0_324, %c0_325, %c96_326] : memref<1x4x256xf32, #tpu.memory_space<vmem>>, vector<1x4x16xf32>
    %346 = vector.shape_cast %345 : vector<1x4x16xf32> to vector<4x16xf32>
    %347 = arith.addf %344, %346 : vector<4x16xf32>
    %c0_327 = arith.constant 0 : index
    %c0_328 = arith.constant 0 : index
    %c96_329 = arith.constant 96 : index
    %348 = vector.load %arg7[%c0_327, %c0_328, %c96_329] : memref<1x4x256xf32, #tpu.memory_space<vmem>>, vector<1x4x16xf32>
    %349 = vector.shape_cast %348 : vector<1x4x16xf32> to vector<4x16xf32>
    %350 = vector.shape_cast %347 : vector<4x16xf32> to vector<1x4x16xf32>
    tpu.vector_store %arg7[%c0_327, %c0_328, %c96_329], %350 {strides = array<i32>} : memref<1x4x256xf32, #tpu.memory_space<vmem>>, vector<1x4x16xf32>,
    %351 = vector.extract_strided_slice %287 {offsets = [0, 126], sizes = [4, 16], strides = [1, 1]} : vector<4x286xf32> to vector<4x16xf32>
    %cst_330 = arith.constant 1.000000e-01 : f32
    %352 = vector.broadcast %cst_330 : f32 to vector<4x16xf32>
    %353 = arith.mulf %351, %352 : vector<4x16xf32>
    %c0_331 = arith.constant 0 : index
    %c0_332 = arith.constant 0 : index
    %c112_333 = arith.constant 112 : index
    %354 = vector.load %arg1[%c0_331, %c0_332, %c112_333] : memref<1x4x256xf32, #tpu.memory_space<vmem>>, vector<1x4x16xf32>
    %355 = vector.shape_cast %354 : vector<1x4x16xf32> to vector<4x16xf32>
    %356 = arith.addf %353, %355 : vector<4x16xf32>
    %c0_334 = arith.constant 0 : index
    %c0_335 = arith.constant 0 : index
    %c112_336 = arith.constant 112 : index
    %357 = vector.load %arg7[%c0_334, %c0_335, %c112_336] : memref<1x4x256xf32, #tpu.memory_space<vmem>>, vector<1x4x16xf32>
    %358 = vector.shape_cast %357 : vector<1x4x16xf32> to vector<4x16xf32>
    %359 = vector.shape_cast %356 : vector<4x16xf32> to vector<1x4x16xf32>
    tpu.vector_store %arg7[%c0_334, %c0_335, %c112_336], %359 {strides = array<i32>} : memref<1x4x256xf32, #tpu.memory_space<vmem>>, vector<1x4x16xf32>,
    %360 = vector.extract_strided_slice %287 {offsets = [0, 144], sizes = [4, 16], strides = [1, 1]} : vector<4x286xf32> to vector<4x16xf32>
    %cst_337 = arith.constant 1.000000e-01 : f32
    %361 = vector.broadcast %cst_337 : f32 to vector<4x16xf32>
    %362 = arith.mulf %360, %361 : vector<4x16xf32>
    %c0_338 = arith.constant 0 : index
    %c0_339 = arith.constant 0 : index
    %c128_340 = arith.constant 128 : index
    %363 = vector.load %arg1[%c0_338, %c0_339, %c128_340] : memref<1x4x256xf32, #tpu.memory_space<vmem>>, vector<1x4x16xf32>
    %364 = vector.shape_cast %363 : vector<1x4x16xf32> to vector<4x16xf32>
    %365 = arith.addf %362, %364 : vector<4x16xf32>
    %c0_341 = arith.constant 0 : index
    %c0_342 = arith.constant 0 : index
    %c128_343 = arith.constant 128 : index
    %366 = vector.load %arg7[%c0_341, %c0_342, %c128_343] : memref<1x4x256xf32, #tpu.memory_space<vmem>>, vector<1x4x16xf32>
    %367 = vector.shape_cast %366 : vector<1x4x16xf32> to vector<4x16xf32>
    %368 = vector.shape_cast %365 : vector<4x16xf32> to vector<1x4x16xf32>
    tpu.vector_store %arg7[%c0_341, %c0_342, %c128_343], %368 {strides = array<i32>} : memref<1x4x256xf32, #tpu.memory_space<vmem>>, vector<1x4x16xf32>,
    %369 = vector.extract_strided_slice %287 {offsets = [0, 162], sizes = [4, 16], strides = [1, 1]} : vector<4x286xf32> to vector<4x16xf32>
    %cst_344 = arith.constant 1.000000e-01 : f32
    %370 = vector.broadcast %cst_344 : f32 to vector<4x16xf32>
    %371 = arith.mulf %369, %370 : vector<4x16xf32>
    %c0_345 = arith.constant 0 : index
    %c0_346 = arith.constant 0 : index
    %c144_347 = arith.constant 144 : index
    %372 = vector.load %arg1[%c0_345, %c0_346, %c144_347] : memref<1x4x256xf32, #tpu.memory_space<vmem>>, vector<1x4x16xf32>
    %373 = vector.shape_cast %372 : vector<1x4x16xf32> to vector<4x16xf32>
    %374 = arith.addf %371, %373 : vector<4x16xf32>
    %c0_348 = arith.constant 0 : index
    %c0_349 = arith.constant 0 : index
    %c144_350 = arith.constant 144 : index
    %375 = vector.load %arg7[%c0_348, %c0_349, %c144_350] : memref<1x4x256xf32, #tpu.memory_space<vmem>>, vector<1x4x16xf32>
    %376 = vector.shape_cast %375 : vector<1x4x16xf32> to vector<4x16xf32>
    %377 = vector.shape_cast %374 : vector<4x16xf32> to vector<1x4x16xf32>
    tpu.vector_store %arg7[%c0_348, %c0_349, %c144_350], %377 {strides = array<i32>} : memref<1x4x256xf32, #tpu.memory_space<vmem>>, vector<1x4x16xf32>,
    %378 = vector.extract_strided_slice %287 {offsets = [0, 180], sizes = [4, 16], strides = [1, 1]} : vector<4x286xf32> to vector<4x16xf32>
    %cst_351 = arith.constant 1.000000e-01 : f32
    %379 = vector.broadcast %cst_351 : f32 to vector<4x16xf32>
    %380 = arith.mulf %378, %379 : vector<4x16xf32>
    %c0_352 = arith.constant 0 : index
    %c0_353 = arith.constant 0 : index
    %c160_354 = arith.constant 160 : index
    %381 = vector.load %arg1[%c0_352, %c0_353, %c160_354] : memref<1x4x256xf32, #tpu.memory_space<vmem>>, vector<1x4x16xf32>
    %382 = vector.shape_cast %381 : vector<1x4x16xf32> to vector<4x16xf32>
    %383 = arith.addf %380, %382 : vector<4x16xf32>
    %c0_355 = arith.constant 0 : index
    %c0_356 = arith.constant 0 : index
    %c160_357 = arith.constant 160 : index
    %384 = vector.load %arg7[%c0_355, %c0_356, %c160_357] : memref<1x4x256xf32, #tpu.memory_space<vmem>>, vector<1x4x16xf32>
    %385 = vector.shape_cast %384 : vector<1x4x16xf32> to vector<4x16xf32>
    %386 = vector.shape_cast %383 : vector<4x16xf32> to vector<1x4x16xf32>
    tpu.vector_store %arg7[%c0_355, %c0_356, %c160_357], %386 {strides = array<i32>} : memref<1x4x256xf32, #tpu.memory_space<vmem>>, vector<1x4x16xf32>,
    %387 = vector.extract_strided_slice %287 {offsets = [0, 198], sizes = [4, 16], strides = [1, 1]} : vector<4x286xf32> to vector<4x16xf32>
    %cst_358 = arith.constant 1.000000e-01 : f32
    %388 = vector.broadcast %cst_358 : f32 to vector<4x16xf32>
    %389 = arith.mulf %387, %388 : vector<4x16xf32>
    %c0_359 = arith.constant 0 : index
    %c0_360 = arith.constant 0 : index
    %c176_361 = arith.constant 176 : index
    %390 = vector.load %arg1[%c0_359, %c0_360, %c176_361] : memref<1x4x256xf32, #tpu.memory_space<vmem>>, vector<1x4x16xf32>
    %391 = vector.shape_cast %390 : vector<1x4x16xf32> to vector<4x16xf32>
    %392 = arith.addf %389, %391 : vector<4x16xf32>
    %c0_362 = arith.constant 0 : index
    %c0_363 = arith.constant 0 : index
    %c176_364 = arith.constant 176 : index
    %393 = vector.load %arg7[%c0_362, %c0_363, %c176_364] : memref<1x4x256xf32, #tpu.memory_space<vmem>>, vector<1x4x16xf32>
    %394 = vector.shape_cast %393 : vector<1x4x16xf32> to vector<4x16xf32>
    %395 = vector.shape_cast %392 : vector<4x16xf32> to vector<1x4x16xf32>
    tpu.vector_store %arg7[%c0_362, %c0_363, %c176_364], %395 {strides = array<i32>} : memref<1x4x256xf32, #tpu.memory_space<vmem>>, vector<1x4x16xf32>,
    %396 = vector.extract_strided_slice %287 {offsets = [0, 216], sizes = [4, 16], strides = [1, 1]} : vector<4x286xf32> to vector<4x16xf32>
    %cst_365 = arith.constant 1.000000e-01 : f32
    %397 = vector.broadcast %cst_365 : f32 to vector<4x16xf32>
    %398 = arith.mulf %396, %397 : vector<4x16xf32>
    %c0_366 = arith.constant 0 : index
    %c0_367 = arith.constant 0 : index
    %c192_368 = arith.constant 192 : index
    %399 = vector.load %arg1[%c0_366, %c0_367, %c192_368] : memref<1x4x256xf32, #tpu.memory_space<vmem>>, vector<1x4x16xf32>
    %400 = vector.shape_cast %399 : vector<1x4x16xf32> to vector<4x16xf32>
    %401 = arith.addf %398, %400 : vector<4x16xf32>
    %c0_369 = arith.constant 0 : index
    %c0_370 = arith.constant 0 : index
    %c192_371 = arith.constant 192 : index
    %402 = vector.load %arg7[%c0_369, %c0_370, %c192_371] : memref<1x4x256xf32, #tpu.memory_space<vmem>>, vector<1x4x16xf32>
    %403 = vector.shape_cast %402 : vector<1x4x16xf32> to vector<4x16xf32>
    %404 = vector.shape_cast %401 : vector<4x16xf32> to vector<1x4x16xf32>
    tpu.vector_store %arg7[%c0_369, %c0_370, %c192_371], %404 {strides = array<i32>} : memref<1x4x256xf32, #tpu.memory_space<vmem>>, vector<1x4x16xf32>,
    %405 = vector.extract_strided_slice %287 {offsets = [0, 234], sizes = [4, 16], strides = [1, 1]} : vector<4x286xf32> to vector<4x16xf32>
    %cst_372 = arith.constant 1.000000e-01 : f32
    %406 = vector.broadcast %cst_372 : f32 to vector<4x16xf32>
    %407 = arith.mulf %405, %406 : vector<4x16xf32>
    %c0_373 = arith.constant 0 : index
    %c0_374 = arith.constant 0 : index
    %c208_375 = arith.constant 208 : index
    %408 = vector.load %arg1[%c0_373, %c0_374, %c208_375] : memref<1x4x256xf32, #tpu.memory_space<vmem>>, vector<1x4x16xf32>
    %409 = vector.shape_cast %408 : vector<1x4x16xf32> to vector<4x16xf32>
    %410 = arith.addf %407, %409 : vector<4x16xf32>
    %c0_376 = arith.constant 0 : index
    %c0_377 = arith.constant 0 : index
    %c208_378 = arith.constant 208 : index
    %411 = vector.load %arg7[%c0_376, %c0_377, %c208_378] : memref<1x4x256xf32, #tpu.memory_space<vmem>>, vector<1x4x16xf32>
    %412 = vector.shape_cast %411 : vector<1x4x16xf32> to vector<4x16xf32>
    %413 = vector.shape_cast %410 : vector<4x16xf32> to vector<1x4x16xf32>
    tpu.vector_store %arg7[%c0_376, %c0_377, %c208_378], %413 {strides = array<i32>} : memref<1x4x256xf32, #tpu.memory_space<vmem>>, vector<1x4x16xf32>,
    %414 = vector.extract_strided_slice %287 {offsets = [0, 252], sizes = [4, 16], strides = [1, 1]} : vector<4x286xf32> to vector<4x16xf32>
    %cst_379 = arith.constant 1.000000e-01 : f32
    %415 = vector.broadcast %cst_379 : f32 to vector<4x16xf32>
    %416 = arith.mulf %414, %415 : vector<4x16xf32>
    %c0_380 = arith.constant 0 : index
    %c0_381 = arith.constant 0 : index
    %c224_382 = arith.constant 224 : index
    %417 = vector.load %arg1[%c0_380, %c0_381, %c224_382] : memref<1x4x256xf32, #tpu.memory_space<vmem>>, vector<1x4x16xf32>
    %418 = vector.shape_cast %417 : vector<1x4x16xf32> to vector<4x16xf32>
    %419 = arith.addf %416, %418 : vector<4x16xf32>
    %c0_383 = arith.constant 0 : index
    %c0_384 = arith.constant 0 : index
    %c224_385 = arith.constant 224 : index
    %420 = vector.load %arg7[%c0_383, %c0_384, %c224_385] : memref<1x4x256xf32, #tpu.memory_space<vmem>>, vector<1x4x16xf32>
    %421 = vector.shape_cast %420 : vector<1x4x16xf32> to vector<4x16xf32>
    %422 = vector.shape_cast %419 : vector<4x16xf32> to vector<1x4x16xf32>
    tpu.vector_store %arg7[%c0_383, %c0_384, %c224_385], %422 {strides = array<i32>} : memref<1x4x256xf32, #tpu.memory_space<vmem>>, vector<1x4x16xf32>,
    %423 = vector.extract_strided_slice %287 {offsets = [0, 270], sizes = [4, 16], strides = [1, 1]} : vector<4x286xf32> to vector<4x16xf32>
    %cst_386 = arith.constant 1.000000e-01 : f32
    %424 = vector.broadcast %cst_386 : f32 to vector<4x16xf32>
    %425 = arith.mulf %423, %424 : vector<4x16xf32>
    %c0_387 = arith.constant 0 : index
    %c0_388 = arith.constant 0 : index
    %c240_389 = arith.constant 240 : index
    %426 = vector.load %arg1[%c0_387, %c0_388, %c240_389] : memref<1x4x256xf32, #tpu.memory_space<vmem>>, vector<1x4x16xf32>
    %427 = vector.shape_cast %426 : vector<1x4x16xf32> to vector<4x16xf32>
    %428 = arith.addf %425, %427 : vector<4x16xf32>
    %c0_390 = arith.constant 0 : index
    %c0_391 = arith.constant 0 : index
    %c240_392 = arith.constant 240 : index
    %429 = vector.load %arg7[%c0_390, %c0_391, %c240_392] : memref<1x4x256xf32, #tpu.memory_space<vmem>>, vector<1x4x16xf32>
    %430 = vector.shape_cast %429 : vector<1x4x16xf32> to vector<4x16xf32>
    %431 = vector.shape_cast %428 : vector<4x16xf32> to vector<1x4x16xf32>
    tpu.vector_store %arg7[%c0_390, %c0_391, %c240_392], %431 {strides = array<i32>} : memref<1x4x256xf32, #tpu.memory_space<vmem>>, vector<1x4x16xf32>,
    return
  }
  func.func @transform_0(%arg0: i32) -> (i32, i32, i32) {
    %c0_i32 = arith.constant 0 : i32
    %c0_i32_0 = arith.constant 0 : i32
    %c0_i32_1 = arith.constant 0 : i32
    return %arg0, %c0_i32, %c0_i32_0 : i32, i32, i32
  }
  func.func @transform_1(%arg0: i32) -> (i32, i32) {
    %c0_i32 = arith.constant 0 : i32
    %c0_i32_0 = arith.constant 0 : i32
    %c0_i32_1 = arith.constant 0 : i32
    return %c0_i32, %c0_i32_0 : i32, i32
  }
  func.func @transform_2(%arg0: i32) -> (i32, i32) {
    %c0_i32 = arith.constant 0 : i32
    %c0_i32_0 = arith.constant 0 : i32
    %c0_i32_1 = arith.constant 0 : i32
    return %c0_i32, %c0_i32_0 : i32, i32
  }
  func.func @transform_3(%arg0: i32) -> (i32, i32) {
    %c0_i32 = arith.constant 0 : i32
    %c0_i32_0 = arith.constant 0 : i32
    %c0_i32_1 = arith.constant 0 : i32
    return %c0_i32, %c0_i32_0 : i32, i32
  }
  func.func @transform_4(%arg0: i32) -> (i32, i32) {
    %c0_i32 = arith.constant 0 : i32
    %c0_i32_0 = arith.constant 0 : i32
    %c0_i32_1 = arith.constant 0 : i32
    return %c0_i32, %c0_i32_0 : i32, i32
  }
  func.func @transform_5(%arg0: i32) -> i32 {
    %c0_i32 = arith.constant 0 : i32
    %c0_i32_0 = arith.constant 0 : i32
    return %c0_i32 : i32
  }
  func.func @transform_6(%arg0: i32) -> (i32, i32, i32) {
    %c0_i32 = arith.constant 0 : i32
    %c0_i32_0 = arith.constant 0 : i32
    %c0_i32_1 = arith.constant 0 : i32
    return %arg0, %c0_i32, %c0_i32_0 : i32, i32, i32
  }
}

</mosaic_0001>

<llo_original>
// kernel: tpu_custom_call.1
$region0: #{tpu_custom_call.1}
  #allocation0 [shape = 'u32[]', space=smem, size = 0x4, offset = 0x4, fixed_abs, tag = 'smem constant byte address 0x4 - core index']
  #allocation1 [shape = 'u32[144,128]{1,0:T(1,128)}', space=vmem, size = 0x12000, scoped, tag = 'internal scratch']
  #allocation2 [shape = 'f32[4,324]{1,0:T(4,128)}', space=vmem, size = 0x1800, scoped, tag = 'scratch operand']
  #allocation3 [shape = 'f32[36,286]{1,0:T(8,128)}', space=vmem, size = 0xf000, scoped, tag = 'scratch operand']
  #allocation4 [shape = 'f32[1]{0:T(128)S(6)}', space=smem, size = 0x200, scoped, tag = 'scoped memory for tpu_custom_call.1']
  %s0 = inlined_call_operand.hbm [shape: f32[2,4,256], index: 0, kind: input, shape index: {}]
  %s1 = inlined_call_operand.vmem [shape: f32[4,36], index: 1, kind: input, shape index: {}]
  %s2 = inlined_call_operand.vmem [shape: f32[4,1], index: 2, kind: input, shape index: {}]
  %s3 = inlined_call_operand.vmem [shape: f32[4,36], index: 3, kind: input, shape index: {}]
  %s4 = inlined_call_operand.vmem [shape: f32[4,1], index: 4, kind: input, shape index: {}]
  %s5 = inlined_call_operand.<no memory space> [shape: f32[1], index: 5, kind: input, shape index: {}]
  %s6 = inlined_call_operand.hbm [shape: f32[2,4,256], index: 6, kind: output, shape index: {}]
  %s7 = sld [smem:[#allocation0]]
  $region61: #{tpu_custom_call.1} parent=0
    _
  %s9 = ssub.s32 1, %s7
  %s10 = scalar_select 0, %s9, %s7
  %11 = sst [smem:[#allocation4]] %s5
  $region1: #{tpu_custom_call.1} parent=0
    #allocation5 [shape = 'u8[8192]{0}', space=vmem, size = 0x2000, scoped, tag = 'input window, operand 0']
    #allocation6 [shape = 's32[2]{0}', space=sflag, size = 0x8, scoped, tag = 'scoped memory for tpu_custom_call.1']
    #allocation7 [shape = 's32[2]{0}', space=sflag, size = 0x8, scoped, tag = 'scoped memory for tpu_custom_call.1']
    #allocation8 [shape = 'u8[8192]{0}', space=vmem, size = 0x2000, scoped, tag = 'output window, operand 0']
    %12 = vsyncpa [#allocation6], 0
    %s13 = scalar_lea.sflag [#allocation6], 1
    %14 = vsyncpa %s13, 0
    %15 = vsyncpa [#allocation7], 0
    %s16 = scalar_lea.sflag [#allocation7], 1
    %17 = vsyncpa %s16, 0
    loop: start=0, step=1, limit=4
    $region2: #{tpu_custom_call.1} parent=1 // loop_pre_header
      _
    $region3: #{tpu_custom_call.1} parent=1 // loop_header
      %s19 = sphi 0, %s23
      %p20 = scmp.ge.s32.totalorder %s19, 4
      %s29 = sphi 0, %s31
      %s32 = sphi 0, %s29
      %s33 = sphi 0, %s32
      %s49 = sphi 0, %s33
      %s53 = sphi 0, %s53
      %s55 = sphi 0, %s53
      %s56 = sphi 0, %s55
      %s70 = sphi 0, %s56
      %s74 = sphi 0, %s74
      %s76 = sphi 0, %s74
      %s77 = sphi 0, %s76
      %s91 = sphi 0, %s77
      %s95 = sphi 0, %s95
      %s97 = sphi 0, %s95
      %s98 = sphi 0, %s97
      %s112 = sphi 0, %s98
      %s116 = sphi 0, %s116
      %s118 = sphi 0, %s116
      %s119 = sphi 0, %s118
      %s133 = sphi 0, %s119
      %s137 = sphi 0, %s137
      %s139 = sphi 0, %s137
      %s140 = sphi 0, %s139
      %s154 = sphi 0, %s140
      %s160 = sphi 0, %s162
      %s163 = sphi 0, %s160
      %s164 = sphi 0, %s163
      %s180 = sphi 0, %s164
    $region4: #{tpu_custom_call.1} parent=1 // loop_header_branch
      %22 = sbr.rel (%p20) target = $region8
    $region5: #{tpu_custom_call.1} parent=1 // loop_body
      %s24 = ssub.s32 %s19, 1
      %s25 = ssub.s32 %s19, 2
      %s26 = sadd.s32 %s19, 1
      %s27 = ssub.s32 %s19, %s26
      %p28 = scmp.eq.s32.totalorder %s27, 0
      %s30 = sadd.s32 %s29, 1
      %s31 = scalar_select %p28, %s29, %s30
      %p34 = pneg %p28
      %p35 = scmp.eq.s32.totalorder %s19, 1
      %p36 = por %p34, %p35
      %p37 = scmp.ne.s32.totalorder %s29, %s32
      %p38 = scmp.eq.s32.totalorder %s19, 0
      %p39 = por %p37, %p38
      %p40 = scmp.ne.s32.totalorder %s29, %s32
      %p41 = scmp.eq.s32.totalorder %s24, 1
      %p42 = por %p40, %p41
      %p43 = scmp.ne.s32.totalorder %s32, %s33
      %p44 = scmp.eq.s32.totalorder %s24, 0
      %p45 = por %p43, %p44
      %p46 = scmp.ne.s32.totalorder %s32, %s33
      %p47 = scmp.eq.s32.totalorder %s25, 1
      %p48 = por %p46, %p47
      %p50 = scmp.ne.s32.totalorder %s33, %s49
      %p51 = scmp.eq.s32.totalorder %s25, 0
      %p52 = por %p50, %p51
      %s54 = sadd.s32 %s53, 1
      %p57 = scmp.eq.s32.totalorder %s19, 1
      %p58 = scmp.ne.s32.totalorder %s53, %s55
      %p59 = scmp.eq.s32.totalorder %s19, 0
      %p60 = por %p58, %p59
      %p61 = scmp.ne.s32.totalorder %s53, %s55
      %p62 = scmp.eq.s32.totalorder %s24, 1
      %p63 = por %p61, %p62
      %p64 = scmp.ne.s32.totalorder %s55, %s56
      %p65 = scmp.eq.s32.totalorder %s24, 0
      %p66 = por %p64, %p65
      %p67 = scmp.ne.s32.totalorder %s55, %s56
      %p68 = scmp.eq.s32.totalorder %s25, 1
      %p69 = por %p67, %p68
      %p71 = scmp.ne.s32.totalorder %s56, %s70
      %p72 = scmp.eq.s32.totalorder %s25, 0
      %p73 = por %p71, %p72
      %s75 = sadd.s32 %s74, 1
      %p78 = scmp.eq.s32.totalorder %s19, 1
      %p79 = scmp.ne.s32.totalorder %s74, %s76
      %p80 = scmp.eq.s32.totalorder %s19, 0
      %p81 = por %p79, %p80
      %p82 = scmp.ne.s32.totalorder %s74, %s76
      %p83 = scmp.eq.s32.totalorder %s24, 1
      %p84 = por %p82, %p83
      %p85 = scmp.ne.s32.totalorder %s76, %s77
      %p86 = scmp.eq.s32.totalorder %s24, 0
      %p87 = por %p85, %p86
      %p88 = scmp.ne.s32.totalorder %s76, %s77
      %p89 = scmp.eq.s32.totalorder %s25, 1
      %p90 = por %p88, %p89
      %p92 = scmp.ne.s32.totalorder %s77, %s91
      %p93 = scmp.eq.s32.totalorder %s25, 0
      %p94 = por %p92, %p93
      %s96 = sadd.s32 %s95, 1
      %p99 = scmp.eq.s32.totalorder %s19, 1
      %p100 = scmp.ne.s32.totalorder %s95, %s97
      %p101 = scmp.eq.s32.totalorder %s19, 0
      %p102 = por %p100, %p101
      %p103 = scmp.ne.s32.totalorder %s95, %s97
      %p104 = scmp.eq.s32.totalorder %s24, 1
      %p105 = por %p103, %p104
      %p106 = scmp.ne.s32.totalorder %s97, %s98
      %p107 = scmp.eq.s32.totalorder %s24, 0
      %p108 = por %p106, %p107
      %p109 = scmp.ne.s32.totalorder %s97, %s98
      %p110 = scmp.eq.s32.totalorder %s25, 1
      %p111 = por %p109, %p110
      %p113 = scmp.ne.s32.totalorder %s98, %s112
      %p114 = scmp.eq.s32.totalorder %s25, 0
      %p115 = por %p113, %p114
      %s117 = sadd.s32 %s116, 1
      %p120 = scmp.eq.s32.totalorder %s19, 1
      %p121 = scmp.ne.s32.totalorder %s116, %s118
      %p122 = scmp.eq.s32.totalorder %s19, 0
      %p123 = por %p121, %p122
      %p124 = scmp.ne.s32.totalorder %s116, %s118
      %p125 = scmp.eq.s32.totalorder %s24, 1
      %p126 = por %p124, %p125
      %p127 = scmp.ne.s32.totalorder %s118, %s119
      %p128 = scmp.eq.s32.totalorder %s24, 0
      %p129 = por %p127, %p128
      %p130 = scmp.ne.s32.totalorder %s118, %s119
      %p131 = scmp.eq.s32.totalorder %s25, 1
      %p132 = por %p130, %p131
      %p134 = scmp.ne.s32.totalorder %s119, %s133
      %p135 = scmp.eq.s32.totalorder %s25, 0
      %p136 = por %p134, %p135
      %s138 = sadd.s32 %s137, 1
      %p141 = scmp.eq.s32.totalorder %s19, 1
      %p142 = scmp.ne.s32.totalorder %s137, %s139
      %p143 = scmp.eq.s32.totalorder %s19, 0
      %p144 = por %p142, %p143
      %p145 = scmp.ne.s32.totalorder %s137, %s139
      %p146 = scmp.eq.s32.totalorder %s24, 1
      %p147 = por %p145, %p146
      %p148 = scmp.ne.s32.totalorder %s139, %s140
      %p149 = scmp.eq.s32.totalorder %s24, 0
      %p150 = por %p148, %p149
      %p151 = scmp.ne.s32.totalorder %s139, %s140
      %p152 = scmp.eq.s32.totalorder %s25, 1
      %p153 = por %p151, %p152
      %p155 = scmp.ne.s32.totalorder %s140, %s154
      %p156 = scmp.eq.s32.totalorder %s25, 0
      %p157 = por %p155, %p156
      %s158 = ssub.s32 %s19, %s26
      %p159 = scmp.eq.s32.totalorder %s158, 0
      %s161 = sadd.s32 %s160, 1
      %s162 = scalar_select %p159, %s160, %s161
      %p165 = pneg %p159
      %p166 = scmp.eq.s32.totalorder %s19, 1
      %p167 = por %p165, %p166
      %p168 = scmp.ne.s32.totalorder %s160, %s163
      %p169 = scmp.eq.s32.totalorder %s19, 0
      %p170 = por %p168, %p169
      %p171 = scmp.ne.s32.totalorder %s160, %s163
      %p172 = scmp.eq.s32.totalorder %s24, 1
      %p173 = por %p171, %p172
      %p174 = scmp.ne.s32.totalorder %s163, %s164
      %p175 = scmp.eq.s32.totalorder %s24, 0
      %p176 = por %p174, %p175
      %p177 = scmp.ne.s32.totalorder %s163, %s164
      %p178 = scmp.eq.s32.totalorder %s25, 1
      %p179 = por %p177, %p178
      %p181 = scmp.ne.s32.totalorder %s164, %s180
      %p182 = scmp.eq.s32.totalorder %s25, 0
      %p183 = por %p181, %p182
      %p184 = scmp.le.s32.totalorder 1, %s19
      %p185 = scmp.lt.s32.totalorder %s19, 3
      %p186 = pnand %p184, %p185
      %p187 = pneg %p186
      // Predicated region
      $region9: #{tpu_custom_call.1} parent=5 // pred_check
        _
      $region10: #{tpu_custom_call.1} parent=5 // pred_check_branch
        %189 = sbr.rel (%p186) target = $region12
      $region11: #{tpu_custom_call.1} parent=5 // pred_region
        %s190 = ssub.s32 %s19, 1
        // Predicated region
        $region13: #{tpu_custom_call.1} parent=11 // pred_check
          %p191 = pneg %p66
        $region14: #{tpu_custom_call.1} parent=11 // pred_check_branch
          %193 = sbr.rel (%p191) target = $region16
        $region15: #{tpu_custom_call.1} parent=11 // pred_region
          _
        $region16: #{tpu_custom_call.1} parent=11 // pred_fallthru
          _
        // Predicated region
        $region17: #{tpu_custom_call.1} parent=11 // pred_check
          %p194 = pneg %p87
        $region18: #{tpu_custom_call.1} parent=11 // pred_check_branch
          %196 = sbr.rel (%p194) target = $region20
        $region19: #{tpu_custom_call.1} parent=11 // pred_region
          _
        $region20: #{tpu_custom_call.1} parent=11 // pred_fallthru
          _
        // Predicated region
        $region21: #{tpu_custom_call.1} parent=11 // pred_check
          %p197 = pneg %p108
        $region22: #{tpu_custom_call.1} parent=11 // pred_check_branch
          %199 = sbr.rel (%p197) target = $region24
        $region23: #{tpu_custom_call.1} parent=11 // pred_region
          _
        $region24: #{tpu_custom_call.1} parent=11 // pred_fallthru
          _
        // Predicated region
        $region25: #{tpu_custom_call.1} parent=11 // pred_check
          %p200 = pneg %p129
        $region26: #{tpu_custom_call.1} parent=11 // pred_check_branch
          %202 = sbr.rel (%p200) target = $region28
        $region27: #{tpu_custom_call.1} parent=11 // pred_region
          _
        $region28: #{tpu_custom_call.1} parent=11 // pred_fallthru
          _
        // Predicated region
        $region29: #{tpu_custom_call.1} parent=11 // pred_check
          %p203 = pneg %p150
        $region30: #{tpu_custom_call.1} parent=11 // pred_check_branch
          %205 = sbr.rel (%p203) target = $region32
        $region31: #{tpu_custom_call.1} parent=11 // pred_region
          _
        $region32: #{tpu_custom_call.1} parent=11 // pred_fallthru
          _
      $region12: #{tpu_custom_call.1} parent=5 // pred_fallthru
        _
      %p206 = scmp.lt.s32.totalorder %s19, 2
      // Predicated region
      $region33: #{tpu_custom_call.1} parent=5 // pred_check
        %p207 = pneg %p206
      $region34: #{tpu_custom_call.1} parent=5 // pred_check_branch
        %209 = sbr.rel (%p207) target = $region36
      $region35: #{tpu_custom_call.1} parent=5 // pred_region
        // Predicated region
        $region37: #{tpu_custom_call.1} parent=35 // pred_check
          %p210 = pneg %p39
        $region38: #{tpu_custom_call.1} parent=35 // pred_check_branch
          %212 = sbr.rel (%p210) target = $region40
        $region39: #{tpu_custom_call.1} parent=35 // pred_region
          %s213 = sand.u32 %s29, 1
          %s214 = scalar_lea.sflag [#allocation6], %s213
          %s215 = sand.u32 %s29, 1
          %s216 = smul.addr %s215, 8
          %s217 = scalar_lea.vmem [#allocation5], %s216
          %s219 = ssub.s32 128, 128
          %220 = vsyncadd %s214, %s219
          %s221 = smul.addr %s19, 2
          %s222 = smul.addr %s221, 64
          %s223 = scalar_lea.hbm %s0, %s222
          %s225 = sshll.u32 %s217, 4
          %s226 = int_to_ptr.vmem [resolvable:$true] %s225
          %228 = dma.hbm_to_vmem [thread:$0]  %s223, 128, %s226, %s214
        $region40: #{tpu_custom_call.1} parent=35 // pred_fallthru
          _
      $region36: #{tpu_custom_call.1} parent=5 // pred_fallthru
        _
      %p229 = scmp.le.s32.totalorder 1, %s19
      %p230 = scmp.lt.s32.totalorder %s19, 3
      %p231 = pnand %p229, %p230
      %p232 = pneg %p231
      // Predicated region
      $region41: #{tpu_custom_call.1} parent=5 // pred_check
        _
      $region42: #{tpu_custom_call.1} parent=5 // pred_check_branch
        %234 = sbr.rel (%p231) target = $region44
      $region43: #{tpu_custom_call.1} parent=5 // pred_region
        %s235 = ssub.s32 %s19, 1
        %s236 = sand.u32 %s32, 1
        %s237 = scalar_lea.sflag [#allocation6], %s236
        %s238 = sand.u32 %s32, 1
        %s239 = smul.addr %s238, 8
        %s240 = scalar_lea.vmem [#allocation5], %s239
        // Predicated region
        $region45: #{tpu_custom_call.1} parent=43 // pred_check
          %p241 = pneg %p45
        $region46: #{tpu_custom_call.1} parent=43 // pred_check_branch
          %243 = sbr.rel (%p241) target = $region48
        $region47: #{tpu_custom_call.1} parent=43 // pred_region
          %244 = dma.done %s237, 128
        $region48: #{tpu_custom_call.1} parent=43 // pred_fallthru
          _
        %s245 = sand.u32 %s32, 1
        %s246 = scalar_lea.sflag [#allocation6], %s245
        %s247 = sand.u32 %s32, 1
        %s248 = smul.addr %s247, 8
        %s249 = scalar_lea.vmem [#allocation5], %s248
        %p250 = pneg %p45
        %p251 = pneg %p42
        %p252 = pneg %p66
        %p253 = pneg %p63
        %p254 = pneg %p87
        %p255 = pneg %p84
        %p256 = pneg %p108
        %p257 = pneg %p105
        %p258 = pneg %p129
        %p259 = pneg %p126
        %p260 = pneg %p150
        %p261 = pneg %p147
        %p262 = pneg %p176
        %p263 = pneg %p173
        %s264 = sand.u32 %s163, 1
        %s265 = scalar_lea.sflag [#allocation7], %s264
        %s266 = sand.u32 %s163, 1
        %s267 = smul.addr %s266, 8
        %s268 = scalar_lea.vmem [#allocation8], %s267
        %v269 = vld [vmem:[%s240] sm:$0xf]
        %271 = vrot.lane.b32.xlu0 %v269, 19
        %v272 = vpop.permute.xlu0 %271
        %vm274 = vcmask 281752
        %275 = vst.msk [vmem:[#allocation2] sm:$0xf] %vm274, %v272
        %276 = vrot.lane.b32.xlu0 %v269, 17
        %v277 = vpop.permute.xlu0 %276
        %vm279 = vcmask 150672
        %280 = vst.msk [vmem:[#allocation2] sm:$0xf] %vm279, %v277
        %281 = vrot.lane.b32.xlu0 %v269, 21
        %v282 = vpop.permute.xlu0 %281
        %vm284 = vcmask 290072
        %285 = vst.msk [vmem:[#allocation2] sm:$0xf] %vm284, %v282
        %v286 = vld [vmem:[%s240] sm:$0xf]
        %288 = vrot.lane.b32.xlu0 %v286, 21
        %v289 = vpop.permute.xlu0 %288
        %vm291 = vcmask 429352
        %292 = vst.msk [vmem:[#allocation2] sm:$0xf] %vm291, %v289
        %293 = vrot.lane.b32.xlu0 %v286, 19
        %v294 = vpop.permute.xlu0 %293
        %vm296 = vcmask 298272
        %297 = vst.msk [vmem:[#allocation2] sm:$0xf] %vm296, %v294
        %298 = vrot.lane.b32.xlu0 %v286, 23
        %v299 = vpop.permute.xlu0 %298
        %vm301 = vcmask 437672
        %302 = vst.msk [vmem:[#allocation2] sm:$0xf] %vm301, %v299
        %v303 = vld [vmem:[%s240] sm:$0xf]
        %305 = vrot.lane.b32.xlu0 %v303, 23
        %v306 = vpop.permute.xlu0 %305
        %vm308 = vcmask 576952
        %309 = vst.msk [vmem:[#allocation2] sm:$0xf] %vm308, %v306
        %310 = vrot.lane.b32.xlu0 %v303, 21
        %v311 = vpop.permute.xlu0 %310
        %vm313 = vcmask 445872
        %314 = vst.msk [vmem:[#allocation2] sm:$0xf] %vm313, %v311
        %315 = vrot.lane.b32.xlu0 %v303, 25
        %v316 = vpop.permute.xlu0 %315
        %vm318 = vcmask 585272
        %319 = vst.msk [vmem:[#allocation2] sm:$0xf] %vm318, %v316
        %v320 = vld [vmem:[%s240] sm:$0xf]
        %322 = vrot.lane.b32.xlu0 %v320, 25
        %v323 = vpop.permute.xlu0 %322
        %vm325 = vcmask 724552
        %326 = vst.msk [vmem:[#allocation2] sm:$0xf] %vm325, %v323
        %327 = vrot.lane.b32.xlu0 %v320, 23
        %v328 = vpop.permute.xlu0 %327
        %vm330 = vcmask 593472
        %331 = vst.msk [vmem:[#allocation2] sm:$0xf] %vm330, %v328
        %332 = vrot.lane.b32.xlu0 %v320, 27
        %v333 = vpop.permute.xlu0 %332
        %vm335 = vcmask 732872
        %336 = vst.msk [vmem:[#allocation2] sm:$0xf] %vm335, %v333
        %v337 = vld [vmem:[%s240] sm:$0xf]
        %339 = vrot.lane.b32.xlu0 %v337, 27
        %v340 = vpop.permute.xlu0 %339
        %vm342 = vcmask 872152
        %343 = vst.msk [vmem:[#allocation2] sm:$0xf] %vm342, %v340
        %344 = vrot.lane.b32.xlu0 %v337, 25
        %v345 = vpop.permute.xlu0 %344
        %vm347 = vcmask 741072
        %348 = vst.msk [vmem:[#allocation2] sm:$0xf] %vm347, %v345
        %349 = vrot.lane.b32.xlu0 %v337, 29
        %v350 = vpop.permute.xlu0 %349
        %vm352 = vcmask 880472
        %353 = vst.msk [vmem:[#allocation2] sm:$0xf] %vm352, %v350
        %v354 = vld [vmem:[%s240] sm:$0xf]
        %356 = vrot.lane.b32.xlu0 %v354, 29
        %v357 = vpop.permute.xlu0 %356
        %vm359 = vcmask 1019752
        %360 = vst.msk [vmem:[#allocation2] sm:$0xf] %vm359, %v357
        %361 = vrot.lane.b32.xlu0 %v354, 27
        %v362 = vpop.permute.xlu0 %361
        %vm364 = vcmask 888672
        %365 = vst.msk [vmem:[#allocation2] sm:$0xf] %vm364, %v362
        %366 = vrot.lane.b32.xlu0 %v354, 31
        %v367 = vpop.permute.xlu0 %366
        %vm369 = vcmask 1028072
        %370 = vst.msk [vmem:[#allocation2] sm:$0xf] %vm369, %v367
        %v371 = vld [vmem:[%s240] sm:$0xf]
        %373 = vrot.lane.b32.xlu0 %v371, 31
        %v374 = vpop.permute.xlu0 %373
        %v375 = vrot.slane %v374, 4
        %vm376 = vcmask 252928
        %v377 = vsel %vm376, %v375, %v374
        %vm379 = vcmask 1044472
        %vm380 = vcmask 121860
        %vm381 = vmor %vm380, %vm379
        %382 = vst.msk [vmem:[#allocation2] sm:$0xff] %vm381, %v377
        %383 = vrot.lane.b32.xlu0 %v371, 29
        %v384 = vpop.permute.xlu0 %383
        %vm386 = vcmask 1036272
        %387 = vst.msk [vmem:[#allocation2] sm:$0xf] %vm386, %v384
        %388 = vrot.lane.b32.xlu0 %v371, 33
        %v389 = vpop.permute.xlu0 %388
        %vm391 = vcmask 126072
        %392 = vst.msk [vmem:[#allocation2 + $0x4] sm:$0xf] %vm391, %v389
        %v393 = vld [vmem:[%s240] sm:$0xf]
        %395 = vrot.lane.b32.xlu0 %v393, 33
        %v396 = vpop.permute.xlu0 %395
        %vm398 = vcmask 265352
        %399 = vst.msk [vmem:[#allocation2 + $0x4] sm:$0xf] %vm398, %v396
        %400 = vrot.lane.b32.xlu0 %v393, 31
        %v401 = vpop.permute.xlu0 %400
        %vm403 = vcmask 134272
        %404 = vst.msk [vmem:[#allocation2 + $0x4] sm:$0xf] %vm403, %v401
        %405 = vrot.lane.b32.xlu0 %v393, 35
        %v406 = vpop.permute.xlu0 %405
        %vm408 = vcmask 273672
        %409 = vst.msk [vmem:[#allocation2 + $0x4] sm:$0xf] %vm408, %v406
        %v410 = vld [vmem:[%s240 + $0x4] sm:$0xf]
        %412 = vrot.lane.b32.xlu0 %v410, 35
        %v413 = vpop.permute.xlu0 %412
        %vm415 = vcmask 412952
        %416 = vst.msk [vmem:[#allocation2 + $0x4] sm:$0xf] %vm415, %v413
        %417 = vrot.lane.b32.xlu0 %v410, 33
        %v418 = vpop.permute.xlu0 %417
        %vm420 = vcmask 281872
        %421 = vst.msk [vmem:[#allocation2 + $0x4] sm:$0xf] %vm420, %v418
        %422 = vrot.lane.b32.xlu0 %v410, 37
        %v423 = vpop.permute.xlu0 %422
        %vm425 = vcmask 421272
        %426 = vst.msk [vmem:[#allocation2 + $0x4] sm:$0xf] %vm425, %v423
        %v427 = vld [vmem:[%s240 + $0x4] sm:$0xf]
        %429 = vrot.lane.b32.xlu0 %v427, 37
        %v430 = vpop.permute.xlu0 %429
        %vm432 = vcmask 560552
        %433 = vst.msk [vmem:[#allocation2 + $0x4] sm:$0xf] %vm432, %v430
        %434 = vrot.lane.b32.xlu0 %v427, 35
        %v435 = vpop.permute.xlu0 %434
        %vm437 = vcmask 429472
        %438 = vst.msk [vmem:[#allocation2 + $0x4] sm:$0xf] %vm437, %v435
        %439 = vrot.lane.b32.xlu0 %v427, 39
        %v440 = vpop.permute.xlu0 %439
        %vm442 = vcmask 568872
        %443 = vst.msk [vmem:[#allocation2 + $0x4] sm:$0xf] %vm442, %v440
        %v444 = vld [vmem:[%s240 + $0x4] sm:$0xf]
        %446 = vrot.lane.b32.xlu0 %v444, 39
        %v447 = vpop.permute.xlu0 %446
        %vm449 = vcmask 708152
        %450 = vst.msk [vmem:[#allocation2 + $0x4] sm:$0xf] %vm449, %v447
        %451 = vrot.lane.b32.xlu0 %v444, 37
        %v452 = vpop.permute.xlu0 %451
        %vm454 = vcmask 577072
        %455 = vst.msk [vmem:[#allocation2 + $0x4] sm:$0xf] %vm454, %v452
        %456 = vrot.lane.b32.xlu0 %v444, 41
        %v457 = vpop.permute.xlu0 %456
        %vm459 = vcmask 716472
        %460 = vst.msk [vmem:[#allocation2 + $0x4] sm:$0xf] %vm459, %v457
        %v461 = vld [vmem:[%s240 + $0x4] sm:$0xf]
        %463 = vrot.lane.b32.xlu0 %v461, 41
        %v464 = vpop.permute.xlu0 %463
        %vm466 = vcmask 855752
        %467 = vst.msk [vmem:[#allocation2 + $0x4] sm:$0xf] %vm466, %v464
        %468 = vrot.lane.b32.xlu0 %v461, 39
        %v469 = vpop.permute.xlu0 %468
        %vm471 = vcmask 724672
        %472 = vst.msk [vmem:[#allocation2 + $0x4] sm:$0xf] %vm471, %v469
        %473 = vrot.lane.b32.xlu0 %v461, 43
        %v474 = vpop.permute.xlu0 %473
        %vm476 = vcmask 864072
        %477 = vst.msk [vmem:[#allocation2 + $0x4] sm:$0xf] %vm476, %v474
        %v478 = vld [vmem:[%s240 + $0x4] sm:$0xf]
        %480 = vrot.lane.b32.xlu0 %v478, 43
        %v481 = vpop.permute.xlu0 %480
        %vm483 = vcmask 1003352
        %484 = vst.msk [vmem:[#allocation2 + $0x4] sm:$0xf] %vm483, %v481
        %485 = vrot.lane.b32.xlu0 %v478, 41
        %v486 = vpop.permute.xlu0 %485
        %vm488 = vcmask 872272
        %489 = vst.msk [vmem:[#allocation2 + $0x4] sm:$0xf] %vm488, %v486
        %490 = vrot.lane.b32.xlu0 %v478, 45
        %v491 = vpop.permute.xlu0 %490
        %vm493 = vcmask 1011672
        %494 = vst.msk [vmem:[#allocation2 + $0x4] sm:$0xf] %vm493, %v491
        %v495 = vld [vmem:[%s240 + $0x4] sm:$0xf]
        %497 = vrot.lane.b32.xlu0 %v495, 45
        %v498 = vpop.permute.xlu0 %497
        %v499 = vrot.slane %v498, 4
        %vm500 = vcmask 367616
        %v501 = vsel %vm500, %v499, %v498
        %vm503 = vcmask 1044456
        %vm504 = vcmask 105476
        %vm505 = vmor %vm504, %vm503
        %506 = vst.msk [vmem:[#allocation2 + $0x4] sm:$0xff] %vm505, %v501
        %507 = vrot.lane.b32.xlu0 %v495, 43
        %v508 = vpop.permute.xlu0 %507
        %vm510 = vcmask 1019872
        %511 = vst.msk [vmem:[#allocation2 + $0x4] sm:$0xf] %vm510, %v508
        %512 = vrot.lane.b32.xlu0 %v495, 47
        %v513 = vpop.permute.xlu0 %512
        %vm515 = vcmask 109672
        %516 = vst.msk [vmem:[#allocation2 + $0x8] sm:$0xf] %vm515, %v513
        %v517 = vld [vmem:[%s240 + $0x4] sm:$0xf]
        %519 = vrot.lane.b32.xlu0 %v517, 47
        %v520 = vpop.permute.xlu0 %519
        %vm522 = vcmask 248952
        %523 = vst.msk [vmem:[#allocation2 + $0x8] sm:$0xf] %vm522, %v520
        %524 = vrot.lane.b32.xlu0 %v517, 45
        %v525 = vpop.permute.xlu0 %524
        %vm527 = vcmask 117872
        %528 = vst.msk [vmem:[#allocation2 + $0x8] sm:$0xf] %vm527, %v525
        %529 = vrot.lane.b32.xlu0 %v517, 49
        %v530 = vpop.permute.xlu0 %529
        %vm532 = vcmask 257272
        %533 = vst.msk [vmem:[#allocation2 + $0x8] sm:$0xf] %vm532, %v530
        %v534 = vld [vmem:[%s240 + $0x4] sm:$0xf]
        %536 = vrot.lane.b32.xlu0 %v534, 49
        %v537 = vpop.permute.xlu0 %536
        %vm539 = vcmask 396552
        %540 = vst.msk [vmem:[#allocation2 + $0x8] sm:$0xf] %vm539, %v537
        %541 = vrot.lane.b32.xlu0 %v534, 47
        %v542 = vpop.permute.xlu0 %541
        %vm544 = vcmask 265472
        %545 = vst.msk [vmem:[#allocation2 + $0x8] sm:$0xf] %vm544, %v542
        %546 = vrot.lane.b32.xlu0 %v534, 51
        %v547 = vpop.permute.xlu0 %546
        %vm549 = vcmask 404872
        %550 = vst.msk [vmem:[#allocation2 + $0x8] sm:$0xf] %vm549, %v547
        %v551 = vld [vmem:[%s240] sm:$0xf]
        %553 = vrot.lane.b32.xlu0 %v551, 113
        %v554 = vpop.permute.xlu0 %553
        %vm556 = vcmask 134152
        %557 = vst.msk [vmem:[#allocation2] sm:$0xf] %vm556, %v554
        %558 = vrot.lane.b32.xlu0 %v551, 111
        %v559 = vpop.permute.xlu0 %558
        %vm561 = vcmask 3072
        %562 = vst.msk [vmem:[#allocation2] sm:$0xf] %vm561, %v559
        %563 = vrot.lane.b32.xlu0 %v551, 115
        %v564 = vpop.permute.xlu0 %563
        %vm566 = vcmask 142472
        %567 = vst.msk [vmem:[#allocation2] sm:$0xf] %vm566, %v564
        %v568 = vld [vmem:[%s240 + $0x4] sm:$0xf]
        %570 = vrot.lane.b32.xlu0 %v568, 83
        %v571 = vpop.permute.xlu0 %570
        %vm573 = vcmask 544152
        %574 = vst.msk [vmem:[#allocation2 + $0x8] sm:$0xf] %vm573, %v571
        %575 = vrot.lane.b32.xlu0 %v568, 81
        %v576 = vpop.permute.xlu0 %575
        %vm578 = vcmask 413072
        %579 = vst.msk [vmem:[#allocation2 + $0x8] sm:$0xf] %vm578, %v576
        %580 = vrot.lane.b32.xlu0 %v568, 85
        %v581 = vpop.permute.xlu0 %580
        %vm583 = vcmask 552472
        %584 = vst.msk [vmem:[#allocation2 + $0x8] sm:$0xf] %vm583, %v581
        %v585 = vld [vmem:[#allocation2] sm:$0xff]
        %v586 = vld [vmem:[#allocation2 + $0x8] sm:$0xf]
        %v588 = vcombine.high %v585, %v585
        %590 = vst [vmem:[#allocation3] sm:$0xf] %v585
        %591 = vst [vmem:[#allocation3 + $0x8] sm:$0xf] %v588
        %vm592 = vcmask 240640
        %593 = vst.msk [vmem:[#allocation3 + $0x10] sm:$0xf] %vm592, %v586
        %v594 = vld [vmem:[#allocation2] sm:$0xff]
        %v595 = vld [vmem:[#allocation2 + $0x8] sm:$0xf]
        %v598 = vcombine.low %v594, %v594
        %v599 = vcombine.low %v595, %v595
        %600 = vrot.lane.b32.xlu0 %v598, 127
        %v601 = vpop.permute.xlu0 %600
        %602 = vrot.lane.b32.xlu0 %v594, 127
        %v603 = vpop.permute.xlu0 %602
        %604 = vrot.lane.b32.xlu0 %v599, 127
        %v605 = vpop.permute.xlu0 %604
        %vm606 = vcmask 1039360
        %v607 = vsel %vm606, %v601, %v603
        %v608 = vsel %vm606, %v603, %v605
        %612 = vst [vmem:[#allocation3] sm:$0xf0] %v607
        %613 = vst [vmem:[#allocation3 + $0x8] sm:$0xf0] %v608
        %vm614 = vcmask 244740
        %615 = vst.msk [vmem:[#allocation3 + $0x10] sm:$0xf0] %vm614, %v605
        %v616 = vld [vmem:[#allocation2] sm:$0xff]
        %v617 = vld [vmem:[#allocation2 + $0x8] sm:$0xf]
        %v620 = vcombine.high %v616, %v616
        %621 = vrot.lane.b32.xlu0 %v616, 126
        %v622 = vpop.permute.xlu0 %621
        %623 = vrot.lane.b32.xlu0 %v620, 126
        %v624 = vpop.permute.xlu0 %623
        %625 = vrot.lane.b32.xlu0 %v617, 126
        %v626 = vpop.permute.xlu0 %625
        %vm627 = vcmask 1031168
        %v628 = vsel %vm627, %v622, %v624
        %v629 = vsel %vm627, %v624, %v626
        %633 = vst [vmem:[#allocation3 + $0x18] sm:$0xf] %v628
        %634 = vst [vmem:[#allocation3 + $0x20] sm:$0xf] %v629
        %635 = vst.msk [vmem:[#allocation3 + $0x28] sm:$0xf] %vm592, %v626
        %v636 = vld [vmem:[#allocation2] sm:$0xff]
        %v637 = vld [vmem:[#allocation2 + $0x8] sm:$0xf]
        %v640 = vcombine.low %v636, %v636
        %v641 = vcombine.low %v637, %v637
        %642 = vrot.lane.b32.xlu0 %v640, 110
        %v643 = vpop.permute.xlu0 %642
        %644 = vrot.lane.b32.xlu0 %v636, 110
        %v645 = vpop.permute.xlu0 %644
        %646 = vrot.lane.b32.xlu0 %v641, 110
        %v647 = vpop.permute.xlu0 %646
        %vm648 = vcmask 900096
        %v649 = vsel %vm648, %v643, %v645
        %v650 = vsel %vm648, %v645, %v647
        %654 = vst [vmem:[#allocation3 + $0x18] sm:$0xf0] %v649
        %655 = vst [vmem:[#allocation3 + $0x20] sm:$0xf0] %v650
        %656 = vst.msk [vmem:[#allocation3 + $0x28] sm:$0xf0] %vm614, %v647
        %v657 = vld [vmem:[#allocation2] sm:$0xff]
        %v658 = vld [vmem:[#allocation2 + $0x8] sm:$0xf]
        %v661 = vcombine.high %v657, %v657
        %662 = vrot.lane.b32.xlu0 %v657, 109
        %v663 = vpop.permute.xlu0 %662
        %664 = vrot.lane.b32.xlu0 %v661, 109
        %v665 = vpop.permute.xlu0 %664
        %666 = vrot.lane.b32.xlu0 %v658, 109
        %v667 = vpop.permute.xlu0 %666
        %vm668 = vcmask 891904
        %v669 = vsel %vm668, %v663, %v665
        %v670 = vsel %vm668, %v665, %v667
        %674 = vst [vmem:[#allocation3 + $0x30] sm:$0xf] %v669
        %675 = vst [vmem:[#allocation3 + $0x38] sm:$0xf] %v670
        %676 = vst.msk [vmem:[#allocation3 + $0x40] sm:$0xf] %vm592, %v667
        %v677 = vld [vmem:[#allocation2] sm:$0xff]
        %v678 = vld [vmem:[#allocation2 + $0x8] sm:$0xf]
        %v681 = vcombine.low %v677, %v677
        %v682 = vcombine.low %v678, %v678
        %683 = vrot.lane.b32.xlu0 %v681, 108
        %v684 = vpop.permute.xlu0 %683
        %685 = vrot.lane.b32.xlu0 %v677, 108
        %v686 = vpop.permute.xlu0 %685
        %687 = vrot.lane.b32.xlu0 %v682, 108
        %v688 = vpop.permute.xlu0 %687
        %vm689 = vcmask 883712
        %v690 = vsel %vm689, %v684, %v686
        %v691 = vsel %vm689, %v686, %v688
        %695 = vst [vmem:[#allocation3 + $0x30] sm:$0xf0] %v690
        %696 = vst [vmem:[#allocation3 + $0x38] sm:$0xf0] %v691
        %697 = vst.msk [vmem:[#allocation3 + $0x40] sm:$0xf0] %vm614, %v688
        %v698 = vld [vmem:[#allocation2] sm:$0xff]
        %v699 = vld [vmem:[#allocation2 + $0x8] sm:$0xf]
        %v702 = vcombine.high %v698, %v698
        %703 = vrot.lane.b32.xlu0 %v698, 92
        %v704 = vpop.permute.xlu0 %703
        %705 = vrot.lane.b32.xlu0 %v702, 92
        %v706 = vpop.permute.xlu0 %705
        %707 = vrot.lane.b32.xlu0 %v699, 92
        %v708 = vpop.permute.xlu0 %707
        %vm709 = vcmask 752640
        %v710 = vsel %vm709, %v704, %v706
        %v711 = vsel %vm709, %v706, %v708
        %715 = vst [vmem:[#allocation3 + $0x48] sm:$0xf] %v710
        %716 = vst [vmem:[#allocation3 + $0x50] sm:$0xf] %v711
        %717 = vst.msk [vmem:[#allocation3 + $0x58] sm:$0xf] %vm592, %v708
        %v718 = vld [vmem:[#allocation2] sm:$0xff]
        %v719 = vld [vmem:[#allocation2 + $0x8] sm:$0xf]
        %v722 = vcombine.low %v718, %v718
        %v723 = vcombine.low %v719, %v719
        %724 = vrot.lane.b32.xlu0 %v722, 91
        %v725 = vpop.permute.xlu0 %724
        %726 = vrot.lane.b32.xlu0 %v718, 91
        %v727 = vpop.permute.xlu0 %726
        %728 = vrot.lane.b32.xlu0 %v723, 91
        %v729 = vpop.permute.xlu0 %728
        %vm730 = vcmask 744448
        %v731 = vsel %vm730, %v725, %v727
        %v732 = vsel %vm730, %v727, %v729
        %736 = vst [vmem:[#allocation3 + $0x48] sm:$0xf0] %v731
        %737 = vst [vmem:[#allocation3 + $0x50] sm:$0xf0] %v732
        %738 = vst.msk [vmem:[#allocation3 + $0x58] sm:$0xf0] %vm614, %v729
        %v739 = vld [vmem:[#allocation2] sm:$0xff]
        %v740 = vld [vmem:[#allocation2 + $0x8] sm:$0xf]
        %v743 = vcombine.high %v739, %v739
        %744 = vrot.lane.b32.xlu0 %v739, 90
        %v745 = vpop.permute.xlu0 %744
        %746 = vrot.lane.b32.xlu0 %v743, 90
        %v747 = vpop.permute.xlu0 %746
        %748 = vrot.lane.b32.xlu0 %v740, 90
        %v749 = vpop.permute.xlu0 %748
        %vm750 = vcmask 736256
        %v751 = vsel %vm750, %v745, %v747
        %v752 = vsel %vm750, %v747, %v749
        %756 = vst [vmem:[#allocation3 + $0x60] sm:$0xf] %v751
        %757 = vst [vmem:[#allocation3 + $0x68] sm:$0xf] %v752
        %758 = vst.msk [vmem:[#allocation3 + $0x70] sm:$0xf] %vm592, %v749
        %v759 = vld [vmem:[%s1] sm:$0xf]
        %v760 = vld [vmem:[#allocation3] sm:$0xff]
        %v761 = vld [vmem:[#allocation3 + $0x8] sm:$0xff]
        %v762 = vld [vmem:[#allocation3 + $0x10] sm:$0xff]
        %v763 = vld [vmem:[#allocation3 + $0x18] sm:$0xff]
        %v764 = vld [vmem:[#allocation3 + $0x20] sm:$0xff]
        %v765 = vld [vmem:[#allocation3 + $0x28] sm:$0xff]
        %v766 = vld [vmem:[#allocation3 + $0x30] sm:$0xff]
        %v767 = vld [vmem:[#allocation3 + $0x38] sm:$0xff]
        %v768 = vld [vmem:[#allocation3 + $0x40] sm:$0xff]
        %v769 = vld [vmem:[#allocation3 + $0x48] sm:$0xff]
        %v770 = vld [vmem:[#allocation3 + $0x50] sm:$0xff]
        %v771 = vld [vmem:[#allocation3 + $0x58] sm:$0xff]
        %v772 = vld [vmem:[#allocation3 + $0x60] sm:$0xf]
        %v773 = vld [vmem:[#allocation3 + $0x68] sm:$0xf]
        %v774 = vld [vmem:[#allocation3 + $0x70] sm:$0xf]
        %v775 = vld [vmem:[%s2] sm:$0xf]
        %777 = vset.pattern.permute.xlu0 0
        %778 = vperm.xlu0 %777, %v775
        %v779 = vpop.permute.xlu0 %778
        %vm781 = vcmask 293888
        %v783 = vsel %vm781, %v759, 0
        %vm785 = vcmask 1043456
        %v787 = vsel %vm785, %v772, 0
        %v790 = vsel %vm785, %v773, 0
        %v793 = vsel %vm785, %v774, 0
        %795 = vmatprep.subr.mxu0 %v761
        %796 = vmatpush1.msra.mxu0 %v760
        %797 = vmatprep.subr.mxu0 %v764
        %798 = vmatpush1.msra.mxu0 %v763
        %799 = vmatprep.subr.mxu0 %v767
        %800 = vmatpush1.msra.mxu0 %v766
        %801 = vmatprep.subr.mxu0 %v770
        %802 = vmatpush1.msra.mxu0 %v769
        %803 = vmatprep.subr.mxu0 %v790
        %804 = vmatpush1.msra.mxu0 %v787
        %805 = vmatprep.subr.mxu0 0.0
        %806 = vmatpush1.msra.mxu0 0.0
        %807 = vmatprep.subr.mxu0 0.0
        %808 = vmatpush1.msra.mxu0 0.0
        %809 = vmatprep.subr.mxu0 0.0
        %810 = vmatpush1.msra.mxu0 0.0
        %811 = vmatprep.subr.mxu0 0.0
        %812 = vmatpush1.msra.mxu0 0.0
        %813 = vmatprep.subr.mxu0 0.0
        %814 = vmatpush1.msra.mxu0 0.0
        %815 = vmatprep.subr.mxu0 0.0
        %816 = vmatpush1.msra.mxu0 0.0
        %817 = vmatprep.subr.mxu0 0.0
        %818 = vmatpush1.msra.mxu0 0.0
        %819 = vmatprep.subr.mxu0 0.0
        %820 = vmatpush1.msra.mxu0 0.0
        %821 = vmatprep.subr.mxu0 0.0
        %822 = vmatpush1.msra.mxu0 0.0
        %823 = vmatprep.subr.mxu0 0.0
        %824 = vmatpush1.msra.mxu0 0.0
        %825 = vmatprep.subr.mxu0 0.0
        %826 = vmatpush1.msra.mxu0 0.0
        %827 = vmatprep.subr.mxu0 0.0
        %828 = vmatpush1.msra.mxu0 0.0
        %829 = vmatprep.subr.mxu0 0.0
        %830 = vmatpush1.msra.mxu0 0.0
        %831 = vmatprep.subr.mxu0 0.0
        %832 = vmatpush1.msra.mxu0 0.0
        %833 = vmatprep.subr.mxu0 0.0
        %834 = vmatpush1.msra.mxu0 0.0
        %835 = vmatprep.subr.mxu0 0.0
        %836 = vmatpush1.msra.mxu0 0.0
        %837 = vmatprep.subr.mxu0 0.0
        %838 = vmatpush1.msra.mxu0 0.0
        %839 = vmatprep.subr.mxu0 0.0
        %840 = vmatpush1.msra.mxu0 0.0
        %841 = vmatprep.subr.mxu0 0.0
        %842 = vmatpush1.msra.mxu0 0.0
        %843 = vmatprep.subr.mxu0 0.0
        %844 = vmatpush1.msra.mxu0 0.0
        %845 = vmatprep.subr.mxu0 0.0
        %846 = vmatpush1.msra.mxu0 0.0
        %847 = vmatprep.subr.mxu0 0.0
        %848 = vmatpush1.msra.mxu0 0.0
        %849 = vmatprep.subr.mxu0 0.0
        %850 = vmatpush1.msra.mxu0 0.0
        %851 = vmatprep.subr.mxu0 0.0
        %852 = vmatpush1.msra.mxu0 0.0
        %853 = vmatprep.subr.mxu0 0.0
        %854 = vmatpush1.msra.mxu0 0.0
        %855 = vmatprep.subr.mxu0 0.0
        %856 = vmatpush1.msra.mxu0 0.0
        %857 = vmatprep.subr.mxu0 0.0
        %858 = vmatpush1.msra.mxu0 0.0
        %859 = vmatprep.mubr.f32.mxu0 0.0
        %860 = vmatmul.mubr.f32.gmra.mrb[0].mxu0 %v783
        %v861 = vpop.f32.mrb[0].mxu0
        %v862 = vadd.f32 %v779, %v861
        %v863 = vpop.f32.mrb[0].mxu0
        %v864 = vadd.f32 %v779, %v863
        %865 = vdwg.mxu0
        %866 = vmatprep.subr.mxu0 0.0
        %867 = vmatpush1.msra.mxu0 %v762
        %868 = vmatprep.subr.mxu0 0.0
        %869 = vmatpush1.msra.mxu0 %v765
        %870 = vmatprep.subr.mxu0 0.0
        %871 = vmatpush1.msra.mxu0 %v768
        %872 = vmatprep.subr.mxu0 0.0
        %873 = vmatpush1.msra.mxu0 %v771
        %874 = vmatprep.subr.mxu0 0.0
        %875 = vmatpush1.msra.mxu0 %v793
        %876 = vmatprep.subr.mxu0 0.0
        %877 = vmatpush1.msra.mxu0 0.0
        %878 = vmatprep.subr.mxu0 0.0
        %879 = vmatpush1.msra.mxu0 0.0
        %880 = vmatprep.subr.mxu0 0.0
        %881 = vmatpush1.msra.mxu0 0.0
        %882 = vmatprep.subr.mxu0 0.0
        %883 = vmatpush1.msra.mxu0 0.0
        %884 = vmatprep.subr.mxu0 0.0
        %885 = vmatpush1.msra.mxu0 0.0
        %886 = vmatprep.subr.mxu0 0.0
        %887 = vmatpush1.msra.mxu0 0.0
        %888 = vmatprep.subr.mxu0 0.0
        %889 = vmatpush1.msra.mxu0 0.0
        %890 = vmatprep.subr.mxu0 0.0
        %891 = vmatpush1.msra.mxu0 0.0
        %892 = vmatprep.subr.mxu0 0.0
        %893 = vmatpush1.msra.mxu0 0.0
        %894 = vmatprep.subr.mxu0 0.0
        %895 = vmatpush1.msra.mxu0 0.0
        %896 = vmatprep.subr.mxu0 0.0
        %897 = vmatpush1.msra.mxu0 0.0
        %898 = vmatprep.subr.mxu0 0.0
        %899 = vmatpush1.msra.mxu0 0.0
        %900 = vmatprep.subr.mxu0 0.0
        %901 = vmatpush1.msra.mxu0 0.0
        %902 = vmatprep.subr.mxu0 0.0
        %903 = vmatpush1.msra.mxu0 0.0
        %904 = vmatprep.subr.mxu0 0.0
        %905 = vmatpush1.msra.mxu0 0.0
        %906 = vmatprep.subr.mxu0 0.0
        %907 = vmatpush1.msra.mxu0 0.0
        %908 = vmatprep.subr.mxu0 0.0
        %909 = vmatpush1.msra.mxu0 0.0
        %910 = vmatprep.subr.mxu0 0.0
        %911 = vmatpush1.msra.mxu0 0.0
        %912 = vmatprep.subr.mxu0 0.0
        %913 = vmatpush1.msra.mxu0 0.0
        %914 = vmatprep.subr.mxu0 0.0
        %915 = vmatpush1.msra.mxu0 0.0
        %916 = vmatprep.subr.mxu0 0.0
        %917 = vmatpush1.msra.mxu0 0.0
        %918 = vmatprep.subr.mxu0 0.0
        %919 = vmatpush1.msra.mxu0 0.0
        %920 = vmatprep.subr.mxu0 0.0
        %921 = vmatpush1.msra.mxu0 0.0
        %922 = vmatprep.subr.mxu0 0.0
        %923 = vmatpush1.msra.mxu0 0.0
        %924 = vmatprep.subr.mxu0 0.0
        %925 = vmatpush1.msra.mxu0 0.0
        %926 = vmatprep.subr.mxu0 0.0
        %927 = vmatpush1.msra.mxu0 0.0
        %928 = vmatprep.subr.mxu0 0.0
        %929 = vmatpush1.msra.mxu0 0.0
        %930 = vmatprep.mubr.f32.mxu0 0.0
        %931 = vmatmul.mubr.f32.gmra.mrb[0].mxu0 %v783
        %v932 = vpop.f32.mrb[0].mxu0
        %v933 = vadd.f32 %v779, %v932
        %v934 = vpop.f32.mrb[0].mxu0
        %935 = vdwg.mxu0
        %s936 = sld [smem:[#allocation4]]
        %vm937 = vcmp.gt.f32.partialorder %v862, 0.0
        %vm938 = vcmp.gt.f32.partialorder %v864, 0.0
        %vm939 = vcmp.gt.f32.partialorder %v933, 0.0
        %v940 = vstv %s936
        %v941 = vmul.f32 %v940, %v862
        %v942 = vmul.f32 %v940, %v864
        %v943 = vmul.f32 %v940, %v933
        %v944 = vsel %vm937, %v862, %v941
        %v945 = vsel %vm938, %v864, %v942
        %v946 = vsel %vm939, %v933, %v943
        %948 = vrot.lane.b32.xlu0 %v944, 19
        %v949 = vpop.permute.xlu0 %948
        %951 = vst.msk [vmem:[#allocation2] sm:$0xf] %vm274, %v949
        %952 = vrot.lane.b32.xlu0 %v944, 17
        %v953 = vpop.permute.xlu0 %952
        %955 = vst.msk [vmem:[#allocation2] sm:$0xf] %vm279, %v953
        %956 = vrot.lane.b32.xlu0 %v944, 21
        %v957 = vpop.permute.xlu0 %956
        %959 = vst.msk [vmem:[#allocation2] sm:$0xf] %vm284, %v957
        %960 = vst.msk [vmem:[#allocation2] sm:$0xf] %vm291, %v949
        %961 = vst.msk [vmem:[#allocation2] sm:$0xf] %vm296, %v953
        %962 = vst.msk [vmem:[#allocation2] sm:$0xf] %vm301, %v957
        %963 = vst.msk [vmem:[#allocation2] sm:$0xf] %vm308, %v949
        %964 = vst.msk [vmem:[#allocation2] sm:$0xf] %vm313, %v953
        %965 = vst.msk [vmem:[#allocation2] sm:$0xf] %vm318, %v957
        %966 = vst.msk [vmem:[#allocation2] sm:$0xf] %vm325, %v949
        %967 = vst.msk [vmem:[#allocation2] sm:$0xf] %vm330, %v953
        %968 = vst.msk [vmem:[#allocation2] sm:$0xf] %vm335, %v957
        %969 = vst.msk [vmem:[#allocation2] sm:$0xf] %vm342, %v949
        %970 = vst.msk [vmem:[#allocation2] sm:$0xf] %vm347, %v953
        %971 = vst.msk [vmem:[#allocation2] sm:$0xf] %vm352, %v957
        %972 = vst.msk [vmem:[#allocation2] sm:$0xf] %vm359, %v949
        %973 = vst.msk [vmem:[#allocation2] sm:$0xf] %vm364, %v953
        %974 = vst.msk [vmem:[#allocation2] sm:$0xf] %vm369, %v957
        %v975 = vrot.slane %v949, 4
        %vm976 = vcmask 154624
        %v977 = vsel %vm976, %v975, %v949
        %979 = vst.msk [vmem:[#allocation2] sm:$0xff] %vm381, %v977
        %980 = vst.msk [vmem:[#allocation2] sm:$0xf] %vm386, %v953
        %981 = vst.msk [vmem:[#allocation2 + $0x4] sm:$0xf] %vm391, %v957
        %v983 = vcombine.low %v944, %v945
        %984 = vrot.lane.b32.xlu0 %v983, 19
        %v985 = vpop.permute.xlu0 %984
        %v986 = vrot.slane %v985, 4
        %v987 = vsel %vm976, %v985, %v986
        %989 = vst.msk [vmem:[#allocation2 + $0x4] sm:$0xf] %vm398, %v987
        %990 = vst.msk [vmem:[#allocation2 + $0x4] sm:$0xf] %vm403, %v953
        %991 = vrot.lane.b32.xlu0 %v945, 21
        %v992 = vpop.permute.xlu0 %991
        %994 = vst.msk [vmem:[#allocation2 + $0x4] sm:$0xf] %vm408, %v992
        %995 = vrot.lane.b32.xlu0 %v945, 19
        %v996 = vpop.permute.xlu0 %995
        %998 = vst.msk [vmem:[#allocation2 + $0x4] sm:$0xf] %vm415, %v996
        %999 = vrot.lane.b32.xlu0 %v945, 17
        %v1000 = vpop.permute.xlu0 %999
        %1002 = vst.msk [vmem:[#allocation2 + $0x4] sm:$0xf] %vm420, %v1000
        %1003 = vst.msk [vmem:[#allocation2 + $0x4] sm:$0xf] %vm425, %v992
        %1004 = vst.msk [vmem:[#allocation2 + $0x4] sm:$0xf] %vm432, %v996
        %1005 = vst.msk [vmem:[#allocation2 + $0x4] sm:$0xf] %vm437, %v1000
        %1006 = vst.msk [vmem:[#allocation2 + $0x4] sm:$0xf] %vm442, %v992
        %1007 = vst.msk [vmem:[#allocation2 + $0x4] sm:$0xf] %vm449, %v996
        %1008 = vst.msk [vmem:[#allocation2 + $0x4] sm:$0xf] %vm454, %v1000
        %1009 = vst.msk [vmem:[#allocation2 + $0x4] sm:$0xf] %vm459, %v992
        %1010 = vst.msk [vmem:[#allocation2 + $0x4] sm:$0xf] %vm466, %v996
        %1011 = vst.msk [vmem:[#allocation2 + $0x4] sm:$0xf] %vm471, %v1000
        %1012 = vst.msk [vmem:[#allocation2 + $0x4] sm:$0xf] %vm476, %v992
        %1013 = vst.msk [vmem:[#allocation2 + $0x4] sm:$0xf] %vm483, %v996
        %1014 = vst.msk [vmem:[#allocation2 + $0x4] sm:$0xf] %vm488, %v1000
        %1015 = vst.msk [vmem:[#allocation2 + $0x4] sm:$0xf] %vm493, %v992
        %v1016 = vrot.slane %v996, 4
        %v1017 = vsel %vm976, %v1016, %v996
        %1019 = vst.msk [vmem:[#allocation2 + $0x4] sm:$0xff] %vm505, %v1017
        %1020 = vst.msk [vmem:[#allocation2 + $0x4] sm:$0xf] %vm510, %v1000
        %1021 = vst.msk [vmem:[#allocation2 + $0x8] sm:$0xf] %vm515, %v992
        %v1023 = vcombine.low %v945, %v946
        %1024 = vrot.lane.b32.xlu0 %v1023, 19
        %v1025 = vpop.permute.xlu0 %1024
        %v1026 = vrot.slane %v1025, 4
        %v1027 = vsel %vm976, %v1025, %v1026
        %1029 = vst.msk [vmem:[#allocation2 + $0x8] sm:$0xf] %vm522, %v1027
        %1030 = vst.msk [vmem:[#allocation2 + $0x8] sm:$0xf] %vm527, %v1000
        %1031 = vrot.lane.b32.xlu0 %v946, 21
        %v1032 = vpop.permute.xlu0 %1031
        %1034 = vst.msk [vmem:[#allocation2 + $0x8] sm:$0xf] %vm532, %v1032
        %1035 = vrot.lane.b32.xlu0 %v946, 19
        %v1036 = vpop.permute.xlu0 %1035
        %1038 = vst.msk [vmem:[#allocation2 + $0x8] sm:$0xf] %vm539, %v1036
        %1039 = vrot.lane.b32.xlu0 %v946, 17
        %v1040 = vpop.permute.xlu0 %1039
        %1042 = vst.msk [vmem:[#allocation2 + $0x8] sm:$0xf] %vm544, %v1040
        %1043 = vst.msk [vmem:[#allocation2 + $0x8] sm:$0xf] %vm549, %v1032
        %1044 = vrot.lane.b32.xlu0 %v944, 111
        %v1045 = vpop.permute.xlu0 %1044
        %1047 = vst.msk [vmem:[#allocation2] sm:$0xf] %vm556, %v1045
        %1048 = vrot.lane.b32.xlu0 %v944, 109
        %v1049 = vpop.permute.xlu0 %1048
        %1051 = vst.msk [vmem:[#allocation2] sm:$0xf] %vm561, %v1049
        %1052 = vrot.lane.b32.xlu0 %v944, 113
        %v1053 = vpop.permute.xlu0 %1052
        %1055 = vst.msk [vmem:[#allocation2] sm:$0xf] %vm566, %v1053
        %1056 = vrot.lane.b32.xlu0 %v1023, 55
        %v1057 = vpop.permute.xlu0 %1056
        %v1058 = vrot.slane %v1057, 4
        %vm1059 = vcmask 449536
        %v1060 = vsel %vm1059, %v1057, %v1058
        %1062 = vst.msk [vmem:[#allocation2 + $0x8] sm:$0xf] %vm573, %v1060
        %1063 = vrot.lane.b32.xlu0 %v945, 53
        %v1064 = vpop.permute.xlu0 %1063
        %1066 = vst.msk [vmem:[#allocation2 + $0x8] sm:$0xf] %vm578, %v1064
        %1067 = vrot.lane.b32.xlu0 %v946, 57
        %v1068 = vpop.permute.xlu0 %1067
        %1070 = vst.msk [vmem:[#allocation2 + $0x8] sm:$0xf] %vm583, %v1068
        %v1071 = vld [vmem:[#allocation2] sm:$0xff]
        %v1072 = vld [vmem:[#allocation2 + $0x8] sm:$0xf]
        %v1074 = vcombine.high %v1071, %v1071
        %1076 = vst [vmem:[#allocation3] sm:$0xf] %v1071
        %1077 = vst [vmem:[#allocation3 + $0x8] sm:$0xf] %v1074
        %1078 = vst.msk [vmem:[#allocation3 + $0x10] sm:$0xf] %vm592, %v1072
        %v1079 = vld [vmem:[#allocation2] sm:$0xff]
        %v1080 = vld [vmem:[#allocation2 + $0x8] sm:$0xf]
        %v1083 = vcombine.low %v1079, %v1079
        %v1084 = vcombine.low %v1080, %v1080
        %1085 = vrot.lane.b32.xlu0 %v1083, 127
        %v1086 = vpop.permute.xlu0 %1085
        %1087 = vrot.lane.b32.xlu0 %v1079, 127
        %v1088 = vpop.permute.xlu0 %1087
        %1089 = vrot.lane.b32.xlu0 %v1084, 127
        %v1090 = vpop.permute.xlu0 %1089
        %v1091 = vsel %vm606, %v1086, %v1088
        %v1092 = vsel %vm606, %v1088, %v1090
        %1096 = vst [vmem:[#allocation3] sm:$0xf0] %v1091
        %1097 = vst [vmem:[#allocation3 + $0x8] sm:$0xf0] %v1092
        %1098 = vst.msk [vmem:[#allocation3 + $0x10] sm:$0xf0] %vm614, %v1090
        %v1099 = vld [vmem:[#allocation2] sm:$0xff]
        %v1100 = vld [vmem:[#allocation2 + $0x8] sm:$0xf]
        %v1103 = vcombine.high %v1099, %v1099
        %1104 = vrot.lane.b32.xlu0 %v1099, 126
        %v1105 = vpop.permute.xlu0 %1104
        %1106 = vrot.lane.b32.xlu0 %v1103, 126
        %v1107 = vpop.permute.xlu0 %1106
        %1108 = vrot.lane.b32.xlu0 %v1100, 126
        %v1109 = vpop.permute.xlu0 %1108
        %v1110 = vsel %vm627, %v1105, %v1107
        %v1111 = vsel %vm627, %v1107, %v1109
        %1115 = vst [vmem:[#allocation3 + $0x18] sm:$0xf] %v1110
        %1116 = vst [vmem:[#allocation3 + $0x20] sm:$0xf] %v1111
        %1117 = vst.msk [vmem:[#allocation3 + $0x28] sm:$0xf] %vm592, %v1109
        %v1118 = vld [vmem:[#allocation2] sm:$0xff]
        %v1119 = vld [vmem:[#allocation2 + $0x8] sm:$0xf]
        %v1122 = vcombine.low %v1118, %v1118
        %v1123 = vcombine.low %v1119, %v1119
        %1124 = vrot.lane.b32.xlu0 %v1122, 110
        %v1125 = vpop.permute.xlu0 %1124
        %1126 = vrot.lane.b32.xlu0 %v1118, 110
        %v1127 = vpop.permute.xlu0 %1126
        %1128 = vrot.lane.b32.xlu0 %v1123, 110
        %v1129 = vpop.permute.xlu0 %1128
        %v1130 = vsel %vm648, %v1125, %v1127
        %v1131 = vsel %vm648, %v1127, %v1129
        %1135 = vst [vmem:[#allocation3 + $0x18] sm:$0xf0] %v1130
        %1136 = vst [vmem:[#allocation3 + $0x20] sm:$0xf0] %v1131
        %1137 = vst.msk [vmem:[#allocation3 + $0x28] sm:$0xf0] %vm614, %v1129
        %v1138 = vld [vmem:[#allocation2] sm:$0xff]
        %v1139 = vld [vmem:[#allocation2 + $0x8] sm:$0xf]
        %v1142 = vcombine.high %v1138, %v1138
        %1143 = vrot.lane.b32.xlu0 %v1138, 109
        %v1144 = vpop.permute.xlu0 %1143
        %1145 = vrot.lane.b32.xlu0 %v1142, 109
        %v1146 = vpop.permute.xlu0 %1145
        %1147 = vrot.lane.b32.xlu0 %v1139, 109
        %v1148 = vpop.permute.xlu0 %1147
        %v1149 = vsel %vm668, %v1144, %v1146
        %v1150 = vsel %vm668, %v1146, %v1148
        %1154 = vst [vmem:[#allocation3 + $0x30] sm:$0xf] %v1149
        %1155 = vst [vmem:[#allocation3 + $0x38] sm:$0xf] %v1150
        %1156 = vst.msk [vmem:[#allocation3 + $0x40] sm:$0xf] %vm592, %v1148
        %v1157 = vld [vmem:[#allocation2] sm:$0xff]
        %v1158 = vld [vmem:[#allocation2 + $0x8] sm:$0xf]
        %v1161 = vcombine.low %v1157, %v1157
        %v1162 = vcombine.low %v1158, %v1158
        %1163 = vrot.lane.b32.xlu0 %v1161, 108
        %v1164 = vpop.permute.xlu0 %1163
        %1165 = vrot.lane.b32.xlu0 %v1157, 108
        %v1166 = vpop.permute.xlu0 %1165
        %1167 = vrot.lane.b32.xlu0 %v1162, 108
        %v1168 = vpop.permute.xlu0 %1167
        %v1169 = vsel %vm689, %v1164, %v1166
        %v1170 = vsel %vm689, %v1166, %v1168
        %1174 = vst [vmem:[#allocation3 + $0x30] sm:$0xf0] %v1169
        %1175 = vst [vmem:[#allocation3 + $0x38] sm:$0xf0] %v1170
        %1176 = vst.msk [vmem:[#allocation3 + $0x40] sm:$0xf0] %vm614, %v1168
        %v1177 = vld [vmem:[#allocation2] sm:$0xff]
        %v1178 = vld [vmem:[#allocation2 + $0x8] sm:$0xf]
        %v1181 = vcombine.high %v1177, %v1177
        %1182 = vrot.lane.b32.xlu0 %v1177, 92
        %v1183 = vpop.permute.xlu0 %1182
        %1184 = vrot.lane.b32.xlu0 %v1181, 92
        %v1185 = vpop.permute.xlu0 %1184
        %1186 = vrot.lane.b32.xlu0 %v1178, 92
        %v1187 = vpop.permute.xlu0 %1186
        %v1188 = vsel %vm709, %v1183, %v1185
        %v1189 = vsel %vm709, %v1185, %v1187
        %1193 = vst [vmem:[#allocation3 + $0x48] sm:$0xf] %v1188
        %1194 = vst [vmem:[#allocation3 + $0x50] sm:$0xf] %v1189
        %1195 = vst.msk [vmem:[#allocation3 + $0x58] sm:$0xf] %vm592, %v1187
        %v1196 = vld [vmem:[#allocation2] sm:$0xff]
        %v1197 = vld [vmem:[#allocation2 + $0x8] sm:$0xf]
        %v1200 = vcombine.low %v1196, %v1196
        %v1201 = vcombine.low %v1197, %v1197
        %1202 = vrot.lane.b32.xlu0 %v1200, 91
        %v1203 = vpop.permute.xlu0 %1202
        %1204 = vrot.lane.b32.xlu0 %v1196, 91
        %v1205 = vpop.permute.xlu0 %1204
        %1206 = vrot.lane.b32.xlu0 %v1201, 91
        %v1207 = vpop.permute.xlu0 %1206
        %v1208 = vsel %vm730, %v1203, %v1205
        %v1209 = vsel %vm730, %v1205, %v1207
        %1213 = vst [vmem:[#allocation3 + $0x48] sm:$0xf0] %v1208
        %1214 = vst [vmem:[#allocation3 + $0x50] sm:$0xf0] %v1209
        %1215 = vst.msk [vmem:[#allocation3 + $0x58] sm:$0xf0] %vm614, %v1207
        %v1216 = vld [vmem:[#allocation2] sm:$0xff]
        %v1217 = vld [vmem:[#allocation2 + $0x8] sm:$0xf]
        %v1220 = vcombine.high %v1216, %v1216
        %1221 = vrot.lane.b32.xlu0 %v1216, 90
        %v1222 = vpop.permute.xlu0 %1221
        %1223 = vrot.lane.b32.xlu0 %v1220, 90
        %v1224 = vpop.permute.xlu0 %1223
        %1225 = vrot.lane.b32.xlu0 %v1217, 90
        %v1226 = vpop.permute.xlu0 %1225
        %v1227 = vsel %vm750, %v1222, %v1224
        %v1228 = vsel %vm750, %v1224, %v1226
        %1232 = vst [vmem:[#allocation3 + $0x60] sm:$0xf] %v1227
        %1233 = vst [vmem:[#allocation3 + $0x68] sm:$0xf] %v1228
        %1234 = vst.msk [vmem:[#allocation3 + $0x70] sm:$0xf] %vm592, %v1226
        %v1235 = vld [vmem:[%s3] sm:$0xf]
        %v1236 = vld [vmem:[#allocation3] sm:$0xff]
        %v1237 = vld [vmem:[#allocation3 + $0x8] sm:$0xff]
        %v1238 = vld [vmem:[#allocation3 + $0x10] sm:$0xff]
        %v1239 = vld [vmem:[#allocation3 + $0x18] sm:$0xff]
        %v1240 = vld [vmem:[#allocation3 + $0x20] sm:$0xff]
        %v1241 = vld [vmem:[#allocation3 + $0x28] sm:$0xff]
        %v1242 = vld [vmem:[#allocation3 + $0x30] sm:$0xff]
        %v1243 = vld [vmem:[#allocation3 + $0x38] sm:$0xff]
        %v1244 = vld [vmem:[#allocation3 + $0x40] sm:$0xff]
        %v1245 = vld [vmem:[#allocation3 + $0x48] sm:$0xff]
        %v1246 = vld [vmem:[#allocation3 + $0x50] sm:$0xff]
        %v1247 = vld [vmem:[#allocation3 + $0x58] sm:$0xff]
        %v1248 = vld [vmem:[#allocation3 + $0x60] sm:$0xf]
        %v1249 = vld [vmem:[#allocation3 + $0x68] sm:$0xf]
        %v1250 = vld [vmem:[#allocation3 + $0x70] sm:$0xf]
        %v1251 = vld [vmem:[%s4] sm:$0xf]
        %1253 = vset.pattern.permute.xlu0 0
        %1254 = vperm.xlu0 %1253, %v1251
        %v1255 = vpop.permute.xlu0 %1254
        %v1258 = vsel %vm781, %v1235, 0
        %v1261 = vsel %vm785, %v1248, 0
        %v1264 = vsel %vm785, %v1249, 0
        %v1267 = vsel %vm785, %v1250, 0
        %1269 = vmatprep.subr.mxu0 %v1237
        %1270 = vmatpush1.msra.mxu0 %v1236
        %1271 = vmatprep.subr.mxu0 %v1240
        %1272 = vmatpush1.msra.mxu0 %v1239
        %1273 = vmatprep.subr.mxu0 %v1243
        %1274 = vmatpush1.msra.mxu0 %v1242
        %1275 = vmatprep.subr.mxu0 %v1246
        %1276 = vmatpush1.msra.mxu0 %v1245
        %1277 = vmatprep.subr.mxu0 %v1264
        %1278 = vmatpush1.msra.mxu0 %v1261
        %1279 = vmatprep.subr.mxu0 0.0
        %1280 = vmatpush1.msra.mxu0 0.0
        %1281 = vmatprep.subr.mxu0 0.0
        %1282 = vmatpush1.msra.mxu0 0.0
        %1283 = vmatprep.subr.mxu0 0.0
        %1284 = vmatpush1.msra.mxu0 0.0
        %1285 = vmatprep.subr.mxu0 0.0
        %1286 = vmatpush1.msra.mxu0 0.0
        %1287 = vmatprep.subr.mxu0 0.0
        %1288 = vmatpush1.msra.mxu0 0.0
        %1289 = vmatprep.subr.mxu0 0.0
        %1290 = vmatpush1.msra.mxu0 0.0
        %1291 = vmatprep.subr.mxu0 0.0
        %1292 = vmatpush1.msra.mxu0 0.0
        %1293 = vmatprep.subr.mxu0 0.0
        %1294 = vmatpush1.msra.mxu0 0.0
        %1295 = vmatprep.subr.mxu0 0.0
        %1296 = vmatpush1.msra.mxu0 0.0
        %1297 = vmatprep.subr.mxu0 0.0
        %1298 = vmatpush1.msra.mxu0 0.0
        %1299 = vmatprep.subr.mxu0 0.0
        %1300 = vmatpush1.msra.mxu0 0.0
        %1301 = vmatprep.subr.mxu0 0.0
        %1302 = vmatpush1.msra.mxu0 0.0
        %1303 = vmatprep.subr.mxu0 0.0
        %1304 = vmatpush1.msra.mxu0 0.0
        %1305 = vmatprep.subr.mxu0 0.0
        %1306 = vmatpush1.msra.mxu0 0.0
        %1307 = vmatprep.subr.mxu0 0.0
        %1308 = vmatpush1.msra.mxu0 0.0
        %1309 = vmatprep.subr.mxu0 0.0
        %1310 = vmatpush1.msra.mxu0 0.0
        %1311 = vmatprep.subr.mxu0 0.0
        %1312 = vmatpush1.msra.mxu0 0.0
        %1313 = vmatprep.subr.mxu0 0.0
        %1314 = vmatpush1.msra.mxu0 0.0
        %1315 = vmatprep.subr.mxu0 0.0
        %1316 = vmatpush1.msra.mxu0 0.0
        %1317 = vmatprep.subr.mxu0 0.0
        %1318 = vmatpush1.msra.mxu0 0.0
        %1319 = vmatprep.subr.mxu0 0.0
        %1320 = vmatpush1.msra.mxu0 0.0
        %1321 = vmatprep.subr.mxu0 0.0
        %1322 = vmatpush1.msra.mxu0 0.0
        %1323 = vmatprep.subr.mxu0 0.0
        %1324 = vmatpush1.msra.mxu0 0.0
        %1325 = vmatprep.subr.mxu0 0.0
        %1326 = vmatpush1.msra.mxu0 0.0
        %1327 = vmatprep.subr.mxu0 0.0
        %1328 = vmatpush1.msra.mxu0 0.0
        %1329 = vmatprep.subr.mxu0 0.0
        %1330 = vmatpush1.msra.mxu0 0.0
        %1331 = vmatprep.subr.mxu0 0.0
        %1332 = vmatpush1.msra.mxu0 0.0
        %1333 = vmatprep.mubr.f32.mxu0 0.0
        %1334 = vmatmul.mubr.f32.gmra.mrb[0].mxu0 %v1258
        %v1335 = vpop.f32.mrb[0].mxu0
        %v1336 = vadd.f32 %v1255, %v1335
        %v1337 = vpop.f32.mrb[0].mxu0
        %v1338 = vadd.f32 %v1255, %v1337
        %1339 = vdwg.mxu0
        %1340 = vmatprep.subr.mxu0 0.0
        %1341 = vmatpush1.msra.mxu0 %v1238
        %1342 = vmatprep.subr.mxu0 0.0
        %1343 = vmatpush1.msra.mxu0 %v1241
        %1344 = vmatprep.subr.mxu0 0.0
        %1345 = vmatpush1.msra.mxu0 %v1244
        %1346 = vmatprep.subr.mxu0 0.0
        %1347 = vmatpush1.msra.mxu0 %v1247
        %1348 = vmatprep.subr.mxu0 0.0
        %1349 = vmatpush1.msra.mxu0 %v1267
        %1350 = vmatprep.subr.mxu0 0.0
        %1351 = vmatpush1.msra.mxu0 0.0
        %1352 = vmatprep.subr.mxu0 0.0
        %1353 = vmatpush1.msra.mxu0 0.0
        %1354 = vmatprep.subr.mxu0 0.0
        %1355 = vmatpush1.msra.mxu0 0.0
        %1356 = vmatprep.subr.mxu0 0.0
        %1357 = vmatpush1.msra.mxu0 0.0
        %1358 = vmatprep.subr.mxu0 0.0
        %1359 = vmatpush1.msra.mxu0 0.0
        %1360 = vmatprep.subr.mxu0 0.0
        %1361 = vmatpush1.msra.mxu0 0.0
        %1362 = vmatprep.subr.mxu0 0.0
        %1363 = vmatpush1.msra.mxu0 0.0
        %1364 = vmatprep.subr.mxu0 0.0
        %1365 = vmatpush1.msra.mxu0 0.0
        %1366 = vmatprep.subr.mxu0 0.0
        %1367 = vmatpush1.msra.mxu0 0.0
        %1368 = vmatprep.subr.mxu0 0.0
        %1369 = vmatpush1.msra.mxu0 0.0
        %1370 = vmatprep.subr.mxu0 0.0
        %1371 = vmatpush1.msra.mxu0 0.0
        %1372 = vmatprep.subr.mxu0 0.0
        %1373 = vmatpush1.msra.mxu0 0.0
        %1374 = vmatprep.subr.mxu0 0.0
        %1375 = vmatpush1.msra.mxu0 0.0
        %1376 = vmatprep.subr.mxu0 0.0
        %1377 = vmatpush1.msra.mxu0 0.0
        %1378 = vmatprep.subr.mxu0 0.0
        %1379 = vmatpush1.msra.mxu0 0.0
        %1380 = vmatprep.subr.mxu0 0.0
        %1381 = vmatpush1.msra.mxu0 0.0
        %1382 = vmatprep.subr.mxu0 0.0
        %1383 = vmatpush1.msra.mxu0 0.0
        %1384 = vmatprep.subr.mxu0 0.0
        %1385 = vmatpush1.msra.mxu0 0.0
        %1386 = vmatprep.subr.mxu0 0.0
        %1387 = vmatpush1.msra.mxu0 0.0
        %1388 = vmatprep.subr.mxu0 0.0
        %1389 = vmatpush1.msra.mxu0 0.0
        %1390 = vmatprep.subr.mxu0 0.0
        %1391 = vmatpush1.msra.mxu0 0.0
        %1392 = vmatprep.subr.mxu0 0.0
        %1393 = vmatpush1.msra.mxu0 0.0
        %1394 = vmatprep.subr.mxu0 0.0
        %1395 = vmatpush1.msra.mxu0 0.0
        %1396 = vmatprep.subr.mxu0 0.0
        %1397 = vmatpush1.msra.mxu0 0.0
        %1398 = vmatprep.subr.mxu0 0.0
        %1399 = vmatpush1.msra.mxu0 0.0
        %1400 = vmatprep.subr.mxu0 0.0
        %1401 = vmatpush1.msra.mxu0 0.0
        %1402 = vmatprep.subr.mxu0 0.0
        %1403 = vmatpush1.msra.mxu0 0.0
        %1404 = vmatprep.mubr.f32.mxu0 0.0
        %1405 = vmatmul.mubr.f32.gmra.mrb[0].mxu0 %v1258
        %v1406 = vpop.f32.mrb[0].mxu0
        %v1407 = vadd.f32 %v1255, %v1406
        %v1408 = vpop.f32.mrb[0].mxu0
        %1409 = vdwg.mxu0
        %v1410 = vmul.f32 %v1336, 0.1
        %v1411 = vld [vmem:[%s240] sm:$0xf]
        %v1412 = vadd.f32 %v1410, %v1411
        %vm1413 = vcmask 125952
        %1414 = vst.msk [vmem:[%s268] sm:$0xf] %vm1413, %v1412
        %v1415 = vld [vmem:[%s240] sm:$0xf]
        %1417 = vrot.lane.b32.xlu0 %v1415, 2
        %v1418 = vpop.permute.xlu0 %1417
        %v1420 = vadd.f32 %v1410, %v1418
        %1422 = vrot.lane.b32.xlu0 %v1420, 126
        %v1423 = vpop.permute.xlu0 %1422
        %vm1425 = vcmask 257152
        %1426 = vst.msk [vmem:[%s268] sm:$0xf] %vm1425, %v1423
        %v1427 = vld [vmem:[%s240] sm:$0xf]
        %1429 = vrot.lane.b32.xlu0 %v1427, 4
        %v1430 = vpop.permute.xlu0 %1429
        %v1432 = vadd.f32 %v1410, %v1430
        %1434 = vrot.lane.b32.xlu0 %v1432, 124
        %v1435 = vpop.permute.xlu0 %1434
        %vm1437 = vcmask 388352
        %1438 = vst.msk [vmem:[%s268] sm:$0xf] %vm1437, %v1435
        %v1439 = vld [vmem:[%s240] sm:$0xf]
        %1441 = vrot.lane.b32.xlu0 %v1439, 6
        %v1442 = vpop.permute.xlu0 %1441
        %v1444 = vadd.f32 %v1410, %v1442
        %1446 = vrot.lane.b32.xlu0 %v1444, 122
        %v1447 = vpop.permute.xlu0 %1446
        %vm1449 = vcmask 519552
        %1450 = vst.msk [vmem:[%s268] sm:$0xf] %vm1449, %v1447
        %v1451 = vld [vmem:[%s240] sm:$0xf]
        %1453 = vrot.lane.b32.xlu0 %v1451, 8
        %v1454 = vpop.permute.xlu0 %1453
        %v1456 = vadd.f32 %v1410, %v1454
        %1458 = vrot.lane.b32.xlu0 %v1456, 120
        %v1459 = vpop.permute.xlu0 %1458
        %vm1461 = vcmask 650752
        %1462 = vst.msk [vmem:[%s268] sm:$0xf] %vm1461, %v1459
        %v1463 = vld [vmem:[%s240] sm:$0xf]
        %1465 = vrot.lane.b32.xlu0 %v1463, 10
        %v1466 = vpop.permute.xlu0 %1465
        %v1468 = vadd.f32 %v1410, %v1466
        %1470 = vrot.lane.b32.xlu0 %v1468, 118
        %v1471 = vpop.permute.xlu0 %1470
        %vm1473 = vcmask 781952
        %1474 = vst.msk [vmem:[%s268] sm:$0xf] %vm1473, %v1471
        %v1475 = vld [vmem:[%s240] sm:$0xf]
        %1477 = vrot.lane.b32.xlu0 %v1475, 12
        %v1478 = vpop.permute.xlu0 %1477
        %v1480 = vadd.f32 %v1410, %v1478
        %1482 = vrot.lane.b32.xlu0 %v1480, 116
        %v1483 = vpop.permute.xlu0 %1482
        %vm1485 = vcmask 913152
        %1486 = vst.msk [vmem:[%s268] sm:$0xf] %vm1485, %v1483
        %v1487 = vmul.f32 %v1338, 0.1
        %v1488 = vld [vmem:[%s240] sm:$0xf]
        %1490 = vrot.lane.b32.xlu0 %v1488, 14
        %v1491 = vpop.permute.xlu0 %1490
        %v1493 = vadd.f32 %v1410, %v1491
        %v1494 = vadd.f32 %v1487, %v1491
        %v1497 = vcombine.low %v1493, %v1494
        %1498 = vrot.lane.b32.xlu0 %v1497, 114
        %v1499 = vpop.permute.xlu0 %1498
        %v1500 = vrot.slane %v1499, 4
        %vm1501 = vcmask 932864
        %v1502 = vsel %vm1501, %v1499, %v1500
        %vm1504 = vcmask 1044352
        %1505 = vst.msk [vmem:[%s268] sm:$0xf] %vm1504, %v1502
        %v1506 = vld [vmem:[%s240 + $0x4] sm:$0xf]
        %1508 = vrot.lane.b32.xlu0 %v1506, 16
        %v1509 = vpop.permute.xlu0 %1508
        %v1511 = vadd.f32 %v1487, %v1509
        %1513 = vrot.lane.b32.xlu0 %v1511, 112
        %v1514 = vpop.permute.xlu0 %1513
        %1516 = vst.msk [vmem:[%s268 + $0x4] sm:$0xf] %vm1413, %v1514
        %v1517 = vld [vmem:[%s240 + $0x4] sm:$0xf]
        %1519 = vrot.lane.b32.xlu0 %v1517, 18
        %v1520 = vpop.permute.xlu0 %1519
        %v1522 = vadd.f32 %v1487, %v1520
        %1524 = vrot.lane.b32.xlu0 %v1522, 110
        %v1525 = vpop.permute.xlu0 %1524
        %1527 = vst.msk [vmem:[%s268 + $0x4] sm:$0xf] %vm1425, %v1525
        %v1528 = vld [vmem:[%s240 + $0x4] sm:$0xf]
        %1530 = vrot.lane.b32.xlu0 %v1528, 20
        %v1531 = vpop.permute.xlu0 %1530
        %v1533 = vadd.f32 %v1487, %v1531
        %1535 = vrot.lane.b32.xlu0 %v1533, 108
        %v1536 = vpop.permute.xlu0 %1535
        %1538 = vst.msk [vmem:[%s268 + $0x4] sm:$0xf] %vm1437, %v1536
        %v1539 = vld [vmem:[%s240 + $0x4] sm:$0xf]
        %1541 = vrot.lane.b32.xlu0 %v1539, 22
        %v1542 = vpop.permute.xlu0 %1541
        %v1544 = vadd.f32 %v1487, %v1542
        %1546 = vrot.lane.b32.xlu0 %v1544, 106
        %v1547 = vpop.permute.xlu0 %1546
        %1549 = vst.msk [vmem:[%s268 + $0x4] sm:$0xf] %vm1449, %v1547
        %v1550 = vld [vmem:[%s240 + $0x4] sm:$0xf]
        %1552 = vrot.lane.b32.xlu0 %v1550, 24
        %v1553 = vpop.permute.xlu0 %1552
        %v1555 = vadd.f32 %v1487, %v1553
        %1557 = vrot.lane.b32.xlu0 %v1555, 104
        %v1558 = vpop.permute.xlu0 %1557
        %1560 = vst.msk [vmem:[%s268 + $0x4] sm:$0xf] %vm1461, %v1558
        %v1561 = vld [vmem:[%s240 + $0x4] sm:$0xf]
        %1563 = vrot.lane.b32.xlu0 %v1561, 26
        %v1564 = vpop.permute.xlu0 %1563
        %v1566 = vadd.f32 %v1487, %v1564
        %1568 = vrot.lane.b32.xlu0 %v1566, 102
        %v1569 = vpop.permute.xlu0 %1568
        %1571 = vst.msk [vmem:[%s268 + $0x4] sm:$0xf] %vm1473, %v1569
        %v1572 = vmul.f32 %v1407, 0.1
        %v1573 = vld [vmem:[%s240 + $0x4] sm:$0xf]
        %1575 = vrot.lane.b32.xlu0 %v1573, 28
        %v1576 = vpop.permute.xlu0 %1575
        %v1578 = vadd.f32 %v1487, %v1576
        %v1579 = vadd.f32 %v1572, %v1576
        %v1582 = vcombine.low %v1578, %v1579
        %1583 = vrot.lane.b32.xlu0 %v1582, 100
        %v1584 = vpop.permute.xlu0 %1583
        %v1585 = vrot.slane %v1584, 4
        %vm1586 = vcmask 818176
        %v1587 = vsel %vm1586, %v1584, %v1585
        %1589 = vst.msk [vmem:[%s268 + $0x4] sm:$0xf] %vm1485, %v1587
        %v1590 = vld [vmem:[%s240 + $0x4] sm:$0xf]
        %1592 = vrot.lane.b32.xlu0 %v1590, 30
        %v1593 = vpop.permute.xlu0 %1592
        %v1595 = vadd.f32 %v1572, %v1593
        %1597 = vrot.lane.b32.xlu0 %v1595, 98
        %v1598 = vpop.permute.xlu0 %1597
        %1600 = vst.msk [vmem:[%s268 + $0x4] sm:$0xf] %vm1504, %v1598
        %s1601 = sand.u32 %s163, 1
        %s1602 = scalar_lea.sflag [#allocation7], %s1601
        %s1603 = sand.u32 %s163, 1
        %s1604 = smul.addr %s1603, 8
        %s1605 = scalar_lea.vmem [#allocation8], %s1604
        // Predicated region
        $region49: #{tpu_custom_call.1} parent=43 // pred_check
          %p1606 = pneg %p173
        $region50: #{tpu_custom_call.1} parent=43 // pred_check_branch
          %1608 = sbr.rel (%p1606) target = $region52
        $region51: #{tpu_custom_call.1} parent=43 // pred_region
          %s1610 = ssub.s32 128, 128
          %1611 = vsyncadd %s1602, %s1610
          %s1612 = smul.addr %s24, 2
          %s1613 = smul.addr %s1612, 64
          %s1614 = scalar_lea.hbm %s6, %s1613
          %s1616 = sshll.u32 %s1605, 4
          %s1617 = int_to_ptr.vmem [resolvable:$true] %s1616
          %1619 = dma.vmem_to_hbm [thread:$0]  %s1617, 128, %s1614, %s1602
        $region52: #{tpu_custom_call.1} parent=43 // pred_fallthru
          _
      $region44: #{tpu_custom_call.1} parent=5 // pred_fallthru
        _
      %p1620 = scmp.le.s32.totalorder 2, %s19
      // Predicated region
      $region53: #{tpu_custom_call.1} parent=5 // pred_check
        %p1621 = pneg %p1620
      $region54: #{tpu_custom_call.1} parent=5 // pred_check_branch
        %1623 = sbr.rel (%p1621) target = $region56
      $region55: #{tpu_custom_call.1} parent=5 // pred_region
        %s1624 = ssub.s32 %s19, 2
        // Predicated region
        $region57: #{tpu_custom_call.1} parent=55 // pred_check
          %p1625 = pneg %p179
        $region58: #{tpu_custom_call.1} parent=55 // pred_check_branch
          %1627 = sbr.rel (%p1625) target = $region60
        $region59: #{tpu_custom_call.1} parent=55 // pred_region
          %s1628 = sand.u32 %s164, 1
          %s1629 = scalar_lea.sflag [#allocation7], %s1628
          %s1630 = sand.u32 %s164, 1
          %s1631 = smul.addr %s1630, 8
          %s1632 = scalar_lea.vmem [#allocation8], %s1631
          %1633 = dma.done %s1629, 128
        $region60: #{tpu_custom_call.1} parent=55 // pred_fallthru
          _
      $region56: #{tpu_custom_call.1} parent=5 // pred_fallthru
        _
    $region6: #{tpu_custom_call.1} parent=1 // loop_footer
      %s23 = sadd.s32 1, %s19
    $region7: #{tpu_custom_call.1} parent=1 // loop_footer_branch
      %18 = sbr.rel target = $region3
    $region8: #{tpu_custom_call.1} parent=1 // loop_exit
      _
    %1634 = vsyncpa [#allocation6], 1
    %s1635 = scalar_lea.sflag [#allocation6], 1
    %1636 = vsyncpa %s1635, 1
    %1637 = vsyncpa [#allocation7], 1
    %s1638 = scalar_lea.sflag [#allocation7], 1
    %1639 = vsyncpa %s1638, 1

</llo_original>
